<compile_context>
chip_gen: v7x
topology: tpu7x:2x2x1
jax: 0.10.0
libtpu: 0.0.40
codegen_flags: <defaults>
</compile_context>

<pallas_src>
import jax
import jax.numpy as jnp
from jax import lax
from jax.experimental import pallas as pl
from jax.experimental.pallas import tpu as pltpu

BN_EPS = 1e-3


def _round_up(x, m):
    return ((x + m - 1) // m) * m


def _pick_tile(m, cap=512):
    """Largest row tile <= cap that divides m (avoids padding M); fall back to padding."""
    if m <= cap:
        return m, m, False
    for t in range(cap, 127, -8):
        if m % t == 0:
            return t, m, False
    return cap, _round_up(m, cap), True


# ---------------------------------------------------------------------------
# Pallas kernels
# ---------------------------------------------------------------------------
def _bn_relu_matmul_kernel(x_ref, scale_ref, bias_ref, w_ref, o_ref, stats_ref):
    # x: (TM, Cin) f32/bf16, scale/bias: (1, Cin) f32, w: (Cin, CoutP) bf16.
    y = jnp.maximum(x_ref[...].astype(jnp.float32) * scale_ref[...] + bias_ref[...], 0.0)
    out = jnp.dot(y.astype(jnp.bfloat16), w_ref[...],
                  preferred_element_type=jnp.float32)
    o_ref[...] = out.astype(o_ref.dtype)
    # Per-tile partial BN stats of the (f32) output: row0 = sum, row1 = sum of squares.
    s1 = jnp.sum(out, axis=0, keepdims=True)
    s2 = jnp.sum(out * out, axis=0, keepdims=True)
    stats_ref[0] = jnp.concatenate(
        [s1, s2, jnp.zeros((6, out.shape[1]), jnp.float32)], axis=0)


def _make_conv3x3_kernel(h, w):
    def kernel(x_ref, scale_ref, bias_ref, w_ref, o_ref, stats_ref, pad_ref):
        # x_ref: (1, H, W, C) raw input; w_ref: (9*C, CoutP) block-diag bf16 slab.
        c = x_ref.shape[-1]
        a = jnp.maximum(
            x_ref[0].astype(jnp.float32) * scale_ref[...] + bias_ref[...], 0.0)
        # Zero-padded activation lives only in VMEM (no HBM pad copy).
        pad_ref[...] = jnp.zeros(pad_ref.shape, jnp.float32)
        pad_ref[1:h + 1, 1:w + 1, :] = a
        # im2col: concatenate the 9 taps along the K axis -> one well-shaped matmul.
        cols = []
        for di in range(3):
            for dj in range(3):
                cols.append(pad_ref[di:di + h, dj:dj + w, :].reshape(h * w, c))
        xcol = jnp.concatenate(cols, axis=1).astype(jnp.bfloat16)      # (H*W, 9C)
        out = jnp.dot(xcol, w_ref[...], preferred_element_type=jnp.float32)
        o_ref[0] = out.astype(o_ref.dtype)
        s1 = jnp.sum(out, axis=0, keepdims=True)
        s2 = jnp.sum(out * out, axis=0, keepdims=True)
        stats_ref[0] = jnp.concatenate(
            [s1, s2, jnp.zeros((6, out.shape[1]), jnp.float32)], axis=0)
    return kernel


# ---------------------------------------------------------------------------
# BN-stat helpers (single pass; or finalize fused per-tile partials)
# ---------------------------------------------------------------------------
def _moments(x_nhwc):
    x32 = x_nhwc.astype(jnp.float32)
    cnt = x32.shape[0] * x32.shape[1] * x32.shape[2]
    s1 = jnp.sum(x32, axis=(0, 1, 2))
    s2 = jnp.sum(x32 * x32, axis=(0, 1, 2))
    mean = s1 / cnt
    var = jnp.maximum(s2 / cnt - mean * mean, 0.0)
    return mean, var


def _moments_from_stats(stats, count, cout):
    tot = jnp.sum(stats.astype(jnp.float32), axis=0)        # (8, CoutP)
    mean = tot[0, :cout] / count
    var = jnp.maximum(tot[1, :cout] / count - mean * mean, 0.0)
    return mean, var


def _fold_bn(mean, var, gamma, beta):
    scale = gamma.astype(jnp.float32) * lax.rsqrt(var + BN_EPS)
    bias = beta.astype(jnp.float32) - mean * scale
    c = scale.shape[0]
    return scale.reshape(1, c), bias.reshape(1, c)


# ---------------------------------------------------------------------------
# Pallas wrappers
# ---------------------------------------------------------------------------
def _bn_relu_matmul(x2d, scale, bias, w2d, cout, out_dtype):
    m, cin = x2d.shape
    coutp = _round_up(cout, 128)                        # lane-dense output stores
    w2d = jnp.pad(w2d, ((0, 0), (0, coutp - cout))).astype(jnp.bfloat16)
    tm, mp, padded = _pick_tile(m)
    if padded:
        x2d = jnp.pad(x2d, ((0, mp - m), (0, 0)))
    ntiles = mp // tm
    out, stats = pl.pallas_call(
        _bn_relu_matmul_kernel,
        out_shape=(jax.ShapeDtypeStruct((mp, coutp), out_dtype),
                   jax.ShapeDtypeStruct((ntiles, 8, coutp), jnp.float32)),
        grid=(ntiles,),
        in_specs=[
            pl.BlockSpec((tm, cin), lambda i: (i, 0)),
            pl.BlockSpec((1, cin), lambda i: (0, 0)),
            pl.BlockSpec((1, cin), lambda i: (0, 0)),
            pl.BlockSpec((cin, coutp), lambda i: (0, 0)),   # weight resident
        ],
        out_specs=(pl.BlockSpec((tm, coutp), lambda i: (i, 0)),
                   pl.BlockSpec((1, 8, coutp), lambda i: (i, 0, 0))),
        compiler_params=pltpu.CompilerParams(dimension_semantics=("parallel",)),
    )(x2d, scale, bias, w2d)
    out = out[:m, :cout]
    if padded:           # padded rows would contaminate the fused statistics
        stats = None
    return out, stats


def _bn_act_conv1x1(x_nhwc, mean, var, gamma, beta, w_oihw, stride, out_dtype):
    # BN stats are over the full-res input; BN+ReLU is elementwise so we may
    # subsample first (direct stride handling) and fuse scale/bias into the matmul.
    scale, bias = _fold_bn(mean, var, gamma, beta)
    if stride > 1:
        x_nhwc = x_nhwc[:, ::stride, ::stride, :]
    n, h, w, c = x_nhwc.shape
    cout = w_oihw.shape[0]
    w2d = jnp.transpose(w_oihw.reshape(cout, c))                 # (Cin, Cout)
    y2d, stats = _bn_relu_matmul(x_nhwc.reshape(-1, c), scale, bias, w2d, cout,
                                 out_dtype)
    y = y2d.reshape(n, h, w, cout)
    if stats is None:
        m2, v2 = _moments(y)
    else:
        m2, v2 = _moments_from_stats(stats, n * h * w, cout)
    return y, m2, v2


def _bn_act_conv3x3_grouped(x_nhwc, mean, var, gamma, beta, w_oihw, stride, groups,
                            out_dtype):
    n, h, w, c = x_nhwc.shape
    cout, cin_g = w_oihw.shape[0], w_oihw.shape[1]
    cout_g = cout // groups
    assert cin_g * groups == c and cout_g * groups == cout
    coutp = _round_up(cout, 128)
    scale, bias = _fold_bn(mean, var, gamma, beta)

    # Block-diagonal (9*C, CoutP) slab so taps go into K and all groups share one
    # lane-dense matmul / store.
    wg = w_oihw.reshape(groups, cout_g, cin_g, 3, 3)
    wg = jnp.transpose(wg, (3, 4, 0, 2, 1)).reshape(9, groups, cin_g, cout_g)
    eye = jnp.eye(groups, dtype=wg.dtype)
    slab = jnp.einsum('tgio,gh->tgiho', wg, eye).reshape(9 * c, cout)
    slab = jnp.pad(slab, ((0, 0), (0, coutp - cout))).astype(jnp.bfloat16)

    out, stats = pl.pallas_call(
        _make_conv3x3_kernel(h, w),
        out_shape=(jax.ShapeDtypeStruct((n, h * w, coutp), out_dtype),
                   jax.ShapeDtypeStruct((n, 8, coutp), jnp.float32)),
        grid=(n,),
        in_specs=[
            pl.BlockSpec((1, h, w, c), lambda i: (i, 0, 0, 0)),
            pl.BlockSpec((1, c), lambda i: (0, 0)),
            pl.BlockSpec((1, c), lambda i: (0, 0)),
            pl.BlockSpec((9 * c, coutp), lambda i: (0, 0)),
        ],
        out_specs=(pl.BlockSpec((1, h * w, coutp), lambda i: (i, 0, 0)),
                   pl.BlockSpec((1, 8, coutp), lambda i: (i, 0, 0))),
        scratch_shapes=[pltpu.VMEM((h + 2, w + 2, c), jnp.float32)],
        compiler_params=pltpu.CompilerParams(dimension_semantics=("parallel",)),
    )(x_nhwc, scale, bias, slab)

    out = out[..., :cout].reshape(n, h, w, cout)
    if stride > 1:
        # TODO(synk): computed at stride 1 then subsampled (4x extra MACs on 'down').
        out = out[:, ::stride, ::stride, :]
        m2, v2 = _moments(out)
    else:
        m2, v2 = _moments_from_stats(stats, n * h * w, cout)
    return out, m2, v2


# ---------------------------------------------------------------------------
# DualPathBlock forward — NHWC native (no transposes between chained blocks)
# ---------------------------------------------------------------------------
def dual_path_block_forward_nhwc(x, params, *, num_1x1_c, inc, groups,
                                 block_type='normal', b=False):
    if isinstance(x, (tuple, list)):
        x_in = jnp.concatenate([t.astype(jnp.float32) for t in x], axis=-1)
    else:
        x_in = x.astype(jnp.float32)

    if block_type == 'proj':
        key_stride, has_proj = 1, True
    elif block_type == 'down':
        key_stride, has_proj = 2, True
    else:
        key_stride, has_proj = 1, False

    mean_in, var_in = _moments(x_in)          # shared by the projection and c1x1_a BNs

    if has_proj:
        p = params['c1x1_w']
        x_s, _, _ = _bn_act_conv1x1(x_in, mean_in, var_in, p['bn_gamma'],
                                    p['bn_beta'], p['conv_w'], key_stride,
                                    jnp.float32)
        x_s1, x_s2 = x_s[..., :num_1x1_c], x_s[..., num_1x1_c:]
    else:
        x_s1 = x[0].astype(jnp.float32)
        x_s2 = x[1].astype(jnp.float32)

    p = params['c1x1_a']
    h1, m1, v1 = _bn_act_conv1x1(x_in, mean_in, var_in, p['bn_gamma'], p['bn_beta'],
                                 p['conv_w'], 1, jnp.bfloat16)
    p = params['c3x3_b']
    h2, m2, v2 = _bn_act_conv3x3_grouped(h1, m1, v1, p['bn_gamma'], p['bn_beta'],
                                         p['conv_w'], key_stride, groups,
                                         jnp.bfloat16)
    p = params['c1x1_c']
    if b:
        # CatBnAct + two 1x1 convs == one fused BN/ReLU/matmul with concatenated weights.
        w_c = jnp.concatenate([params['c1x1_c1_w'], params['c1x1_c2_w']], axis=0)
    else:
        w_c = p['conv_w']
    h3, _, _ = _bn_act_conv1x1(h2, m2, v2, p['bn_gamma'], p['bn_beta'], w_c, 1,
                               jnp.float32)

    out1, out2 = h3[..., :num_1x1_c], h3[..., num_1x1_c:]
    resid = x_s1 + out1
    dense = jnp.concatenate([x_s2, out2], axis=-1)
    return resid, dense


def dual_path_block_forward(x, params, **kw):
    # NCHW-in / NCHW-out wrapper for PyTorch API parity.
    if isinstance(x, (tuple, list)):
        xh = tuple(jnp.transpose(t, (0, 2, 3, 1)) for t in x)
    else:
        xh = jnp.transpose(x, (0, 2, 3, 1))
    r, d = dual_path_block_forward_nhwc(xh, params, **kw)
    return jnp.transpose(r, (0, 3, 1, 2)), jnp.transpose(d, (0, 3, 1, 2))


# ---------------------------------------------------------------------------
# Plain-JAX reference (mirrors the PyTorch module; training-mode BN stats, NCHW)
# ---------------------------------------------------------------------------
def _ref_bn_act_conv(x, gamma, beta, w, stride, padding, groups=1):
    mean = jnp.mean(x, axis=(0, 2, 3), keepdims=True)
    var = jnp.var(x, axis=(0, 2, 3), keepdims=True)
    y = (x - mean) * lax.rsqrt(var + BN_EPS)
    y = y * gamma.reshape(1, -1, 1, 1) + beta.reshape(1, -1, 1, 1)
    y = jnp.maximum(y, 0.0)
    return lax.conv_general_dilated(
        y, w, (stride, stride), ((padding, padding), (padding, padding)),
        feature_group_count=groups,
        dimension_numbers=("NCHW", "OIHW", "NCHW"))


def _reference_block(x, params, *, num_1x1_c, inc, groups,
                     block_type='normal', b=False):
    x_in = jnp.concatenate(x, axis=1) if isinstance(x, (tuple, list)) else x
    x_in = x_in.astype(jnp.float32)
    key_stride = 2 if block_type == 'down' else 1
    has_proj = block_type in ('proj', 'down')

    if has_proj:
        p = params['c1x1_w']
        x_s = _ref_bn_act_conv(x_in, p['bn_gamma'], p['bn_beta'], p['conv_w'],
                               key_stride, 0)
        x_s1, x_s2 = x_s[:, :num_1x1_c], x_s[:, num_1x1_c:]
    else:
        x_s1 = x[0].astype(jnp.float32)
        x_s2 = x[1].astype(jnp.float32)

    p = params['c1x1_a']
    h = _ref_bn_act_conv(x_in, p['bn_gamma'], p['bn_beta'], p['conv_w'], 1, 0)
    p = params['c3x3_b']
    h = _ref_bn_act_conv(h, p['bn_gamma'], p['bn_beta'], p['conv_w'],
                         key_stride, 1, groups)
    p = params['c1x1_c']
    if b:
        mean = jnp.mean(h, axis=(0, 2, 3), keepdims=True)
        var = jnp.var(h, axis=(0, 2, 3), keepdims=True)
        y = (h - mean) * lax.rsqrt(var + BN_EPS)
        y = y * p['bn_gamma'].reshape(1, -1, 1, 1) + p['bn_beta'].reshape(1, -1, 1, 1)
        y = jnp.maximum(y, 0.0)
        out1 = lax.conv_general_dilated(y, params['c1x1_c1_w'], (1, 1),
                                        ((0, 0), (0, 0)),
                                        dimension_numbers=("NCHW", "OIHW", "NCHW"))
        out2 = lax.conv_general_dilated(y, params['c1x1_c2_w'], (1, 1),
                                        ((0, 0), (0, 0)),
                                        dimension_numbers=("NCHW", "OIHW", "NCHW"))
    else:
        h = _ref_bn_act_conv(h, p['bn_gamma'], p['bn_beta'], p['conv_w'], 1, 0)
        out1, out2 = h[:, :num_1x1_c], h[:, num_1x1_c:]

    resid = x_s1 + out1
    dense = jnp.concatenate([x_s2, out2], axis=1)
    return resid, dense


# ---------------------------------------------------------------------------
# Parameter init + self-test
# ---------------------------------------------------------------------------
def _init_block_params(key, in_chs, num_1x1_a, num_3x3_b, num_1x1_c, inc,
                       groups, block_type, b):
    ks = iter(jax.random.split(key, 20))

    def bn(c):
        return (1.0 + 0.2 * jax.random.normal(next(ks), (c,), jnp.float32),
                0.1 * jax.random.normal(next(ks), (c,), jnp.float32))

    def conv(cout, cin, k):
        return 0.1 * jax.random.normal(next(ks), (cout, cin, k, k), jnp.float32)

    params = {}
    if block_type in ('proj', 'down'):
        g, bt = bn(in_chs)
        params['c1x1_w'] = {'bn_gamma': g, 'bn_beta': bt,
                            'conv_w': conv(num_1x1_c + 2 * inc, in_chs, 1)}
    g, bt = bn(in_chs)
    params['c1x1_a'] = {'bn_gamma': g, 'bn_beta': bt,
                        'conv_w': conv(num_1x1_a, in_chs, 1)}
    g, bt = bn(num_1x1_a)
    params['c3x3_b'] = {'bn_gamma': g, 'bn_beta': bt,
                        'conv_w': conv(num_3x3_b, num_1x1_a // groups, 3)}
    g, bt = bn(num_3x3_b)
    if b:
        params['c1x1_c'] = {'bn_gamma': g, 'bn_beta': bt}
        params['c1x1_c1_w'] = conv(num_1x1_c, num_3x3_b, 1)
        params['c1x1_c2_w'] = conv(inc, num_3x3_b, 1)
    else:
        params['c1x1_c'] = {'bn_gamma': g, 'bn_beta': bt,
                            'conv_w': conv(num_1x1_c + inc, num_3x3_b, 1)}
    return params


def _check(name, got_nhwc, want_nchw):
    got = jnp.transpose(got_nhwc, (0, 3, 1, 2)).astype(jnp.float32)
    assert got.shape == want_nchw.shape, (name, got.shape, want_nchw.shape)
    err = float(jnp.max(jnp.abs(got - want_nchw)))
    assert jnp.allclose(got, want_nchw, atol=8e-2, rtol=8e-2), (name, err)


if __name__ == "__main__":
    key = jax.random.PRNGKey(0)
    kx, kp1, kp2, kp3 = jax.random.split(key, 4)

    N, H, W = 2, 16, 16
    n1a, n3b, n1c, inc, grp = 32, 32, 32, 16, 2

    x0 = jax.random.normal(kx, (N, 48, H, W), jnp.float32)
    x0_nhwc = jnp.transpose(x0, (0, 2, 3, 1))

    fwd = jax.jit(dual_path_block_forward_nhwc,
                  static_argnames=('num_1x1_c', 'inc', 'groups', 'block_type', 'b'))

    # --- 'proj' block (has_proj, stride 1), in_chs = 48 ---
    cfg1 = dict(num_1x1_c=n1c, inc=inc, groups=grp, block_type='proj', b=False)
    p1 = _init_block_params(kp1, 48, n1a, n3b, n1c, inc, grp, 'proj', False)
    r1, d1 = jax.block_until_ready(fwd(x0_nhwc, p1, **cfg1))
    rr, rd = _reference_block(x0, p1, **cfg1)
    _check('proj.resid', r1, rr)
    _check('proj.dense', d1, rd)

    # --- 'normal' block on the tuple output (stays NHWC), in_chs = 32 + 48 = 80 ---
    cfg2 = dict(num_1x1_c=n1c, inc=inc, groups=grp, block_type='normal', b=False)
    p2 = _init_block_params(kp2, 80, n1a, n3b, n1c, inc, grp, 'normal', False)
    r2, d2 = jax.block_until_ready(fwd((r1, d1), p2, **cfg2))
    rr, rd = _reference_block((jnp.transpose(r1, (0, 3, 1, 2)),
                               jnp.transpose(d1, (0, 3, 1, 2))), p2, **cfg2)
    _check('normal.resid', r2, rr)
    _check('normal.dense', d2, rd)

    # --- 'down' block with b=True (stride 2), in_chs = 32 + 64 = 96 ---
    cfg3 = dict(num_1x1_c=n1c, inc=inc, groups=grp, block_type='down', b=True)
    p3 = _init_block_params(kp3, 96, n1a, n3b, n1c, inc, grp, 'down', True)
    r3, d3 = jax.block_until_ready(fwd((r2, d2), p3, **cfg3))
    rr, rd = _reference_block((jnp.transpose(r2, (0, 3, 1, 2)),
                               jnp.transpose(d2, (0, 3, 1, 2))), p3, **cfg3)
    _check('down.resid', r3, rr)
    _check('down.dense', d3, rd)

    assert r3.shape == (N, H // 2, W // 2, n1c), r3.shape
    assert d3.shape == (N, H // 2, W // 2, 3 * inc), d3.shape

    print("KERNEL_OK")
</pallas_src>

<mosaic_0001>
module attributes {stable_mosaic.version = 11 : i64} {
  func.func @_bn_relu_matmul_kernel(%arg0: i32, %arg1: memref<512x48xf32, #tpu.memory_space<vmem>>, %arg2: memref<1x48xf32, #tpu.memory_space<vmem>>, %arg3: memref<1x48xf32, #tpu.memory_space<vmem>>, %arg4: memref<48x128xbf16, #tpu.memory_space<vmem>>, %arg5: memref<512x128xbf16, #tpu.memory_space<vmem>>, %arg6: memref<1x8x128xf32, #tpu.memory_space<vmem>>) attributes {dimension_semantics = [#tpu.dimension_semantics<parallel>], iteration_bounds = array<i64: 1>, scalar_prefetch = 0 : i64, scratch_operands = 0 : i64, tpu.core_type = #tpu.core_type<tc>, window_params = [{transform_indices = @transform_0, window_bounds = array<i64: 512, 48>}, {pipeline_mode = #tpu.pipeline_mode<synchronous>, transform_indices = @transform_1, window_bounds = array<i64: 1, 48>}, {pipeline_mode = #tpu.pipeline_mode<synchronous>, transform_indices = @transform_2, window_bounds = array<i64: 1, 48>}, {pipeline_mode = #tpu.pipeline_mode<synchronous>, transform_indices = @transform_3, window_bounds = array<i64: 48, 128>}, {transform_indices = @transform_4, window_bounds = array<i64: 512, 128>}, {transform_indices = @transform_5, window_bounds = array<i64: 1, 8, 128>}]} {
    %c0 = arith.constant 0 : index
    %c0_0 = arith.constant 0 : index
    %0 = vector.load %arg1[%c0, %c0_0] : memref<512x48xf32, #tpu.memory_space<vmem>>, vector<512x48xf32>
    %c0_1 = arith.constant 0 : index
    %c0_2 = arith.constant 0 : index
    %1 = vector.load %arg2[%c0_1, %c0_2] : memref<1x48xf32, #tpu.memory_space<vmem>>, vector<1x48xf32>
    %2 = vector.broadcast %1 : vector<1x48xf32> to vector<512x48xf32>
    %3 = arith.mulf %0, %2 : vector<512x48xf32>
    %c0_3 = arith.constant 0 : index
    %c0_4 = arith.constant 0 : index
    %4 = vector.load %arg3[%c0_3, %c0_4] : memref<1x48xf32, #tpu.memory_space<vmem>>, vector<1x48xf32>
    %5 = vector.broadcast %4 : vector<1x48xf32> to vector<512x48xf32>
    %6 = arith.addf %3, %5 : vector<512x48xf32>
    %cst = arith.constant 0.000000e+00 : f32
    %7 = vector.broadcast %cst : f32 to vector<512x48xf32>
    %8 = arith.maximumf %6, %7 : vector<512x48xf32>
    %9 = arith.truncf %8 : vector<512x48xf32> to vector<512x48xbf16>
    %c0_5 = arith.constant 0 : index
    %c0_6 = arith.constant 0 : index
    %10 = vector.load %arg4[%c0_5, %c0_6] : memref<48x128xbf16, #tpu.memory_space<vmem>>, vector<48x128xbf16>
    %cst_7 = arith.constant dense<0.000000e+00> : vector<512x128xf32>
    %11 = tpu.matmul %9, %10, %cst_7 {dimension_numbers = #tpu.dot_dimension_numbers<[1], [0], [0], [1], [0, 0, 1, 1], [], []>} : vector<512x48xbf16>, vector<48x128xbf16>, vector<512x128xf32> -> vector<512x128xf32>
    %12 = arith.truncf %11 : vector<512x128xf32> to vector<512x128xbf16>
    %c0_8 = arith.constant 0 : index
    %c0_9 = arith.constant 0 : index
    %13 = vector.load %arg5[%c0_8, %c0_9] : memref<512x128xbf16, #tpu.memory_space<vmem>>, vector<512x128xbf16>
    tpu.vector_store %arg5[%c0_8, %c0_9], %12 {strides = array<i32>} : memref<512x128xbf16, #tpu.memory_space<vmem>>, vector<512x128xbf16>,
    %cst_10 = arith.constant dense<0.000000e+00> : vector<128xf32>
    %14 = vector.multi_reduction <add>, %11, %cst_10 [0] : vector<512x128xf32> to vector<128xf32>
    %15 = vector.shape_cast %14 : vector<128xf32> to vector<1x128xf32>
    %16 = arith.mulf %11, %11 : vector<512x128xf32>
    %cst_11 = arith.constant dense<0.000000e+00> : vector<128xf32>
    %17 = vector.multi_reduction <add>, %16, %cst_11 [0] : vector<512x128xf32> to vector<128xf32>
    %18 = vector.shape_cast %17 : vector<128xf32> to vector<1x128xf32>
    %cst_12 = arith.constant 0.000000e+00 : f32
    %19 = vector.broadcast %cst_12 : f32 to vector<6x128xf32>
    %20 = tpu.concatenate %15, %18, %19 in 0 : vector<1x128xf32>, vector<1x128xf32>, vector<6x128xf32> -> vector<8x128xf32>
    %c0_13 = arith.constant 0 : index
    %c0_14 = arith.constant 0 : index
    %c0_15 = arith.constant 0 : index
    %21 = vector.load %arg6[%c0_13, %c0_14, %c0_15] : memref<1x8x128xf32, #tpu.memory_space<vmem>>, vector<1x8x128xf32>
    %22 = vector.shape_cast %21 : vector<1x8x128xf32> to vector<8x128xf32>
    %23 = vector.shape_cast %20 : vector<8x128xf32> to vector<1x8x128xf32>
    tpu.vector_store %arg6[%c0_13, %c0_14, %c0_15], %23 {strides = array<i32>} : memref<1x8x128xf32, #tpu.memory_space<vmem>>, vector<1x8x128xf32>,
    return
  }
  func.func @transform_0(%arg0: i32) -> (i32, i32) {
    %c0_i32 = arith.constant 0 : i32
    %c0_i32_0 = arith.constant 0 : i32
    return %arg0, %c0_i32 : i32, i32
  }
  func.func @transform_1(%arg0: i32) -> (i32, i32) {
    %c0_i32 = arith.constant 0 : i32
    %c0_i32_0 = arith.constant 0 : i32
    %c0_i32_1 = arith.constant 0 : i32
    return %c0_i32, %c0_i32_0 : i32, i32
  }
  func.func @transform_2(%arg0: i32) -> (i32, i32) {
    %c0_i32 = arith.constant 0 : i32
    %c0_i32_0 = arith.constant 0 : i32
    %c0_i32_1 = arith.constant 0 : i32
    return %c0_i32, %c0_i32_0 : i32, i32
  }
  func.func @transform_3(%arg0: i32) -> (i32, i32) {
    %c0_i32 = arith.constant 0 : i32
    %c0_i32_0 = arith.constant 0 : i32
    %c0_i32_1 = arith.constant 0 : i32
    return %c0_i32, %c0_i32_0 : i32, i32
  }
  func.func @transform_4(%arg0: i32) -> (i32, i32) {
    %c0_i32 = arith.constant 0 : i32
    %c0_i32_0 = arith.constant 0 : i32
    return %arg0, %c0_i32 : i32, i32
  }
  func.func @transform_5(%arg0: i32) -> (i32, i32, i32) {
    %c0_i32 = arith.constant 0 : i32
    %c0_i32_0 = arith.constant 0 : i32
    %c0_i32_1 = arith.constant 0 : i32
    return %arg0, %c0_i32, %c0_i32_0 : i32, i32, i32
  }
}

module attributes {stable_mosaic.version = 11 : i64} {
  func.func @kernel(%arg0: i32, %arg1: memref<1x16x16x32xbf16, #tpu.memory_space<vmem>>, %arg2: memref<1x32xf32, #tpu.memory_space<vmem>>, %arg3: memref<1x32xf32, #tpu.memory_space<vmem>>, %arg4: memref<288x128xbf16, #tpu.memory_space<vmem>>, %arg5: memref<1x256x128xbf16, #tpu.memory_space<vmem>>, %arg6: memref<1x8x128xf32, #tpu.memory_space<vmem>>, %arg7: memref<18x18x32xf32, #tpu.memory_space<vmem>>) attributes {dimension_semantics = [#tpu.dimension_semantics<parallel>], iteration_bounds = array<i64: 2>, scalar_prefetch = 0 : i64, scratch_operands = 1 : i64, tpu.core_type = #tpu.core_type<tc>, window_params = [{transform_indices = @transform_0, window_bounds = array<i64: 1, 16, 16, 32>}, {pipeline_mode = #tpu.pipeline_mode<synchronous>, transform_indices = @transform_1, window_bounds = array<i64: 1, 32>}, {pipeline_mode = #tpu.pipeline_mode<synchronous>, transform_indices = @transform_2, window_bounds = array<i64: 1, 32>}, {pipeline_mode = #tpu.pipeline_mode<synchronous>, transform_indices = @transform_3, window_bounds = array<i64: 288, 128>}, {transform_indices = @transform_4, window_bounds = array<i64: 1, 256, 128>}, {transform_indices = @transform_5, window_bounds = array<i64: 1, 8, 128>}]} {
    %c0 = arith.constant 0 : index
    %c0_0 = arith.constant 0 : index
    %c0_1 = arith.constant 0 : index
    %c0_2 = arith.constant 0 : index
    %0 = vector.load %arg1[%c0, %c0_0, %c0_1, %c0_2] : memref<1x16x16x32xbf16, #tpu.memory_space<vmem>>, vector<1x16x16x32xbf16>
    %1 = vector.shape_cast %0 : vector<1x16x16x32xbf16> to vector<16x16x32xbf16>
    %2 = arith.extf %1 : vector<16x16x32xbf16> to vector<16x16x32xf32>
    %c0_3 = arith.constant 0 : index
    %c0_4 = arith.constant 0 : index
    %3 = vector.load %arg2[%c0_3, %c0_4] : memref<1x32xf32, #tpu.memory_space<vmem>>, vector<1x32xf32>
    %4 = vector.shape_cast %3 : vector<1x32xf32> to vector<1x1x32xf32>
    %5 = vector.broadcast %4 : vector<1x1x32xf32> to vector<16x16x32xf32>
    %6 = arith.mulf %2, %5 : vector<16x16x32xf32>
    %c0_5 = arith.constant 0 : index
    %c0_6 = arith.constant 0 : index
    %7 = vector.load %arg3[%c0_5, %c0_6] : memref<1x32xf32, #tpu.memory_space<vmem>>, vector<1x32xf32>
    %8 = vector.shape_cast %7 : vector<1x32xf32> to vector<1x1x32xf32>
    %9 = vector.broadcast %8 : vector<1x1x32xf32> to vector<16x16x32xf32>
    %10 = arith.addf %6, %9 : vector<16x16x32xf32>
    %cst = arith.constant 0.000000e+00 : f32
    %11 = vector.broadcast %cst : f32 to vector<16x16x32xf32>
    %12 = arith.maximumf %10, %11 : vector<16x16x32xf32>
    %cst_7 = arith.constant 0.000000e+00 : f32
    %13 = vector.broadcast %cst_7 : f32 to vector<18x18x32xf32>
    %c0_8 = arith.constant 0 : index
    %c0_9 = arith.constant 0 : index
    %c0_10 = arith.constant 0 : index
    %14 = vector.load %arg7[%c0_8, %c0_9, %c0_10] : memref<18x18x32xf32, #tpu.memory_space<vmem>>, vector<18x18x32xf32>
    tpu.vector_store %arg7[%c0_8, %c0_9, %c0_10], %13 {strides = array<i32>} : memref<18x18x32xf32, #tpu.memory_space<vmem>>, vector<18x18x32xf32>,
    %c1 = arith.constant 1 : index
    %c1_11 = arith.constant 1 : index
    %c0_12 = arith.constant 0 : index
    %15 = vector.load %arg7[%c1, %c1_11, %c0_12] : memref<18x18x32xf32, #tpu.memory_space<vmem>>, vector<16x16x32xf32>
    tpu.vector_store %arg7[%c1, %c1_11, %c0_12], %12 {strides = array<i32>} : memref<18x18x32xf32, #tpu.memory_space<vmem>>, vector<16x16x32xf32>,
    %c0_13 = arith.constant 0 : index
    %c0_14 = arith.constant 0 : index
    %c0_15 = arith.constant 0 : index
    %16 = vector.load %arg7[%c0_13, %c0_14, %c0_15] : memref<18x18x32xf32, #tpu.memory_space<vmem>>, vector<16x16x32xf32>
    %17 = vector.shape_cast %16 : vector<16x16x32xf32> to vector<256x32xf32>
    %c0_16 = arith.constant 0 : index
    %c1_17 = arith.constant 1 : index
    %c0_18 = arith.constant 0 : index
    %18 = vector.load %arg7[%c0_16, %c1_17, %c0_18] : memref<18x18x32xf32, #tpu.memory_space<vmem>>, vector<16x16x32xf32>
    %19 = vector.shape_cast %18 : vector<16x16x32xf32> to vector<256x32xf32>
    %c0_19 = arith.constant 0 : index
    %c2 = arith.constant 2 : index
    %c0_20 = arith.constant 0 : index
    %20 = vector.load %arg7[%c0_19, %c2, %c0_20] : memref<18x18x32xf32, #tpu.memory_space<vmem>>, vector<16x16x32xf32>
    %21 = vector.shape_cast %20 : vector<16x16x32xf32> to vector<256x32xf32>
    %c1_21 = arith.constant 1 : index
    %c0_22 = arith.constant 0 : index
    %c0_23 = arith.constant 0 : index
    %22 = vector.load %arg7[%c1_21, %c0_22, %c0_23] : memref<18x18x32xf32, #tpu.memory_space<vmem>>, vector<16x16x32xf32>
    %23 = vector.shape_cast %22 : vector<16x16x32xf32> to vector<256x32xf32>
    %c1_24 = arith.constant 1 : index
    %c1_25 = arith.constant 1 : index
    %c0_26 = arith.constant 0 : index
    %24 = vector.load %arg7[%c1_24, %c1_25, %c0_26] : memref<18x18x32xf32, #tpu.memory_space<vmem>>, vector<16x16x32xf32>
    %25 = vector.shape_cast %24 : vector<16x16x32xf32> to vector<256x32xf32>
    %c1_27 = arith.constant 1 : index
    %c2_28 = arith.constant 2 : index
    %c0_29 = arith.constant 0 : index
    %26 = vector.load %arg7[%c1_27, %c2_28, %c0_29] : memref<18x18x32xf32, #tpu.memory_space<vmem>>, vector<16x16x32xf32>
    %27 = vector.shape_cast %26 : vector<16x16x32xf32> to vector<256x32xf32>
    %c2_30 = arith.constant 2 : index
    %c0_31 = arith.constant 0 : index
    %c0_32 = arith.constant 0 : index
    %28 = vector.load %arg7[%c2_30, %c0_31, %c0_32] : memref<18x18x32xf32, #tpu.memory_space<vmem>>, vector<16x16x32xf32>
    %29 = vector.shape_cast %28 : vector<16x16x32xf32> to vector<256x32xf32>
    %c2_33 = arith.constant 2 : index
    %c1_34 = arith.constant 1 : index
    %c0_35 = arith.constant 0 : index
    %30 = vector.load %arg7[%c2_33, %c1_34, %c0_35] : memref<18x18x32xf32, #tpu.memory_space<vmem>>, vector<16x16x32xf32>
    %31 = vector.shape_cast %30 : vector<16x16x32xf32> to vector<256x32xf32>
    %c2_36 = arith.constant 2 : index
    %c2_37 = arith.constant 2 : index
    %c0_38 = arith.constant 0 : index
    %32 = vector.load %arg7[%c2_36, %c2_37, %c0_38] : memref<18x18x32xf32, #tpu.memory_space<vmem>>, vector<16x16x32xf32>
    %33 = vector.shape_cast %32 : vector<16x16x32xf32> to vector<256x32xf32>
    %34 = tpu.concatenate %17, %19, %21, %23, %25, %27, %29, %31, %33 in 1 : vector<256x32xf32>, vector<256x32xf32>, vector<256x32xf32>, vector<256x32xf32>, vector<256x32xf32>, vector<256x32xf32>, vector<256x32xf32>, vector<256x32xf32>, vector<256x32xf32> -> vector<256x288xf32>
    %35 = arith.truncf %34 : vector<256x288xf32> to vector<256x288xbf16>
    %c0_39 = arith.constant 0 : index
    %c0_40 = arith.constant 0 : index
    %36 = vector.load %arg4[%c0_39, %c0_40] : memref<288x128xbf16, #tpu.memory_space<vmem>>, vector<288x128xbf16>
    %cst_41 = arith.constant dense<0.000000e+00> : vector<256x128xf32>
    %37 = tpu.matmul %35, %36, %cst_41 {dimension_numbers = #tpu.dot_dimension_numbers<[1], [0], [0], [1], [0, 0, 1, 1], [], []>} : vector<256x288xbf16>, vector<288x128xbf16>, vector<256x128xf32> -> vector<256x128xf32>
    %38 = arith.truncf %37 : vector<256x128xf32> to vector<256x128xbf16>
    %c0_42 = arith.constant 0 : index
    %c0_43 = arith.constant 0 : index
    %c0_44 = arith.constant 0 : index
    %39 = vector.load %arg5[%c0_42, %c0_43, %c0_44] : memref<1x256x128xbf16, #tpu.memory_space<vmem>>, vector<1x256x128xbf16>
    %40 = vector.shape_cast %39 : vector<1x256x128xbf16> to vector<256x128xbf16>
    %41 = vector.shape_cast %38 : vector<256x128xbf16> to vector<1x256x128xbf16>
    tpu.vector_store %arg5[%c0_42, %c0_43, %c0_44], %41 {strides = array<i32>} : memref<1x256x128xbf16, #tpu.memory_space<vmem>>, vector<1x256x128xbf16>,
    %cst_45 = arith.constant dense<0.000000e+00> : vector<128xf32>
    %42 = vector.multi_reduction <add>, %37, %cst_45 [0] : vector<256x128xf32> to vector<128xf32>
    %43 = vector.shape_cast %42 : vector<128xf32> to vector<1x128xf32>
    %44 = arith.mulf %37, %37 : vector<256x128xf32>
    %cst_46 = arith.constant dense<0.000000e+00> : vector<128xf32>
    %45 = vector.multi_reduction <add>, %44, %cst_46 [0] : vector<256x128xf32> to vector<128xf32>
    %46 = vector.shape_cast %45 : vector<128xf32> to vector<1x128xf32>
    %cst_47 = arith.constant 0.000000e+00 : f32
    %47 = vector.broadcast %cst_47 : f32 to vector<6x128xf32>
    %48 = tpu.concatenate %43, %46, %47 in 0 : vector<1x128xf32>, vector<1x128xf32>, vector<6x128xf32> -> vector<8x128xf32>
    %c0_48 = arith.constant 0 : index
    %c0_49 = arith.constant 0 : index
    %c0_50 = arith.constant 0 : index
    %49 = vector.load %arg6[%c0_48, %c0_49, %c0_50] : memref<1x8x128xf32, #tpu.memory_space<vmem>>, vector<1x8x128xf32>
    %50 = vector.shape_cast %49 : vector<1x8x128xf32> to vector<8x128xf32>
    %51 = vector.shape_cast %48 : vector<8x128xf32> to vector<1x8x128xf32>
    tpu.vector_store %arg6[%c0_48, %c0_49, %c0_50], %51 {strides = array<i32>} : memref<1x8x128xf32, #tpu.memory_space<vmem>>, vector<1x8x128xf32>,
    return
  }
  func.func @transform_0(%arg0: i32) -> (i32, i32, i32, i32) {
    %c0_i32 = arith.constant 0 : i32
    %c0_i32_0 = arith.constant 0 : i32
    %c0_i32_1 = arith.constant 0 : i32
    %c0_i32_2 = arith.constant 0 : i32
    return %arg0, %c0_i32, %c0_i32_0, %c0_i32_1 : i32, i32, i32, i32
  }
  func.func @transform_1(%arg0: i32) -> (i32, i32) {
    %c0_i32 = arith.constant 0 : i32
    %c0_i32_0 = arith.constant 0 : i32
    %c0_i32_1 = arith.constant 0 : i32
    return %c0_i32, %c0_i32_0 : i32, i32
  }
  func.func @transform_2(%arg0: i32) -> (i32, i32) {
    %c0_i32 = arith.constant 0 : i32
    %c0_i32_0 = arith.constant 0 : i32
    %c0_i32_1 = arith.constant 0 : i32
    return %c0_i32, %c0_i32_0 : i32, i32
  }
  func.func @transform_3(%arg0: i32) -> (i32, i32) {
    %c0_i32 = arith.constant 0 : i32
    %c0_i32_0 = arith.constant 0 : i32
    %c0_i32_1 = arith.constant 0 : i32
    return %c0_i32, %c0_i32_0 : i32, i32
  }
  func.func @transform_4(%arg0: i32) -> (i32, i32, i32) {
    %c0_i32 = arith.constant 0 : i32
    %c0_i32_0 = arith.constant 0 : i32
    %c0_i32_1 = arith.constant 0 : i32
    return %arg0, %c0_i32, %c0_i32_0 : i32, i32, i32
  }
  func.func @transform_5(%arg0: i32) -> (i32, i32, i32) {
    %c0_i32 = arith.constant 0 : i32
    %c0_i32_0 = arith.constant 0 : i32
    %c0_i32_1 = arith.constant 0 : i32
    return %arg0, %c0_i32, %c0_i32_0 : i32, i32, i32
  }
}

module attributes {stable_mosaic.version = 11 : i64} {
  func.func @_bn_relu_matmul_kernel(%arg0: i32, %arg1: memref<512x32xbf16, #tpu.memory_space<vmem>>, %arg2: memref<1x32xf32, #tpu.memory_space<vmem>>, %arg3: memref<1x32xf32, #tpu.memory_space<vmem>>, %arg4: memref<32x128xbf16, #tpu.memory_space<vmem>>, %arg5: memref<512x128xf32, #tpu.memory_space<vmem>>, %arg6: memref<1x8x128xf32, #tpu.memory_space<vmem>>) attributes {dimension_semantics = [#tpu.dimension_semantics<parallel>], iteration_bounds = array<i64: 1>, scalar_prefetch = 0 : i64, scratch_operands = 0 : i64, tpu.core_type = #tpu.core_type<tc>, window_params = [{transform_indices = @transform_0, window_bounds = array<i64: 512, 32>}, {pipeline_mode = #tpu.pipeline_mode<synchronous>, transform_indices = @transform_1, window_bounds = array<i64: 1, 32>}, {pipeline_mode = #tpu.pipeline_mode<synchronous>, transform_indices = @transform_2, window_bounds = array<i64: 1, 32>}, {pipeline_mode = #tpu.pipeline_mode<synchronous>, transform_indices = @transform_3, window_bounds = array<i64: 32, 128>}, {transform_indices = @transform_4, window_bounds = array<i64: 512, 128>}, {transform_indices = @transform_5, window_bounds = array<i64: 1, 8, 128>}]} {
    %c0 = arith.constant 0 : index
    %c0_0 = arith.constant 0 : index
    %0 = vector.load %arg1[%c0, %c0_0] : memref<512x32xbf16, #tpu.memory_space<vmem>>, vector<512x32xbf16>
    %1 = arith.extf %0 : vector<512x32xbf16> to vector<512x32xf32>
    %c0_1 = arith.constant 0 : index
    %c0_2 = arith.constant 0 : index
    %2 = vector.load %arg2[%c0_1, %c0_2] : memref<1x32xf32, #tpu.memory_space<vmem>>, vector<1x32xf32>
    %3 = vector.broadcast %2 : vector<1x32xf32> to vector<512x32xf32>
    %4 = arith.mulf %1, %3 : vector<512x32xf32>
    %c0_3 = arith.constant 0 : index
    %c0_4 = arith.constant 0 : index
    %5 = vector.load %arg3[%c0_3, %c0_4] : memref<1x32xf32, #tpu.memory_space<vmem>>, vector<1x32xf32>
    %6 = vector.broadcast %5 : vector<1x32xf32> to vector<512x32xf32>
    %7 = arith.addf %4, %6 : vector<512x32xf32>
    %cst = arith.constant 0.000000e+00 : f32
    %8 = vector.broadcast %cst : f32 to vector<512x32xf32>
    %9 = arith.maximumf %7, %8 : vector<512x32xf32>
    %10 = arith.truncf %9 : vector<512x32xf32> to vector<512x32xbf16>
    %c0_5 = arith.constant 0 : index
    %c0_6 = arith.constant 0 : index
    %11 = vector.load %arg4[%c0_5, %c0_6] : memref<32x128xbf16, #tpu.memory_space<vmem>>, vector<32x128xbf16>
    %cst_7 = arith.constant dense<0.000000e+00> : vector<512x128xf32>
    %12 = tpu.matmul %10, %11, %cst_7 {dimension_numbers = #tpu.dot_dimension_numbers<[1], [0], [0], [1], [0, 0, 1, 1], [], []>} : vector<512x32xbf16>, vector<32x128xbf16>, vector<512x128xf32> -> vector<512x128xf32>
    %c0_8 = arith.constant 0 : index
    %c0_9 = arith.constant 0 : index
    %13 = vector.load %arg5[%c0_8, %c0_9] : memref<512x128xf32, #tpu.memory_space<vmem>>, vector<512x128xf32>
    tpu.vector_store %arg5[%c0_8, %c0_9], %12 {strides = array<i32>} : memref<512x128xf32, #tpu.memory_space<vmem>>, vector<512x128xf32>,
    %cst_10 = arith.constant dense<0.000000e+00> : vector<128xf32>
    %14 = vector.multi_reduction <add>, %12, %cst_10 [0] : vector<512x128xf32> to vector<128xf32>
    %15 = vector.shape_cast %14 : vector<128xf32> to vector<1x128xf32>
    %16 = arith.mulf %12, %12 : vector<512x128xf32>
    %cst_11 = arith.constant dense<0.000000e+00> : vector<128xf32>
    %17 = vector.multi_reduction <add>, %16, %cst_11 [0] : vector<512x128xf32> to vector<128xf32>
    %18 = vector.shape_cast %17 : vector<128xf32> to vector<1x128xf32>
    %cst_12 = arith.constant 0.000000e+00 : f32
    %19 = vector.broadcast %cst_12 : f32 to vector<6x128xf32>
    %20 = tpu.concatenate %15, %18, %19 in 0 : vector<1x128xf32>, vector<1x128xf32>, vector<6x128xf32> -> vector<8x128xf32>
    %c0_13 = arith.constant 0 : index
    %c0_14 = arith.constant 0 : index
    %c0_15 = arith.constant 0 : index
    %21 = vector.load %arg6[%c0_13, %c0_14, %c0_15] : memref<1x8x128xf32, #tpu.memory_space<vmem>>, vector<1x8x128xf32>
    %22 = vector.shape_cast %21 : vector<1x8x128xf32> to vector<8x128xf32>
    %23 = vector.shape_cast %20 : vector<8x128xf32> to vector<1x8x128xf32>
    tpu.vector_store %arg6[%c0_13, %c0_14, %c0_15], %23 {strides = array<i32>} : memref<1x8x128xf32, #tpu.memory_space<vmem>>, vector<1x8x128xf32>,
    return
  }
  func.func @transform_0(%arg0: i32) -> (i32, i32) {
    %c0_i32 = arith.constant 0 : i32
    %c0_i32_0 = arith.constant 0 : i32
    return %arg0, %c0_i32 : i32, i32
  }
  func.func @transform_1(%arg0: i32) -> (i32, i32) {
    %c0_i32 = arith.constant 0 : i32
    %c0_i32_0 = arith.constant 0 : i32
    %c0_i32_1 = arith.constant 0 : i32
    return %c0_i32, %c0_i32_0 : i32, i32
  }
  func.func @transform_2(%arg0: i32) -> (i32, i32) {
    %c0_i32 = arith.constant 0 : i32
    %c0_i32_0 = arith.constant 0 : i32
    %c0_i32_1 = arith.constant 0 : i32
    return %c0_i32, %c0_i32_0 : i32, i32
  }
  func.func @transform_3(%arg0: i32) -> (i32, i32) {
    %c0_i32 = arith.constant 0 : i32
    %c0_i32_0 = arith.constant 0 : i32
    %c0_i32_1 = arith.constant 0 : i32
    return %c0_i32, %c0_i32_0 : i32, i32
  }
  func.func @transform_4(%arg0: i32) -> (i32, i32) {
    %c0_i32 = arith.constant 0 : i32
    %c0_i32_0 = arith.constant 0 : i32
    return %arg0, %c0_i32 : i32, i32
  }
  func.func @transform_5(%arg0: i32) -> (i32, i32, i32) {
    %c0_i32 = arith.constant 0 : i32
    %c0_i32_0 = arith.constant 0 : i32
    %c0_i32_1 = arith.constant 0 : i32
    return %arg0, %c0_i32, %c0_i32_0 : i32, i32, i32
  }
}

module attributes {stable_mosaic.version = 11 : i64} {
  func.func @_bn_relu_matmul_kernel(%arg0: i32, %arg1: memref<512x48xf32, #tpu.memory_space<vmem>>, %arg2: memref<1x48xf32, #tpu.memory_space<vmem>>, %arg3: memref<1x48xf32, #tpu.memory_space<vmem>>, %arg4: memref<48x128xbf16, #tpu.memory_space<vmem>>, %arg5: memref<512x128xf32, #tpu.memory_space<vmem>>, %arg6: memref<1x8x128xf32, #tpu.memory_space<vmem>>) attributes {dimension_semantics = [#tpu.dimension_semantics<parallel>], iteration_bounds = array<i64: 1>, scalar_prefetch = 0 : i64, scratch_operands = 0 : i64, tpu.core_type = #tpu.core_type<tc>, window_params = [{transform_indices = @transform_0, window_bounds = array<i64: 512, 48>}, {pipeline_mode = #tpu.pipeline_mode<synchronous>, transform_indices = @transform_1, window_bounds = array<i64: 1, 48>}, {pipeline_mode = #tpu.pipeline_mode<synchronous>, transform_indices = @transform_2, window_bounds = array<i64: 1, 48>}, {pipeline_mode = #tpu.pipeline_mode<synchronous>, transform_indices = @transform_3, window_bounds = array<i64: 48, 128>}, {transform_indices = @transform_4, window_bounds = array<i64: 512, 128>}, {transform_indices = @transform_5, window_bounds = array<i64: 1, 8, 128>}]} {
    %c0 = arith.constant 0 : index
    %c0_0 = arith.constant 0 : index
    %0 = vector.load %arg1[%c0, %c0_0] : memref<512x48xf32, #tpu.memory_space<vmem>>, vector<512x48xf32>
    %c0_1 = arith.constant 0 : index
    %c0_2 = arith.constant 0 : index
    %1 = vector.load %arg2[%c0_1, %c0_2] : memref<1x48xf32, #tpu.memory_space<vmem>>, vector<1x48xf32>
    %2 = vector.broadcast %1 : vector<1x48xf32> to vector<512x48xf32>
    %3 = arith.mulf %0, %2 : vector<512x48xf32>
    %c0_3 = arith.constant 0 : index
    %c0_4 = arith.constant 0 : index
    %4 = vector.load %arg3[%c0_3, %c0_4] : memref<1x48xf32, #tpu.memory_space<vmem>>, vector<1x48xf32>
    %5 = vector.broadcast %4 : vector<1x48xf32> to vector<512x48xf32>
    %6 = arith.addf %3, %5 : vector<512x48xf32>
    %cst = arith.constant 0.000000e+00 : f32
    %7 = vector.broadcast %cst : f32 to vector<512x48xf32>
    %8 = arith.maximumf %6, %7 : vector<512x48xf32>
    %9 = arith.truncf %8 : vector<512x48xf32> to vector<512x48xbf16>
    %c0_5 = arith.constant 0 : index
    %c0_6 = arith.constant 0 : index
    %10 = vector.load %arg4[%c0_5, %c0_6] : memref<48x128xbf16, #tpu.memory_space<vmem>>, vector<48x128xbf16>
    %cst_7 = arith.constant dense<0.000000e+00> : vector<512x128xf32>
    %11 = tpu.matmul %9, %10, %cst_7 {dimension_numbers = #tpu.dot_dimension_numbers<[1], [0], [0], [1], [0, 0, 1, 1], [], []>} : vector<512x48xbf16>, vector<48x128xbf16>, vector<512x128xf32> -> vector<512x128xf32>
    %c0_8 = arith.constant 0 : index
    %c0_9 = arith.constant 0 : index
    %12 = vector.load %arg5[%c0_8, %c0_9] : memref<512x128xf32, #tpu.memory_space<vmem>>, vector<512x128xf32>
    tpu.vector_store %arg5[%c0_8, %c0_9], %11 {strides = array<i32>} : memref<512x128xf32, #tpu.memory_space<vmem>>, vector<512x128xf32>,
    %cst_10 = arith.constant dense<0.000000e+00> : vector<128xf32>
    %13 = vector.multi_reduction <add>, %11, %cst_10 [0] : vector<512x128xf32> to vector<128xf32>
    %14 = vector.shape_cast %13 : vector<128xf32> to vector<1x128xf32>
    %15 = arith.mulf %11, %11 : vector<512x128xf32>
    %cst_11 = arith.constant dense<0.000000e+00> : vector<128xf32>
    %16 = vector.multi_reduction <add>, %15, %cst_11 [0] : vector<512x128xf32> to vector<128xf32>
    %17 = vector.shape_cast %16 : vector<128xf32> to vector<1x128xf32>
    %cst_12 = arith.constant 0.000000e+00 : f32
    %18 = vector.broadcast %cst_12 : f32 to vector<6x128xf32>
    %19 = tpu.concatenate %14, %17, %18 in 0 : vector<1x128xf32>, vector<1x128xf32>, vector<6x128xf32> -> vector<8x128xf32>
    %c0_13 = arith.constant 0 : index
    %c0_14 = arith.constant 0 : index
    %c0_15 = arith.constant 0 : index
    %20 = vector.load %arg6[%c0_13, %c0_14, %c0_15] : memref<1x8x128xf32, #tpu.memory_space<vmem>>, vector<1x8x128xf32>
    %21 = vector.shape_cast %20 : vector<1x8x128xf32> to vector<8x128xf32>
    %22 = vector.shape_cast %19 : vector<8x128xf32> to vector<1x8x128xf32>
    tpu.vector_store %arg6[%c0_13, %c0_14, %c0_15], %22 {strides = array<i32>} : memref<1x8x128xf32, #tpu.memory_space<vmem>>, vector<1x8x128xf32>,
    return
  }
  func.func @transform_0(%arg0: i32) -> (i32, i32) {
    %c0_i32 = arith.constant 0 : i32
    %c0_i32_0 = arith.constant 0 : i32
    return %arg0, %c0_i32 : i32, i32
  }
  func.func @transform_1(%arg0: i32) -> (i32, i32) {
    %c0_i32 = arith.constant 0 : i32
    %c0_i32_0 = arith.constant 0 : i32
    %c0_i32_1 = arith.constant 0 : i32
    return %c0_i32, %c0_i32_0 : i32, i32
  }
  func.func @transform_2(%arg0: i32) -> (i32, i32) {
    %c0_i32 = arith.constant 0 : i32
    %c0_i32_0 = arith.constant 0 : i32
    %c0_i32_1 = arith.constant 0 : i32
    return %c0_i32, %c0_i32_0 : i32, i32
  }
  func.func @transform_3(%arg0: i32) -> (i32, i32) {
    %c0_i32 = arith.constant 0 : i32
    %c0_i32_0 = arith.constant 0 : i32
    %c0_i32_1 = arith.constant 0 : i32
    return %c0_i32, %c0_i32_0 : i32, i32
  }
  func.func @transform_4(%arg0: i32) -> (i32, i32) {
    %c0_i32 = arith.constant 0 : i32
    %c0_i32_0 = arith.constant 0 : i32
    return %arg0, %c0_i32 : i32, i32
  }
  func.func @transform_5(%arg0: i32) -> (i32, i32, i32) {
    %c0_i32 = arith.constant 0 : i32
    %c0_i32_0 = arith.constant 0 : i32
    %c0_i32_1 = arith.constant 0 : i32
    return %arg0, %c0_i32, %c0_i32_0 : i32, i32, i32
  }
}

</mosaic_0001>

<llo_original>
// kernel: dual_path_block_forward_nhwc.5
$region0: #{dual_path_block_forward_nhwc.5}
  #allocation0 [shape = 'u32[]', space=smem, size = 0x4, offset = 0x4, fixed_abs, tag = 'smem constant byte address 0x4 - core index']
  #allocation1 [shape = 'u32[144,128]{1,0:T(1,128)}', space=vmem, size = 0x12000, scoped, tag = 'internal scratch']
  %s0 = inlined_call_operand.vmem [shape: f32[512,48], index: 0, kind: input, shape index: {}]
  %s1 = inlined_call_operand.vmem [shape: f32[1,48], index: 1, kind: input, shape index: {}]
  %s2 = inlined_call_operand.vmem [shape: f32[1,48], index: 2, kind: input, shape index: {}]
  %s3 = inlined_call_operand.vmem [shape: bf16[48,128], index: 3, kind: input, shape index: {}]
  %s4 = inlined_call_operand.vmem [shape: bf16[512,128], index: 4, kind: output, shape index: {0}]
  %s5 = inlined_call_operand.vmem [shape: f32[1,8,128], index: 5, kind: output, shape index: {1}]
  %6 = xla_tuple %s4, %s5
  %s7 = sld [smem:[#allocation0]]
  $region34: #{dual_path_block_forward_nhwc.5} parent=0
    _
  %s9 = ssub.s32 1, %s7
  %s10 = scalar_select 0, %s9, %s7
  // Predicated region
  $region2: #{dual_path_block_forward_nhwc.5} parent=0 // pred_check
    _
  $region3: #{dual_path_block_forward_nhwc.5} parent=0 // pred_check_branch
    %12 = sbr.rel (0) target = $region5
  $region4: #{dual_path_block_forward_nhwc.5} parent=0 // pred_region
    _
  $region5: #{dual_path_block_forward_nhwc.5} parent=0 // pred_fallthru
    _
  // Predicated region
  $region6: #{dual_path_block_forward_nhwc.5} parent=0 // pred_check
    _
  $region7: #{dual_path_block_forward_nhwc.5} parent=0 // pred_check_branch
    %14 = sbr.rel (0) target = $region9
  $region8: #{dual_path_block_forward_nhwc.5} parent=0 // pred_region
    _
  $region9: #{dual_path_block_forward_nhwc.5} parent=0 // pred_fallthru
    _
  // Predicated region
  $region10: #{dual_path_block_forward_nhwc.5} parent=0 // pred_check
    _
  $region11: #{dual_path_block_forward_nhwc.5} parent=0 // pred_check_branch
    %16 = sbr.rel (0) target = $region13
  $region12: #{dual_path_block_forward_nhwc.5} parent=0 // pred_region
    _
  $region13: #{dual_path_block_forward_nhwc.5} parent=0 // pred_fallthru
    _
  // Predicated region
  $region14: #{dual_path_block_forward_nhwc.5} parent=0 // pred_check
    _
  $region15: #{dual_path_block_forward_nhwc.5} parent=0 // pred_check_branch
    %18 = sbr.rel (0) target = $region17
  $region16: #{dual_path_block_forward_nhwc.5} parent=0 // pred_region
    _
  $region17: #{dual_path_block_forward_nhwc.5} parent=0 // pred_fallthru
    _
  %v20 = vld [vmem:[%s0] sm:$0xff]
  %v21 = vld [vmem:[%s0 + $0x8] sm:$0xff]
  %v22 = vld [vmem:[%s0 + $0x10] sm:$0xff]
  %v23 = vld [vmem:[%s0 + $0x18] sm:$0xff]
  %v24 = vld [vmem:[%s0 + $0x20] sm:$0xff]
  %v25 = vld [vmem:[%s0 + $0x28] sm:$0xff]
  %v26 = vld [vmem:[%s0 + $0x30] sm:$0xff]
  %v27 = vld [vmem:[%s0 + $0x38] sm:$0xff]
  %v28 = vld [vmem:[%s0 + $0x40] sm:$0xff]
  %v29 = vld [vmem:[%s0 + $0x48] sm:$0xff]
  %v30 = vld [vmem:[%s0 + $0x50] sm:$0xff]
  %v31 = vld [vmem:[%s0 + $0x58] sm:$0xff]
  %v32 = vld [vmem:[%s0 + $0x60] sm:$0xff]
  %v33 = vld [vmem:[%s0 + $0x68] sm:$0xff]
  %v34 = vld [vmem:[%s0 + $0x70] sm:$0xff]
  %v35 = vld [vmem:[%s0 + $0x78] sm:$0xff]
  %v36 = vld [vmem:[%s0 + $0x80] sm:$0xff]
  %v37 = vld [vmem:[%s0 + $0x88] sm:$0xff]
  %v38 = vld [vmem:[%s0 + $0x90] sm:$0xff]
  %v39 = vld [vmem:[%s0 + $0x98] sm:$0xff]
  %v40 = vld [vmem:[%s0 + $0xa0] sm:$0xff]
  %v41 = vld [vmem:[%s0 + $0xa8] sm:$0xff]
  %v42 = vld [vmem:[%s0 + $0xb0] sm:$0xff]
  %v43 = vld [vmem:[%s0 + $0xb8] sm:$0xff]
  %v44 = vld [vmem:[%s0 + $0xc0] sm:$0xff]
  %v45 = vld [vmem:[%s0 + $0xc8] sm:$0xff]
  %v46 = vld [vmem:[%s0 + $0xd0] sm:$0xff]
  %v47 = vld [vmem:[%s0 + $0xd8] sm:$0xff]
  %v48 = vld [vmem:[%s0 + $0xe0] sm:$0xff]
  %v49 = vld [vmem:[%s0 + $0xe8] sm:$0xff]
  %v50 = vld [vmem:[%s0 + $0xf0] sm:$0xff]
  %v51 = vld [vmem:[%s0 + $0xf8] sm:$0xff]
  %v52 = vld [vmem:[%s0 + $0x100] sm:$0xff]
  %v53 = vld [vmem:[%s0 + $0x108] sm:$0xff]
  %v54 = vld [vmem:[%s0 + $0x110] sm:$0xff]
  %v55 = vld [vmem:[%s0 + $0x118] sm:$0xff]
  %v56 = vld [vmem:[%s0 + $0x120] sm:$0xff]
  %v57 = vld [vmem:[%s0 + $0x128] sm:$0xff]
  %v58 = vld [vmem:[%s0 + $0x130] sm:$0xff]
  %v59 = vld [vmem:[%s0 + $0x138] sm:$0xff]
  %v60 = vld [vmem:[%s0 + $0x140] sm:$0xff]
  %v61 = vld [vmem:[%s0 + $0x148] sm:$0xff]
  %v62 = vld [vmem:[%s0 + $0x150] sm:$0xff]
  %v63 = vld [vmem:[%s0 + $0x158] sm:$0xff]
  %v64 = vld [vmem:[%s0 + $0x160] sm:$0xff]
  %v65 = vld [vmem:[%s0 + $0x168] sm:$0xff]
  %v66 = vld [vmem:[%s0 + $0x170] sm:$0xff]
  %v67 = vld [vmem:[%s0 + $0x178] sm:$0xff]
  %v68 = vld [vmem:[%s0 + $0x180] sm:$0xff]
  %v69 = vld [vmem:[%s0 + $0x188] sm:$0xff]
  %v70 = vld [vmem:[%s0 + $0x190] sm:$0xff]
  %v71 = vld [vmem:[%s0 + $0x198] sm:$0xff]
  %v72 = vld [vmem:[%s0 + $0x1a0] sm:$0xff]
  %v73 = vld [vmem:[%s0 + $0x1a8] sm:$0xff]
  %v74 = vld [vmem:[%s0 + $0x1b0] sm:$0xff]
  %v75 = vld [vmem:[%s0 + $0x1b8] sm:$0xff]
  %v76 = vld [vmem:[%s0 + $0x1c0] sm:$0xff]
  %v77 = vld [vmem:[%s0 + $0x1c8] sm:$0xff]
  %v78 = vld [vmem:[%s0 + $0x1d0] sm:$0xff]
  %v79 = vld [vmem:[%s0 + $0x1d8] sm:$0xff]
  %v80 = vld [vmem:[%s0 + $0x1e0] sm:$0xff]
  %v81 = vld [vmem:[%s0 + $0x1e8] sm:$0xff]
  %v82 = vld [vmem:[%s0 + $0x1f0] sm:$0xff]
  %v83 = vld [vmem:[%s0 + $0x1f8] sm:$0xff]
  %v84 = vld [vmem:[%s1] sm:$0x1]
  %v86 = vlaneseq
  %v87 = vshrl.u32 %v86, 7
  %v88 = vsub.s32 0, %v87
  %v89 = vrot.slane %v84, %v88
  %v91 = vmul.f32 %v20, %v89
  %v92 = vmul.f32 %v21, %v89
  %v93 = vmul.f32 %v22, %v89
  %v94 = vmul.f32 %v23, %v89
  %v95 = vmul.f32 %v24, %v89
  %v96 = vmul.f32 %v25, %v89
  %v97 = vmul.f32 %v26, %v89
  %v98 = vmul.f32 %v27, %v89
  %v99 = vmul.f32 %v28, %v89
  %v100 = vmul.f32 %v29, %v89
  %v101 = vmul.f32 %v30, %v89
  %v102 = vmul.f32 %v31, %v89
  %v103 = vmul.f32 %v32, %v89
  %v104 = vmul.f32 %v33, %v89
  %v105 = vmul.f32 %v34, %v89
  %v106 = vmul.f32 %v35, %v89
  %v107 = vmul.f32 %v36, %v89
  %v108 = vmul.f32 %v37, %v89
  %v109 = vmul.f32 %v38, %v89
  %v110 = vmul.f32 %v39, %v89
  %v111 = vmul.f32 %v40, %v89
  %v112 = vmul.f32 %v41, %v89
  %v113 = vmul.f32 %v42, %v89
  %v114 = vmul.f32 %v43, %v89
  %v115 = vmul.f32 %v44, %v89
  %v116 = vmul.f32 %v45, %v89
  %v117 = vmul.f32 %v46, %v89
  %v118 = vmul.f32 %v47, %v89
  %v119 = vmul.f32 %v48, %v89
  %v120 = vmul.f32 %v49, %v89
  %v121 = vmul.f32 %v50, %v89
  %v122 = vmul.f32 %v51, %v89
  %v123 = vmul.f32 %v52, %v89
  %v124 = vmul.f32 %v53, %v89
  %v125 = vmul.f32 %v54, %v89
  %v126 = vmul.f32 %v55, %v89
  %v127 = vmul.f32 %v56, %v89
  %v128 = vmul.f32 %v57, %v89
  %v129 = vmul.f32 %v58, %v89
  %v130 = vmul.f32 %v59, %v89
  %v131 = vmul.f32 %v60, %v89
  %v132 = vmul.f32 %v61, %v89
  %v133 = vmul.f32 %v62, %v89
  %v134 = vmul.f32 %v63, %v89
  %v135 = vmul.f32 %v64, %v89
  %v136 = vmul.f32 %v65, %v89
  %v137 = vmul.f32 %v66, %v89
  %v138 = vmul.f32 %v67, %v89
  %v139 = vmul.f32 %v68, %v89
  %v140 = vmul.f32 %v69, %v89
  %v141 = vmul.f32 %v70, %v89
  %v142 = vmul.f32 %v71, %v89
  %v143 = vmul.f32 %v72, %v89
  %v144 = vmul.f32 %v73, %v89
  %v145 = vmul.f32 %v74, %v89
  %v146 = vmul.f32 %v75, %v89
  %v147 = vmul.f32 %v76, %v89
  %v148 = vmul.f32 %v77, %v89
  %v149 = vmul.f32 %v78, %v89
  %v150 = vmul.f32 %v79, %v89
  %v151 = vmul.f32 %v80, %v89
  %v152 = vmul.f32 %v81, %v89
  %v153 = vmul.f32 %v82, %v89
  %v154 = vmul.f32 %v83, %v89
  %v155 = vld [vmem:[%s2] sm:$0x1]
  %v157 = vlaneseq
  %v158 = vshrl.u32 %v157, 7
  %v159 = vsub.s32 0, %v158
  %v160 = vrot.slane %v155, %v159
  %v162 = vadd.f32 %v91, %v160
  %v163 = vadd.f32 %v92, %v160
  %v164 = vadd.f32 %v93, %v160
  %v165 = vadd.f32 %v94, %v160
  %v166 = vadd.f32 %v95, %v160
  %v167 = vadd.f32 %v96, %v160
  %v168 = vadd.f32 %v97, %v160
  %v169 = vadd.f32 %v98, %v160
  %v170 = vadd.f32 %v99, %v160
  %v171 = vadd.f32 %v100, %v160
  %v172 = vadd.f32 %v101, %v160
  %v173 = vadd.f32 %v102, %v160
  %v174 = vadd.f32 %v103, %v160
  %v175 = vadd.f32 %v104, %v160
  %v176 = vadd.f32 %v105, %v160
  %v177 = vadd.f32 %v106, %v160
  %v178 = vadd.f32 %v107, %v160
  %v179 = vadd.f32 %v108, %v160
  %v180 = vadd.f32 %v109, %v160
  %v181 = vadd.f32 %v110, %v160
  %v182 = vadd.f32 %v111, %v160
  %v183 = vadd.f32 %v112, %v160
  %v184 = vadd.f32 %v113, %v160
  %v185 = vadd.f32 %v114, %v160
  %v186 = vadd.f32 %v115, %v160
  %v187 = vadd.f32 %v116, %v160
  %v188 = vadd.f32 %v117, %v160
  %v189 = vadd.f32 %v118, %v160
  %v190 = vadd.f32 %v119, %v160
  %v191 = vadd.f32 %v120, %v160
  %v192 = vadd.f32 %v121, %v160
  %v193 = vadd.f32 %v122, %v160
  %v194 = vadd.f32 %v123, %v160
  %v195 = vadd.f32 %v124, %v160
  %v196 = vadd.f32 %v125, %v160
  %v197 = vadd.f32 %v126, %v160
  %v198 = vadd.f32 %v127, %v160
  %v199 = vadd.f32 %v128, %v160
  %v200 = vadd.f32 %v129, %v160
  %v201 = vadd.f32 %v130, %v160
  %v202 = vadd.f32 %v131, %v160
  %v203 = vadd.f32 %v132, %v160
  %v204 = vadd.f32 %v133, %v160
  %v205 = vadd.f32 %v134, %v160
  %v206 = vadd.f32 %v135, %v160
  %v207 = vadd.f32 %v136, %v160
  %v208 = vadd.f32 %v137, %v160
  %v209 = vadd.f32 %v138, %v160
  %v210 = vadd.f32 %v139, %v160
  %v211 = vadd.f32 %v140, %v160
  %v212 = vadd.f32 %v141, %v160
  %v213 = vadd.f32 %v142, %v160
  %v214 = vadd.f32 %v143, %v160
  %v215 = vadd.f32 %v144, %v160
  %v216 = vadd.f32 %v145, %v160
  %v217 = vadd.f32 %v146, %v160
  %v218 = vadd.f32 %v147, %v160
  %v219 = vadd.f32 %v148, %v160
  %v220 = vadd.f32 %v149, %v160
  %v221 = vadd.f32 %v150, %v160
  %v222 = vadd.f32 %v151, %v160
  %v223 = vadd.f32 %v152, %v160
  %v224 = vadd.f32 %v153, %v160
  %v225 = vadd.f32 %v154, %v160
  %v226 = vmax.f32 %v162, 0.0
  %v227 = vmax.f32 %v163, 0.0
  %v228 = vmax.f32 %v164, 0.0
  %v229 = vmax.f32 %v165, 0.0
  %v230 = vmax.f32 %v166, 0.0
  %v231 = vmax.f32 %v167, 0.0
  %v232 = vmax.f32 %v168, 0.0
  %v233 = vmax.f32 %v169, 0.0
  %v234 = vmax.f32 %v170, 0.0
  %v235 = vmax.f32 %v171, 0.0
  %v236 = vmax.f32 %v172, 0.0
  %v237 = vmax.f32 %v173, 0.0
  %v238 = vmax.f32 %v174, 0.0
  %v239 = vmax.f32 %v175, 0.0
  %v240 = vmax.f32 %v176, 0.0
  %v241 = vmax.f32 %v177, 0.0
  %v242 = vmax.f32 %v178, 0.0
  %v243 = vmax.f32 %v179, 0.0
  %v244 = vmax.f32 %v180, 0.0
  %v245 = vmax.f32 %v181, 0.0
  %v246 = vmax.f32 %v182, 0.0
  %v247 = vmax.f32 %v183, 0.0
  %v248 = vmax.f32 %v184, 0.0
  %v249 = vmax.f32 %v185, 0.0
  %v250 = vmax.f32 %v186, 0.0
  %v251 = vmax.f32 %v187, 0.0
  %v252 = vmax.f32 %v188, 0.0
  %v253 = vmax.f32 %v189, 0.0
  %v254 = vmax.f32 %v190, 0.0
  %v255 = vmax.f32 %v191, 0.0
  %v256 = vmax.f32 %v192, 0.0
  %v257 = vmax.f32 %v193, 0.0
  %v258 = vmax.f32 %v194, 0.0
  %v259 = vmax.f32 %v195, 0.0
  %v260 = vmax.f32 %v196, 0.0
  %v261 = vmax.f32 %v197, 0.0
  %v262 = vmax.f32 %v198, 0.0
  %v263 = vmax.f32 %v199, 0.0
  %v264 = vmax.f32 %v200, 0.0
  %v265 = vmax.f32 %v201, 0.0
  %v266 = vmax.f32 %v202, 0.0
  %v267 = vmax.f32 %v203, 0.0
  %v268 = vmax.f32 %v204, 0.0
  %v269 = vmax.f32 %v205, 0.0
  %v270 = vmax.f32 %v206, 0.0
  %v271 = vmax.f32 %v207, 0.0
  %v272 = vmax.f32 %v208, 0.0
  %v273 = vmax.f32 %v209, 0.0
  %v274 = vmax.f32 %v210, 0.0
  %v275 = vmax.f32 %v211, 0.0
  %v276 = vmax.f32 %v212, 0.0
  %v277 = vmax.f32 %v213, 0.0
  %v278 = vmax.f32 %v214, 0.0
  %v279 = vmax.f32 %v215, 0.0
  %v280 = vmax.f32 %v216, 0.0
  %v281 = vmax.f32 %v217, 0.0
  %v282 = vmax.f32 %v218, 0.0
  %v283 = vmax.f32 %v219, 0.0
  %v284 = vmax.f32 %v220, 0.0
  %v285 = vmax.f32 %v221, 0.0
  %v286 = vmax.f32 %v222, 0.0
  %v287 = vmax.f32 %v223, 0.0
  %v288 = vmax.f32 %v224, 0.0
  %v289 = vmax.f32 %v225, 0.0
  %v290 = vpack.c.bf16 %v227, %v226
  %v291 = vpack.c.bf16 %v229, %v228
  %v292 = vpack.c.bf16 %v231, %v230
  %v293 = vpack.c.bf16 %v233, %v232
  %v294 = vpack.c.bf16 %v235, %v234
  %v295 = vpack.c.bf16 %v237, %v236
  %v296 = vpack.c.bf16 %v239, %v238
  %v297 = vpack.c.bf16 %v241, %v240
  %v298 = vpack.c.bf16 %v243, %v242
  %v299 = vpack.c.bf16 %v245, %v244
  %v300 = vpack.c.bf16 %v247, %v246
  %v301 = vpack.c.bf16 %v249, %v248
  %v302 = vpack.c.bf16 %v251, %v250
  %v303 = vpack.c.bf16 %v253, %v252
  %v304 = vpack.c.bf16 %v255, %v254
  %v305 = vpack.c.bf16 %v257, %v256
  %v306 = vpack.c.bf16 %v259, %v258
  %v307 = vpack.c.bf16 %v261, %v260
  %v308 = vpack.c.bf16 %v263, %v262
  %v309 = vpack.c.bf16 %v265, %v264
  %v310 = vpack.c.bf16 %v267, %v266
  %v311 = vpack.c.bf16 %v269, %v268
  %v312 = vpack.c.bf16 %v271, %v270
  %v313 = vpack.c.bf16 %v273, %v272
  %v314 = vpack.c.bf16 %v275, %v274
  %v315 = vpack.c.bf16 %v277, %v276
  %v316 = vpack.c.bf16 %v279, %v278
  %v317 = vpack.c.bf16 %v281, %v280
  %v318 = vpack.c.bf16 %v283, %v282
  %v319 = vpack.c.bf16 %v285, %v284
  %v320 = vpack.c.bf16 %v287, %v286
  %v321 = vpack.c.bf16 %v289, %v288
  %v322 = vld [vmem:[%s3] sm:$0xf]
  %v323 = vld [vmem:[%s3 + $0x4] sm:$0xf]
  %v324 = vld [vmem:[%s3 + $0x8] sm:$0xf]
  %v325 = vld [vmem:[%s3 + $0xc] sm:$0xf]
  %v326 = vld [vmem:[%s3 + $0x10] sm:$0xf]
  %v327 = vld [vmem:[%s3 + $0x14] sm:$0xf]
  %v334 = vunpack.c.l.b16 %v322
  %v335 = vunpack.c.l.b16 %v323
  %v336 = vunpack.c.l.b16 %v324
  %v337 = vunpack.c.l.b16 %v325
  %v338 = vunpack.c.l.b16 %v326
  %v339 = vunpack.c.l.b16 %v327
  %v340 = vpack.c.b16 %v335, %v334
  %v341 = vpack.c.b16 %v337, %v336
  %v342 = vpack.c.b16 %v339, %v338
  %vm346 = vcmask 392192
  %v348 = vsel %vm346, %v290, 0
  %v351 = vsel %vm346, %v291, 0
  %v354 = vsel %vm346, %v292, 0
  %v357 = vsel %vm346, %v293, 0
  %v360 = vsel %vm346, %v294, 0
  %v363 = vsel %vm346, %v295, 0
  %v366 = vsel %vm346, %v296, 0
  %v369 = vsel %vm346, %v297, 0
  %v372 = vsel %vm346, %v298, 0
  %v375 = vsel %vm346, %v299, 0
  %v378 = vsel %vm346, %v300, 0
  %v381 = vsel %vm346, %v301, 0
  %v384 = vsel %vm346, %v302, 0
  %v387 = vsel %vm346, %v303, 0
  %v390 = vsel %vm346, %v304, 0
  %v393 = vsel %vm346, %v305, 0
  %v396 = vsel %vm346, %v306, 0
  %v399 = vsel %vm346, %v307, 0
  %v402 = vsel %vm346, %v308, 0
  %v405 = vsel %vm346, %v309, 0
  %v408 = vsel %vm346, %v310, 0
  %v411 = vsel %vm346, %v311, 0
  %v414 = vsel %vm346, %v312, 0
  %v417 = vsel %vm346, %v313, 0
  %v420 = vsel %vm346, %v314, 0
  %v423 = vsel %vm346, %v315, 0
  %v426 = vsel %vm346, %v316, 0
  %v429 = vsel %vm346, %v317, 0
  %v432 = vsel %vm346, %v318, 0
  %v435 = vsel %vm346, %v319, 0
  %v438 = vsel %vm346, %v320, 0
  %v441 = vsel %vm346, %v321, 0
  %443 = vmatprep.subr.bf16.mxu0 0
  %444 = vmatpush1.bf16.msra.mxu0 %v340
  %445 = vmatprep.subr.bf16.mxu0 0
  %446 = vmatpush1.bf16.msra.mxu0 %v341
  %447 = vmatprep.subr.bf16.mxu0 0
  %448 = vmatpush1.bf16.msra.mxu0 %v342
  %449 = vmatprep.subr.bf16.mxu0 0
  %450 = vmatpush1.bf16.msra.mxu0 0
  %451 = vmatprep.subr.bf16.mxu0 0
  %452 = vmatpush1.bf16.msra.mxu0 0
  %453 = vmatprep.subr.bf16.mxu0 0
  %454 = vmatpush1.bf16.msra.mxu0 0
  %455 = vmatprep.subr.bf16.mxu0 0
  %456 = vmatpush1.bf16.msra.mxu0 0
  %457 = vmatprep.subr.bf16.mxu0 0
  %458 = vmatpush1.bf16.msra.mxu0 0
  %459 = vmatprep.subr.bf16.mxu0 0
  %460 = vmatpush1.bf16.msra.mxu0 0
  %461 = vmatprep.subr.bf16.mxu0 0
  %462 = vmatpush1.bf16.msra.mxu0 0
  %463 = vmatprep.subr.bf16.mxu0 0
  %464 = vmatpush1.bf16.msra.mxu0 0
  %465 = vmatprep.subr.bf16.mxu0 0
  %466 = vmatpush1.bf16.msra.mxu0 0
  %467 = vmatprep.subr.bf16.mxu0 0
  %468 = vmatpush1.bf16.msra.mxu0 0
  %469 = vmatprep.subr.bf16.mxu0 0
  %470 = vmatpush1.bf16.msra.mxu0 0
  %471 = vmatprep.subr.bf16.mxu0 0
  %472 = vmatpush1.bf16.msra.mxu0 0
  %473 = vmatprep.subr.bf16.mxu0 0
  %474 = vmatpush1.bf16.msra.mxu0 0
  %475 = vmatprep.mubr.bf16.mxu0 0
  %476 = vmatmul.mubr.bf16.gmra.mrb[0].mxu0 %v348
  %v477 = vpop.f32.mrb[0].mxu0
  %v478 = vadd.f32 0.0, %v477
  %v479 = vpop.f32.mrb[0].mxu0
  %v480 = vpop.f32.mrb[0].mxu0
  %v481 = vadd.f32 0.0, %v480
  %v482 = vpop.f32.mrb[0].mxu0
  %483 = vmatprep.mubr.bf16.mxu0 0
  %484 = vmatmul.mubr.bf16.gmra.mrb[0].mxu0 %v351
  %v485 = vpop.f32.mrb[0].mxu0
  %v486 = vadd.f32 0.0, %v485
  %v487 = vpop.f32.mrb[0].mxu0
  %v488 = vpop.f32.mrb[0].mxu0
  %v489 = vadd.f32 0.0, %v488
  %v490 = vpop.f32.mrb[0].mxu0
  %491 = vmatprep.mubr.bf16.mxu0 0
  %492 = vmatmul.mubr.bf16.gmra.mrb[0].mxu0 %v354
  %v493 = vpop.f32.mrb[0].mxu0
  %v494 = vadd.f32 0.0, %v493
  %v495 = vpop.f32.mrb[0].mxu0
  %v496 = vpop.f32.mrb[0].mxu0
  %v497 = vadd.f32 0.0, %v496
  %v498 = vpop.f32.mrb[0].mxu0
  %499 = vmatprep.mubr.bf16.mxu0 0
  %500 = vmatmul.mubr.bf16.gmra.mrb[0].mxu0 %v357
  %v501 = vpop.f32.mrb[0].mxu0
  %v502 = vadd.f32 0.0, %v501
  %v503 = vpop.f32.mrb[0].mxu0
  %v504 = vpop.f32.mrb[0].mxu0
  %v505 = vadd.f32 0.0, %v504
  %v506 = vpop.f32.mrb[0].mxu0
  %507 = vmatprep.mubr.bf16.mxu0 0
  %508 = vmatmul.mubr.bf16.gmra.mrb[0].mxu0 %v360
  %v509 = vpop.f32.mrb[0].mxu0
  %v510 = vadd.f32 0.0, %v509
  %v511 = vpop.f32.mrb[0].mxu0
  %v512 = vpop.f32.mrb[0].mxu0
  %v513 = vadd.f32 0.0, %v512
  %v514 = vpop.f32.mrb[0].mxu0
  %515 = vmatprep.mubr.bf16.mxu0 0
  %516 = vmatmul.mubr.bf16.gmra.mrb[0].mxu0 %v363
  %v517 = vpop.f32.mrb[0].mxu0
  %v518 = vadd.f32 0.0, %v517
  %v519 = vpop.f32.mrb[0].mxu0
  %v520 = vpop.f32.mrb[0].mxu0
  %v521 = vadd.f32 0.0, %v520
  %v522 = vpop.f32.mrb[0].mxu0
  %523 = vmatprep.mubr.bf16.mxu0 0
  %524 = vmatmul.mubr.bf16.gmra.mrb[0].mxu0 %v366
  %v525 = vpop.f32.mrb[0].mxu0
  %v526 = vadd.f32 0.0, %v525
  %v527 = vpop.f32.mrb[0].mxu0
  %v528 = vpop.f32.mrb[0].mxu0
  %v529 = vadd.f32 0.0, %v528
  %v530 = vpop.f32.mrb[0].mxu0
  %531 = vmatprep.mubr.bf16.mxu0 0
  %532 = vmatmul.mubr.bf16.gmra.mrb[0].mxu0 %v369
  %v533 = vpop.f32.mrb[0].mxu0
  %v534 = vadd.f32 0.0, %v533
  %v535 = vpop.f32.mrb[0].mxu0
  %v536 = vpop.f32.mrb[0].mxu0
  %v537 = vadd.f32 0.0, %v536
  %v538 = vpop.f32.mrb[0].mxu0
  %539 = vmatprep.mubr.bf16.mxu0 0
  %540 = vmatmul.mubr.bf16.gmra.mrb[0].mxu0 %v372
  %v541 = vpop.f32.mrb[0].mxu0
  %v542 = vadd.f32 0.0, %v541
  %v543 = vpop.f32.mrb[0].mxu0
  %v544 = vpop.f32.mrb[0].mxu0
  %v545 = vadd.f32 0.0, %v544
  %v546 = vpop.f32.mrb[0].mxu0
  %547 = vmatprep.mubr.bf16.mxu0 0
  %548 = vmatmul.mubr.bf16.gmra.mrb[0].mxu0 %v375
  %v549 = vpop.f32.mrb[0].mxu0
  %v550 = vadd.f32 0.0, %v549
  %v551 = vpop.f32.mrb[0].mxu0
  %v552 = vpop.f32.mrb[0].mxu0
  %v553 = vadd.f32 0.0, %v552
  %v554 = vpop.f32.mrb[0].mxu0
  %555 = vmatprep.mubr.bf16.mxu0 0
  %556 = vmatmul.mubr.bf16.gmra.mrb[0].mxu0 %v378
  %v557 = vpop.f32.mrb[0].mxu0
  %v558 = vadd.f32 0.0, %v557
  %v559 = vpop.f32.mrb[0].mxu0
  %v560 = vpop.f32.mrb[0].mxu0
  %v561 = vadd.f32 0.0, %v560
  %v562 = vpop.f32.mrb[0].mxu0
  %563 = vmatprep.mubr.bf16.mxu0 0
  %564 = vmatmul.mubr.bf16.gmra.mrb[0].mxu0 %v381
  %v565 = vpop.f32.mrb[0].mxu0
  %v566 = vadd.f32 0.0, %v565
  %v567 = vpop.f32.mrb[0].mxu0
  %v568 = vpop.f32.mrb[0].mxu0
  %v569 = vadd.f32 0.0, %v568
  %v570 = vpop.f32.mrb[0].mxu0
  %571 = vmatprep.mubr.bf16.mxu0 0
  %572 = vmatmul.mubr.bf16.gmra.mrb[0].mxu0 %v384
  %v573 = vpop.f32.mrb[0].mxu0
  %v574 = vadd.f32 0.0, %v573
  %v575 = vpop.f32.mrb[0].mxu0
  %v576 = vpop.f32.mrb[0].mxu0
  %v577 = vadd.f32 0.0, %v576
  %v578 = vpop.f32.mrb[0].mxu0
  %579 = vmatprep.mubr.bf16.mxu0 0
  %580 = vmatmul.mubr.bf16.gmra.mrb[0].mxu0 %v387
  %v581 = vpop.f32.mrb[0].mxu0
  %v582 = vadd.f32 0.0, %v581
  %v583 = vpop.f32.mrb[0].mxu0
  %v584 = vpop.f32.mrb[0].mxu0
  %v585 = vadd.f32 0.0, %v584
  %v586 = vpop.f32.mrb[0].mxu0
  %587 = vmatprep.mubr.bf16.mxu0 0
  %588 = vmatmul.mubr.bf16.gmra.mrb[0].mxu0 %v390
  %v589 = vpop.f32.mrb[0].mxu0
  %v590 = vadd.f32 0.0, %v589
  %v591 = vpop.f32.mrb[0].mxu0
  %v592 = vpop.f32.mrb[0].mxu0
  %v593 = vadd.f32 0.0, %v592
  %v594 = vpop.f32.mrb[0].mxu0
  %595 = vmatprep.mubr.bf16.mxu0 0
  %596 = vmatmul.mubr.bf16.gmra.mrb[0].mxu0 %v393
  %v597 = vpop.f32.mrb[0].mxu0
  %v598 = vadd.f32 0.0, %v597
  %v599 = vpop.f32.mrb[0].mxu0
  %v600 = vpop.f32.mrb[0].mxu0
  %v601 = vadd.f32 0.0, %v600
  %v602 = vpop.f32.mrb[0].mxu0
  %603 = vmatprep.mubr.bf16.mxu0 0
  %604 = vmatmul.mubr.bf16.gmra.mrb[0].mxu0 %v396
  %v605 = vpop.f32.mrb[0].mxu0
  %v606 = vadd.f32 0.0, %v605
  %v607 = vpop.f32.mrb[0].mxu0
  %v608 = vpop.f32.mrb[0].mxu0
  %v609 = vadd.f32 0.0, %v608
  %v610 = vpop.f32.mrb[0].mxu0
  %611 = vmatprep.mubr.bf16.mxu0 0
  %612 = vmatmul.mubr.bf16.gmra.mrb[0].mxu0 %v399
  %v613 = vpop.f32.mrb[0].mxu0
  %v614 = vadd.f32 0.0, %v613
  %v615 = vpop.f32.mrb[0].mxu0
  %v616 = vpop.f32.mrb[0].mxu0
  %v617 = vadd.f32 0.0, %v616
  %v618 = vpop.f32.mrb[0].mxu0
  %619 = vmatprep.mubr.bf16.mxu0 0
  %620 = vmatmul.mubr.bf16.gmra.mrb[0].mxu0 %v402
  %v621 = vpop.f32.mrb[0].mxu0
  %v622 = vadd.f32 0.0, %v621
  %v623 = vpop.f32.mrb[0].mxu0
  %v624 = vpop.f32.mrb[0].mxu0
  %v625 = vadd.f32 0.0, %v624
  %v626 = vpop.f32.mrb[0].mxu0
  %627 = vmatprep.mubr.bf16.mxu0 0
  %628 = vmatmul.mubr.bf16.gmra.mrb[0].mxu0 %v405
  %v629 = vpop.f32.mrb[0].mxu0
  %v630 = vadd.f32 0.0, %v629
  %v631 = vpop.f32.mrb[0].mxu0
  %v632 = vpop.f32.mrb[0].mxu0
  %v633 = vadd.f32 0.0, %v632
  %v634 = vpop.f32.mrb[0].mxu0
  %635 = vmatprep.mubr.bf16.mxu0 0
  %636 = vmatmul.mubr.bf16.gmra.mrb[0].mxu0 %v408
  %v637 = vpop.f32.mrb[0].mxu0
  %v638 = vadd.f32 0.0, %v637
  %v639 = vpop.f32.mrb[0].mxu0
  %v640 = vpop.f32.mrb[0].mxu0
  %v641 = vadd.f32 0.0, %v640
  %v642 = vpop.f32.mrb[0].mxu0
  %643 = vmatprep.mubr.bf16.mxu0 0
  %644 = vmatmul.mubr.bf16.gmra.mrb[0].mxu0 %v411
  %v645 = vpop.f32.mrb[0].mxu0
  %v646 = vadd.f32 0.0, %v645
  %v647 = vpop.f32.mrb[0].mxu0
  %v648 = vpop.f32.mrb[0].mxu0
  %v649 = vadd.f32 0.0, %v648
  %v650 = vpop.f32.mrb[0].mxu0
  %651 = vmatprep.mubr.bf16.mxu0 0
  %652 = vmatmul.mubr.bf16.gmra.mrb[0].mxu0 %v414
  %v653 = vpop.f32.mrb[0].mxu0
  %v654 = vadd.f32 0.0, %v653
  %v655 = vpop.f32.mrb[0].mxu0
  %v656 = vpop.f32.mrb[0].mxu0
  %v657 = vadd.f32 0.0, %v656
  %v658 = vpop.f32.mrb[0].mxu0
  %659 = vmatprep.mubr.bf16.mxu0 0
  %660 = vmatmul.mubr.bf16.gmra.mrb[0].mxu0 %v417
  %v661 = vpop.f32.mrb[0].mxu0
  %v662 = vadd.f32 0.0, %v661
  %v663 = vpop.f32.mrb[0].mxu0
  %v664 = vpop.f32.mrb[0].mxu0
  %v665 = vadd.f32 0.0, %v664
  %v666 = vpop.f32.mrb[0].mxu0
  %667 = vmatprep.mubr.bf16.mxu0 0
  %668 = vmatmul.mubr.bf16.gmra.mrb[0].mxu0 %v420
  %v669 = vpop.f32.mrb[0].mxu0
  %v670 = vadd.f32 0.0, %v669
  %v671 = vpop.f32.mrb[0].mxu0
  %v672 = vpop.f32.mrb[0].mxu0
  %v673 = vadd.f32 0.0, %v672
  %v674 = vpop.f32.mrb[0].mxu0
  %675 = vmatprep.mubr.bf16.mxu0 0
  %676 = vmatmul.mubr.bf16.gmra.mrb[0].mxu0 %v423
  %v677 = vpop.f32.mrb[0].mxu0
  %v678 = vadd.f32 0.0, %v677
  %v679 = vpop.f32.mrb[0].mxu0
  %v680 = vpop.f32.mrb[0].mxu0
  %v681 = vadd.f32 0.0, %v680
  %v682 = vpop.f32.mrb[0].mxu0
  %683 = vmatprep.mubr.bf16.mxu0 0
  %684 = vmatmul.mubr.bf16.gmra.mrb[0].mxu0 %v426
  %v685 = vpop.f32.mrb[0].mxu0
  %v686 = vadd.f32 0.0, %v685
  %v687 = vpop.f32.mrb[0].mxu0
  %v688 = vpop.f32.mrb[0].mxu0
  %v689 = vadd.f32 0.0, %v688
  %v690 = vpop.f32.mrb[0].mxu0
  %691 = vmatprep.mubr.bf16.mxu0 0
  %692 = vmatmul.mubr.bf16.gmra.mrb[0].mxu0 %v429
  %v693 = vpop.f32.mrb[0].mxu0
  %v694 = vadd.f32 0.0, %v693
  %v695 = vpop.f32.mrb[0].mxu0
  %v696 = vpop.f32.mrb[0].mxu0
  %v697 = vadd.f32 0.0, %v696
  %v698 = vpop.f32.mrb[0].mxu0
  %699 = vmatprep.mubr.bf16.mxu0 0
  %700 = vmatmul.mubr.bf16.gmra.mrb[0].mxu0 %v432
  %v701 = vpop.f32.mrb[0].mxu0
  %v702 = vadd.f32 0.0, %v701
  %v703 = vpop.f32.mrb[0].mxu0
  %v704 = vpop.f32.mrb[0].mxu0
  %v705 = vadd.f32 0.0, %v704
  %v706 = vpop.f32.mrb[0].mxu0
  %707 = vmatprep.mubr.bf16.mxu0 0
  %708 = vmatmul.mubr.bf16.gmra.mrb[0].mxu0 %v435
  %v709 = vpop.f32.mrb[0].mxu0
  %v710 = vadd.f32 0.0, %v709
  %v711 = vpop.f32.mrb[0].mxu0
  %v712 = vpop.f32.mrb[0].mxu0
  %v713 = vadd.f32 0.0, %v712
  %v714 = vpop.f32.mrb[0].mxu0
  %715 = vmatprep.mubr.bf16.mxu0 0
  %716 = vmatmul.mubr.bf16.gmra.mrb[0].mxu0 %v438
  %v717 = vpop.f32.mrb[0].mxu0
  %v718 = vadd.f32 0.0, %v717
  %v719 = vpop.f32.mrb[0].mxu0
  %v720 = vpop.f32.mrb[0].mxu0
  %v721 = vadd.f32 0.0, %v720
  %v722 = vpop.f32.mrb[0].mxu0
  %723 = vmatprep.mubr.bf16.mxu0 0
  %724 = vmatmul.mubr.bf16.gmra.mrb[0].mxu0 %v441
  %v725 = vpop.f32.mrb[0].mxu0
  %v726 = vadd.f32 0.0, %v725
  %v727 = vpop.f32.mrb[0].mxu0
  %v728 = vpop.f32.mrb[0].mxu0
  %v729 = vadd.f32 0.0, %v728
  %v730 = vpop.f32.mrb[0].mxu0
  %731 = vdwg.mxu0
  %v732 = vpack.c.bf16 %v481, %v478
  %v733 = vpack.c.bf16 %v489, %v486
  %v734 = vpack.c.bf16 %v497, %v494
  %v735 = vpack.c.bf16 %v505, %v502
  %v736 = vpack.c.bf16 %v513, %v510
  %v737 = vpack.c.bf16 %v521, %v518
  %v738 = vpack.c.bf16 %v529, %v526
  %v739 = vpack.c.bf16 %v537, %v534
  %v740 = vpack.c.bf16 %v545, %v542
  %v741 = vpack.c.bf16 %v553, %v550
  %v742 = vpack.c.bf16 %v561, %v558
  %v743 = vpack.c.bf16 %v569, %v566
  %v744 = vpack.c.bf16 %v577, %v574
  %v745 = vpack.c.bf16 %v585, %v582
  %v746 = vpack.c.bf16 %v593, %v590
  %v747 = vpack.c.bf16 %v601, %v598
  %v748 = vpack.c.bf16 %v609, %v606
  %v749 = vpack.c.bf16 %v617, %v614
  %v750 = vpack.c.bf16 %v625, %v622
  %v751 = vpack.c.bf16 %v633, %v630
  %v752 = vpack.c.bf16 %v641, %v638
  %v753 = vpack.c.bf16 %v649, %v646
  %v754 = vpack.c.bf16 %v657, %v654
  %v755 = vpack.c.bf16 %v665, %v662
  %v756 = vpack.c.bf16 %v673, %v670
  %v757 = vpack.c.bf16 %v681, %v678
  %v758 = vpack.c.bf16 %v689, %v686
  %v759 = vpack.c.bf16 %v697, %v694
  %v760 = vpack.c.bf16 %v705, %v702
  %v761 = vpack.c.bf16 %v713, %v710
  %v762 = vpack.c.bf16 %v721, %v718
  %v763 = vpack.c.bf16 %v729, %v726
  %v796 = vunpack.c.l.b16 %v732
  %v797 = vunpack.c.h.b16 %v732
  %v798 = vunpack.c.l.b16 %v733
  %v799 = vunpack.c.h.b16 %v733
  %v800 = vunpack.c.l.b16 %v734
  %v801 = vunpack.c.h.b16 %v734
  %v802 = vunpack.c.l.b16 %v735
  %v803 = vunpack.c.h.b16 %v735
  %v804 = vunpack.c.l.b16 %v736
  %v805 = vunpack.c.h.b16 %v736
  %v806 = vunpack.c.l.b16 %v737
  %v807 = vunpack.c.h.b16 %v737
  %v808 = vunpack.c.l.b16 %v738
  %v809 = vunpack.c.h.b16 %v738
  %v810 = vunpack.c.l.b16 %v739
  %v811 = vunpack.c.h.b16 %v739
  %v812 = vunpack.c.l.b16 %v740
  %v813 = vunpack.c.h.b16 %v740
  %v814 = vunpack.c.l.b16 %v741
  %v815 = vunpack.c.h.b16 %v741
  %v816 = vunpack.c.l.b16 %v742
  %v817 = vunpack.c.h.b16 %v742
  %v818 = vunpack.c.l.b16 %v743
  %v819 = vunpack.c.h.b16 %v743
  %v820 = vunpack.c.l.b16 %v744
  %v821 = vunpack.c.h.b16 %v744
  %v822 = vunpack.c.l.b16 %v745
  %v823 = vunpack.c.h.b16 %v745
  %v824 = vunpack.c.l.b16 %v746
  %v825 = vunpack.c.h.b16 %v746
  %v826 = vunpack.c.l.b16 %v747
  %v827 = vunpack.c.h.b16 %v747
  %v828 = vunpack.c.l.b16 %v748
  %v829 = vunpack.c.h.b16 %v748
  %v830 = vunpack.c.l.b16 %v749
  %v831 = vunpack.c.h.b16 %v749
  %v832 = vunpack.c.l.b16 %v750
  %v833 = vunpack.c.h.b16 %v750
  %v834 = vunpack.c.l.b16 %v751
  %v835 = vunpack.c.h.b16 %v751
  %v836 = vunpack.c.l.b16 %v752
  %v837 = vunpack.c.h.b16 %v752
  %v838 = vunpack.c.l.b16 %v753
  %v839 = vunpack.c.h.b16 %v753
  %v840 = vunpack.c.l.b16 %v754
  %v841 = vunpack.c.h.b16 %v754
  %v842 = vunpack.c.l.b16 %v755
  %v843 = vunpack.c.h.b16 %v755
  %v844 = vunpack.c.l.b16 %v756
  %v845 = vunpack.c.h.b16 %v756
  %v846 = vunpack.c.l.b16 %v757
  %v847 = vunpack.c.h.b16 %v757
  %v848 = vunpack.c.l.b16 %v758
  %v849 = vunpack.c.h.b16 %v758
  %v850 = vunpack.c.l.b16 %v759
  %v851 = vunpack.c.h.b16 %v759
  %v852 = vunpack.c.l.b16 %v760
  %v853 = vunpack.c.h.b16 %v760
  %v854 = vunpack.c.l.b16 %v761
  %v855 = vunpack.c.h.b16 %v761
  %v856 = vunpack.c.l.b16 %v762
  %v857 = vunpack.c.h.b16 %v762
  %v858 = vunpack.c.l.b16 %v763
  %v859 = vunpack.c.h.b16 %v763
  %v860 = vpack.c.b16 %v796, %v796
  %v861 = vpack.c.b16 %v797, %v797
  %v862 = vpack.c.b16 %v798, %v798
  %v863 = vpack.c.b16 %v799, %v799
  %v864 = vpack.c.b16 %v800, %v800
  %v865 = vpack.c.b16 %v801, %v801
  %v866 = vpack.c.b16 %v802, %v802
  %v867 = vpack.c.b16 %v803, %v803
  %v868 = vpack.c.b16 %v804, %v804
  %v869 = vpack.c.b16 %v805, %v805
  %v870 = vpack.c.b16 %v806, %v806
  %v871 = vpack.c.b16 %v807, %v807
  %v872 = vpack.c.b16 %v808, %v808
  %v873 = vpack.c.b16 %v809, %v809
  %v874 = vpack.c.b16 %v810, %v810
  %v875 = vpack.c.b16 %v811, %v811
  %v876 = vpack.c.b16 %v812, %v812
  %v877 = vpack.c.b16 %v813, %v813
  %v878 = vpack.c.b16 %v814, %v814
  %v879 = vpack.c.b16 %v815, %v815
  %v880 = vpack.c.b16 %v816, %v816
  %v881 = vpack.c.b16 %v817, %v817
  %v882 = vpack.c.b16 %v818, %v818
  %v883 = vpack.c.b16 %v819, %v819
  %v884 = vpack.c.b16 %v820, %v820
  %v885 = vpack.c.b16 %v821, %v821
  %v886 = vpack.c.b16 %v822, %v822
  %v887 = vpack.c.b16 %v823, %v823
  %v888 = vpack.c.b16 %v824, %v824
  %v889 = vpack.c.b16 %v825, %v825
  %v890 = vpack.c.b16 %v826, %v826
  %v891 = vpack.c.b16 %v827, %v827
  %v892 = vpack.c.b16 %v828, %v828
  %v893 = vpack.c.b16 %v829, %v829
  %v894 = vpack.c.b16 %v830, %v830
  %v895 = vpack.c.b16 %v831, %v831
  %v896 = vpack.c.b16 %v832, %v832
  %v897 = vpack.c.b16 %v833, %v833
  %v898 = vpack.c.b16 %v834, %v834
  %v899 = vpack.c.b16 %v835, %v835
  %v900 = vpack.c.b16 %v836, %v836
  %v901 = vpack.c.b16 %v837, %v837
  %v902 = vpack.c.b16 %v838, %v838
  %v903 = vpack.c.b16 %v839, %v839
  %v904 = vpack.c.b16 %v840, %v840
  %v905 = vpack.c.b16 %v841, %v841
  %v906 = vpack.c.b16 %v842, %v842
  %v907 = vpack.c.b16 %v843, %v843
  %v908 = vpack.c.b16 %v844, %v844
  %v909 = vpack.c.b16 %v845, %v845
  %v910 = vpack.c.b16 %v846, %v846
  %v911 = vpack.c.b16 %v847, %v847
  %v912 = vpack.c.b16 %v848, %v848
  %v913 = vpack.c.b16 %v849, %v849
  %v914 = vpack.c.b16 %v850, %v850
  %v915 = vpack.c.b16 %v851, %v851
  %v916 = vpack.c.b16 %v852, %v852
  %v917 = vpack.c.b16 %v853, %v853
  %v918 = vpack.c.b16 %v854, %v854
  %v919 = vpack.c.b16 %v855, %v855
  %v920 = vpack.c.b16 %v856, %v856
  %v921 = vpack.c.b16 %v857, %v857
  %v922 = vpack.c.b16 %v858, %v858
  %v923 = vpack.c.b16 %v859, %v859
  %988 = vst [vmem:[%s4] sm:$0xf] %v860
  %989 = vst [vmem:[%s4 + $0x4] sm:$0xf] %v861
  %990 = vst [vmem:[%s4 + $0x8] sm:$0xf] %v862
  %991 = vst [vmem:[%s4 + $0xc] sm:$0xf] %v863
  %992 = vst [vmem:[%s4 + $0x10] sm:$0xf] %v864
  %993 = vst [vmem:[%s4 + $0x14] sm:$0xf] %v865
  %994 = vst [vmem:[%s4 + $0x18] sm:$0xf] %v866
  %995 = vst [vmem:[%s4 + $0x1c] sm:$0xf] %v867
  %996 = vst [vmem:[%s4 + $0x20] sm:$0xf] %v868
  %997 = vst [vmem:[%s4 + $0x24] sm:$0xf] %v869
  %998 = vst [vmem:[%s4 + $0x28] sm:$0xf] %v870
  %999 = vst [vmem:[%s4 + $0x2c] sm:$0xf] %v871
  %1000 = vst [vmem:[%s4 + $0x30] sm:$0xf] %v872
  %1001 = vst [vmem:[%s4 + $0x34] sm:$0xf] %v873
  %1002 = vst [vmem:[%s4 + $0x38] sm:$0xf] %v874
  %1003 = vst [vmem:[%s4 + $0x3c] sm:$0xf] %v875
  %1004 = vst [vmem:[%s4 + $0x40] sm:$0xf] %v876
  %1005 = vst [vmem:[%s4 + $0x44] sm:$0xf] %v877
  %1006 = vst [vmem:[%s4 + $0x48] sm:$0xf] %v878
  %1007 = vst [vmem:[%s4 + $0x4c] sm:$0xf] %v879
  %1008 = vst [vmem:[%s4 + $0x50] sm:$0xf] %v880
  %1009 = vst [vmem:[%s4 + $0x54] sm:$0xf] %v881
  %1010 = vst [vmem:[%s4 + $0x58] sm:$0xf] %v882
  %1011 = vst [vmem:[%s4 + $0x5c] sm:$0xf] %v883
  %1012 = vst [vmem:[%s4 + $0x60] sm:$0xf] %v884
  %1013 = vst [vmem:[%s4 + $0x64] sm:$0xf] %v885
  %1014 = vst [vmem:[%s4 + $0x68] sm:$0xf] %v886
  %1015 = vst [vmem:[%s4 + $0x6c] sm:$0xf] %v887
  %1016 = vst [vmem:[%s4 + $0x70] sm:$0xf] %v888
  %1017 = vst [vmem:[%s4 + $0x74] sm:$0xf] %v889
  %1018 = vst [vmem:[%s4 + $0x78] sm:$0xf] %v890
  %1019 = vst [vmem:[%s4 + $0x7c] sm:$0xf] %v891
  %1020 = vst [vmem:[%s4 + $0x80] sm:$0xf] %v892
  %1021 = vst [vmem:[%s4 + $0x84] sm:$0xf] %v893
  %1022 = vst [vmem:[%s4 + $0x88] sm:$0xf] %v894
  %1023 = vst [vmem:[%s4 + $0x8c] sm:$0xf] %v895
  %1024 = vst [vmem:[%s4 + $0x90] sm:$0xf] %v896
  %1025 = vst [vmem:[%s4 + $0x94] sm:$0xf] %v897
  %1026 = vst [vmem:[%s4 + $0x98] sm:$0xf] %v898
  %1027 = vst [vmem:[%s4 + $0x9c] sm:$0xf] %v899
  %1028 = vst [vmem:[%s4 + $0xa0] sm:$0xf] %v900
  %1029 = vst [vmem:[%s4 + $0xa4] sm:$0xf] %v901
  %1030 = vst [vmem:[%s4 + $0xa8] sm:$0xf] %v902
  %1031 = vst [vmem:[%s4 + $0xac] sm:$0xf] %v903
  %1032 = vst [vmem:[%s4 + $0xb0] sm:$0xf] %v904
  %1033 = vst [vmem:[%s4 + $0xb4] sm:$0xf] %v905
  %1034 = vst [vmem:[%s4 + $0xb8] sm:$0xf] %v906
  %1035 = vst [vmem:[%s4 + $0xbc] sm:$0xf] %v907
  %1036 = vst [vmem:[%s4 + $0xc0] sm:$0xf] %v908
  %1037 = vst [vmem:[%s4 + $0xc4] sm:$0xf] %v909
  %1038 = vst [vmem:[%s4 + $0xc8] sm:$0xf] %v910
  %1039 = vst [vmem:[%s4 + $0xcc] sm:$0xf] %v911
  %1040 = vst [vmem:[%s4 + $0xd0] sm:$0xf] %v912
  %1041 = vst [vmem:[%s4 + $0xd4] sm:$0xf] %v913
  %1042 = vst [vmem:[%s4 + $0xd8] sm:$0xf] %v914
  %1043 = vst [vmem:[%s4 + $0xdc] sm:$0xf] %v915
  %1044 = vst [vmem:[%s4 + $0xe0] sm:$0xf] %v916
  %1045 = vst [vmem:[%s4 + $0xe4] sm:$0xf] %v917
  %1046 = vst [vmem:[%s4 + $0xe8] sm:$0xf] %v918
  %1047 = vst [vmem:[%s4 + $0xec] sm:$0xf] %v919
  %1048 = vst [vmem:[%s4 + $0xf0] sm:$0xf] %v920
  %1049 = vst [vmem:[%s4 + $0xf4] sm:$0xf] %v921
  %1050 = vst [vmem:[%s4 + $0xf8] sm:$0xf] %v922
  %1051 = vst [vmem:[%s4 + $0xfc] sm:$0xf] %v923
  %v1052 = vadd.f32 %v478, %v481
  %v1053 = vadd.f32 %v1052, %v486
  %v1054 = vadd.f32 %v1053, %v489
  %v1055 = vadd.f32 %v1054, %v494
  %v1056 = vadd.f32 %v1055, %v497
  %v1057 = vadd.f32 %v1056, %v502
  %v1058 = vadd.f32 %v1057, %v505
  %v1059 = vadd.f32 %v1058, %v510
  %v1060 = vadd.f32 %v1059, %v513
  %v1061 = vadd.f32 %v1060, %v518
  %v1062 = vadd.f32 %v1061, %v521
  %v1063 = vadd.f32 %v1062, %v526
  %v1064 = vadd.f32 %v1063, %v529
  %v1065 = vadd.f32 %v1064, %v534
  %v1066 = vadd.f32 %v1065, %v537
  %v1067 = vadd.f32 %v1066, %v542
  %v1068 = vadd.f32 %v1067, %v545
  %v1069 = vadd.f32 %v1068, %v550
  %v1070 = vadd.f32 %v1069, %v553
  %v1071 = vadd.f32 %v1070, %v558
  %v1072 = vadd.f32 %v1071, %v561
  %v1073 = vadd.f32 %v1072, %v566
  %v1074 = vadd.f32 %v1073, %v569
  %v1075 = vadd.f32 %v1074, %v574
  %v1076 = vadd.f32 %v1075, %v577
  %v1077 = vadd.f32 %v1076, %v582
  %v1078 = vadd.f32 %v1077, %v585
  %v1079 = vadd.f32 %v1078, %v590
  %v1080 = vadd.f32 %v1079, %v593
  %v1081 = vadd.f32 %v1080, %v598
  %v1082 = vadd.f32 %v1081, %v601
  %v1083 = vadd.f32 %v1082, %v606
  %v1084 = vadd.f32 %v1083, %v609
  %v1085 = vadd.f32 %v1084, %v614
  %v1086 = vadd.f32 %v1085, %v617
  %v1087 = vadd.f32 %v1086, %v622
  %v1088 = vadd.f32 %v1087, %v625
  %v1089 = vadd.f32 %v1088, %v630
  %v1090 = vadd.f32 %v1089, %v633
  %v1091 = vadd.f32 %v1090, %v638
  %v1092 = vadd.f32 %v1091, %v641
  %v1093 = vadd.f32 %v1092, %v646
  %v1094 = vadd.f32 %v1093, %v649
  %v1095 = vadd.f32 %v1094, %v654
  %v1096 = vadd.f32 %v1095, %v657
  %v1097 = vadd.f32 %v1096, %v662
  %v1098 = vadd.f32 %v1097, %v665
  %v1099 = vadd.f32 %v1098, %v670
  %v1100 = vadd.f32 %v1099, %v673
  %v1101 = vadd.f32 %v1100, %v678
  %v1102 = vadd.f32 %v1101, %v681
  %v1103 = vadd.f32 %v1102, %v686
  %v1104 = vadd.f32 %v1103, %v689
  %v1105 = vadd.f32 %v1104, %v694
  %v1106 = vadd.f32 %v1105, %v697
  %v1107 = vadd.f32 %v1106, %v702
  %v1108 = vadd.f32 %v1107, %v705
  %v1109 = vadd.f32 %v1108, %v710
  %v1110 = vadd.f32 %v1109, %v713
  %v1111 = vadd.f32 %v1110, %v718
  %v1112 = vadd.f32 %v1111, %v721
  %v1113 = vadd.f32 %v1112, %v726
  %v1114 = vadd.f32 %v1113, %v729
  %v1115 = vrot.slane %v1114, 4
  %v1116 = vadd.f32 %v1114, %v1115
  %v1117 = vrot.slane %v1116, 2
  %v1118 = vadd.f32 %v1116, %v1117
  %v1119 = vrot.slane %v1118, 1
  %v1120 = vadd.f32 %v1118, %v1119
  %v1121 = vmul.f32 %v478, %v478
  %v1122 = vmul.f32 %v481, %v481
  %v1123 = vmul.f32 %v486, %v486
  %v1124 = vmul.f32 %v489, %v489
  %v1125 = vmul.f32 %v494, %v494
  %v1126 = vmul.f32 %v497, %v497
  %v1127 = vmul.f32 %v502, %v502
  %v1128 = vmul.f32 %v505, %v505
  %v1129 = vmul.f32 %v510, %v510
  %v1130 = vmul.f32 %v513, %v513
  %v1131 = vmul.f32 %v518, %v518
  %v1132 = vmul.f32 %v521, %v521
  %v1133 = vmul.f32 %v526, %v526
  %v1134 = vmul.f32 %v529, %v529
  %v1135 = vmul.f32 %v534, %v534
  %v1136 = vmul.f32 %v537, %v537
  %v1137 = vmul.f32 %v542, %v542
  %v1138 = vmul.f32 %v545, %v545
  %v1139 = vmul.f32 %v550, %v550
  %v1140 = vmul.f32 %v553, %v553
  %v1141 = vmul.f32 %v558, %v558
  %v1142 = vmul.f32 %v561, %v561
  %v1143 = vmul.f32 %v566, %v566
  %v1144 = vmul.f32 %v569, %v569
  %v1145 = vmul.f32 %v574, %v574
  %v1146 = vmul.f32 %v577, %v577
  %v1147 = vmul.f32 %v582, %v582
  %v1148 = vmul.f32 %v585, %v585
  %v1149 = vmul.f32 %v590, %v590
  %v1150 = vmul.f32 %v593, %v593
  %v1151 = vmul.f32 %v598, %v598
  %v1152 = vmul.f32 %v601, %v601
  %v1153 = vmul.f32 %v606, %v606
  %v1154 = vmul.f32 %v609, %v609
  %v1155 = vmul.f32 %v614, %v614
  %v1156 = vmul.f32 %v617, %v617
  %v1157 = vmul.f32 %v622, %v622
  %v1158 = vmul.f32 %v625, %v625
  %v1159 = vmul.f32 %v630, %v630
  %v1160 = vmul.f32 %v633, %v633
  %v1161 = vmul.f32 %v638, %v638
  %v1162 = vmul.f32 %v641, %v641
  %v1163 = vmul.f32 %v646, %v646
  %v1164 = vmul.f32 %v649, %v649
  %v1165 = vmul.f32 %v654, %v654
  %v1166 = vmul.f32 %v657, %v657
  %v1167 = vmul.f32 %v662, %v662
  %v1168 = vmul.f32 %v665, %v665
  %v1169 = vmul.f32 %v670, %v670
  %v1170 = vmul.f32 %v673, %v673
  %v1171 = vmul.f32 %v678, %v678
  %v1172 = vmul.f32 %v681, %v681
  %v1173 = vmul.f32 %v686, %v686
  %v1174 = vmul.f32 %v689, %v689
  %v1175 = vmul.f32 %v694, %v694
  %v1176 = vmul.f32 %v697, %v697
  %v1177 = vmul.f32 %v702, %v702
  %v1178 = vmul.f32 %v705, %v705
  %v1179 = vmul.f32 %v710, %v710
  %v1180 = vmul.f32 %v713, %v713
  %v1181 = vmul.f32 %v718, %v718
  %v1182 = vmul.f32 %v721, %v721
  %v1183 = vmul.f32 %v726, %v726
  %v1184 = vmul.f32 %v729, %v729
  %v1185 = vadd.f32 %v1121, %v1122
  %v1186 = vadd.f32 %v1185, %v1123
  %v1187 = vadd.f32 %v1186, %v1124
  %v1188 = vadd.f32 %v1187, %v1125
  %v1189 = vadd.f32 %v1188, %v1126
  %v1190 = vadd.f32 %v1189, %v1127
  %v1191 = vadd.f32 %v1190, %v1128
  %v1192 = vadd.f32 %v1191, %v1129
  %v1193 = vadd.f32 %v1192, %v1130
  %v1194 = vadd.f32 %v1193, %v1131
  %v1195 = vadd.f32 %v1194, %v1132
  %v1196 = vadd.f32 %v1195, %v1133
  %v1197 = vadd.f32 %v1196, %v1134
  %v1198 = vadd.f32 %v1197, %v1135
  %v1199 = vadd.f32 %v1198, %v1136
  %v1200 = vadd.f32 %v1199, %v1137
  %v1201 = vadd.f32 %v1200, %v1138
  %v1202 = vadd.f32 %v1201, %v1139
  %v1203 = vadd.f32 %v1202, %v1140
  %v1204 = vadd.f32 %v1203, %v1141
  %v1205 = vadd.f32 %v1204, %v1142
  %v1206 = vadd.f32 %v1205, %v1143
  %v1207 = vadd.f32 %v1206, %v1144
  %v1208 = vadd.f32 %v1207, %v1145
  %v1209 = vadd.f32 %v1208, %v1146
  %v1210 = vadd.f32 %v1209, %v1147
  %v1211 = vadd.f32 %v1210, %v1148
  %v1212 = vadd.f32 %v1211, %v1149
  %v1213 = vadd.f32 %v1212, %v1150
  %v1214 = vadd.f32 %v1213, %v1151
  %v1215 = vadd.f32 %v1214, %v1152
  %v1216 = vadd.f32 %v1215, %v1153
  %v1217 = vadd.f32 %v1216, %v1154
  %v1218 = vadd.f32 %v1217, %v1155
  %v1219 = vadd.f32 %v1218, %v1156
  %v1220 = vadd.f32 %v1219, %v1157
  %v1221 = vadd.f32 %v1220, %v1158
  %v1222 = vadd.f32 %v1221, %v1159
  %v1223 = vadd.f32 %v1222, %v1160
  %v1224 = vadd.f32 %v1223, %v1161
  %v1225 = vadd.f32 %v1224, %v1162
  %v1226 = vadd.f32 %v1225, %v1163
  %v1227 = vadd.f32 %v1226, %v1164
  %v1228 = vadd.f32 %v1227, %v1165
  %v1229 = vadd.f32 %v1228, %v1166
  %v1230 = vadd.f32 %v1229, %v1167
  %v1231 = vadd.f32 %v1230, %v1168
  %v1232 = vadd.f32 %v1231, %v1169
  %v1233 = vadd.f32 %v1232, %v1170
  %v1234 = vadd.f32 %v1233, %v1171
  %v1235 = vadd.f32 %v1234, %v1172
  %v1236 = vadd.f32 %v1235, %v1173
  %v1237 = vadd.f32 %v1236, %v1174
  %v1238 = vadd.f32 %v1237, %v1175
  %v1239 = vadd.f32 %v1238, %v1176
  %v1240 = vadd.f32 %v1239, %v1177
  %v1241 = vadd.f32 %v1240, %v1178
  %v1242 = vadd.f32 %v1241, %v1179
  %v1243 = vadd.f32 %v1242, %v1180
  %v1244 = vadd.f32 %v1243, %v1181
  %v1245 = vadd.f32 %v1244, %v1182
  %v1246 = vadd.f32 %v1245, %v1183
  %v1247 = vadd.f32 %v1246, %v1184
  %v1248 = vrot.slane %v1247, 4
  %v1249 = vadd.f32 %v1247, %v1248
  %v1250 = vrot.slane %v1249, 2
  %v1251 = vadd.f32 %v1249, %v1250
  %v1252 = vrot.slane %v1251, 1
  %v1253 = vadd.f32 %v1251, %v1252
  %vm1254 = vcmask 1040384
  %v1255 = vsel %vm1254, %v1120, %v1253
  %vm1256 = vcmask 1041408
  %v1257 = vsel %vm1256, %v1255, 0.0
  %1258 = vst [vmem:[%s5] sm:$0xff] %v1257
  // Predicated region
  $region18: #{dual_path_block_forward_nhwc.5} parent=0 // pred_check
    _
  $region19: #{dual_path_block_forward_nhwc.5} parent=0 // pred_check_branch
    %1260 = sbr.rel (0) target = $region21
  $region20: #{dual_path_block_forward_nhwc.5} parent=0 // pred_region
    _
  $region21: #{dual_path_block_forward_nhwc.5} parent=0 // pred_fallthru
    _
  // Predicated region
  $region22: #{dual_path_block_forward_nhwc.5} parent=0 // pred_check
    _
  $region23: #{dual_path_block_forward_nhwc.5} parent=0 // pred_check_branch
    %1262 = sbr.rel (0) target = $region25
  $region24: #{dual_path_block_forward_nhwc.5} parent=0 // pred_region
    _
  $region25: #{dual_path_block_forward_nhwc.5} parent=0 // pred_fallthru
    _
  // Predicated region
  $region26: #{dual_path_block_forward_nhwc.5} parent=0 // pred_check
    _
  $region27: #{dual_path_block_forward_nhwc.5} parent=0 // pred_check_branch
    %1264 = sbr.rel (0) target = $region29
  $region28: #{dual_path_block_forward_nhwc.5} parent=0 // pred_region
    _
  $region29: #{dual_path_block_forward_nhwc.5} parent=0 // pred_fallthru
    _
  // Predicated region
  $region30: #{dual_path_block_forward_nhwc.5} parent=0 // pred_check
    _
  $region31: #{dual_path_block_forward_nhwc.5} parent=0 // pred_check_branch
    %1266 = sbr.rel (0) target = $region33
  $region32: #{dual_path_block_forward_nhwc.5} parent=0 // pred_region
    _
  $region33: #{dual_path_block_forward_nhwc.5} parent=0 // pred_fallthru
    _

// kernel: dual_path_block_forward_nhwc.7
$region0: #{dual_path_block_forward_nhwc.7}
  #allocation0 [shape = 'u32[]', space=smem, size = 0x4, offset = 0x4, fixed_abs, tag = 'smem constant byte address 0x4 - core index']
  #allocation1 [shape = 'u32[144,128]{1,0:T(1,128)}', space=vmem, size = 0x12000, scoped, tag = 'internal scratch']
  %s0 = inlined_call_operand.vmem [shape: bf16[512,32], index: 0, kind: input, shape index: {}]
  %s1 = inlined_call_operand.vmem [shape: f32[1,32], index: 1, kind: input, shape index: {}]
  %s2 = inlined_call_operand.vmem [shape: f32[1,32], index: 2, kind: input, shape index: {}]
  %s3 = inlined_call_operand.vmem [shape: bf16[32,128], index: 3, kind: input, shape index: {}]
  %s4 = inlined_call_operand.vmem [shape: f32[512,128], index: 4, kind: output, shape index: {0}]
  %s5 = inlined_call_operand.hbm [shape: f32[1,8,128], index: 5, kind: output, shape index: {1}]
  %6 = xla_tuple %s4, %s5
  %s7 = sld [smem:[#allocation0]]
  $region34: #{dual_path_block_forward_nhwc.7} parent=0
    _
  %s9 = ssub.s32 1, %s7
  %s10 = scalar_select 0, %s9, %s7
  $region1: #{dual_path_block_forward_nhwc.7} parent=0
    #allocation2 [shape = 'u8[4096]{0}', space=vmem, size = 0x1000, scoped, tag = 'output window, operand 1, single buffered']
    #allocation3 [shape = 's32[1]{0}', space=sflag, size = 0x4, scoped, tag = 'scoped memory for dual_path_block_forward_nhwc.7']
    %11 = vsyncpa [#allocation3], 0
    // Predicated region
    $region2: #{dual_path_block_forward_nhwc.7} parent=1 // pred_check
      _
    $region3: #{dual_path_block_forward_nhwc.7} parent=1 // pred_check_branch
      %13 = sbr.rel (0) target = $region5
    $region4: #{dual_path_block_forward_nhwc.7} parent=1 // pred_region
      _
    $region5: #{dual_path_block_forward_nhwc.7} parent=1 // pred_fallthru
      _
    // Predicated region
    $region6: #{dual_path_block_forward_nhwc.7} parent=1 // pred_check
      _
    $region7: #{dual_path_block_forward_nhwc.7} parent=1 // pred_check_branch
      %15 = sbr.rel (0) target = $region9
    $region8: #{dual_path_block_forward_nhwc.7} parent=1 // pred_region
      _
    $region9: #{dual_path_block_forward_nhwc.7} parent=1 // pred_fallthru
      _
    // Predicated region
    $region10: #{dual_path_block_forward_nhwc.7} parent=1 // pred_check
      _
    $region11: #{dual_path_block_forward_nhwc.7} parent=1 // pred_check_branch
      %17 = sbr.rel (0) target = $region13
    $region12: #{dual_path_block_forward_nhwc.7} parent=1 // pred_region
      _
    $region13: #{dual_path_block_forward_nhwc.7} parent=1 // pred_fallthru
      _
    // Predicated region
    $region14: #{dual_path_block_forward_nhwc.7} parent=1 // pred_check
      _
    $region15: #{dual_path_block_forward_nhwc.7} parent=1 // pred_check_branch
      %19 = sbr.rel (0) target = $region17
    $region16: #{dual_path_block_forward_nhwc.7} parent=1 // pred_region
      _
    $region17: #{dual_path_block_forward_nhwc.7} parent=1 // pred_fallthru
      _
    %v21 = vld [vmem:[%s0] sm:$0xf]
    %v22 = vld [vmem:[%s0 + $0x4] sm:$0xf]
    %v23 = vld [vmem:[%s0 + $0x8] sm:$0xf]
    %v24 = vld [vmem:[%s0 + $0xc] sm:$0xf]
    %v25 = vld [vmem:[%s0 + $0x10] sm:$0xf]
    %v26 = vld [vmem:[%s0 + $0x14] sm:$0xf]
    %v27 = vld [vmem:[%s0 + $0x18] sm:$0xf]
    %v28 = vld [vmem:[%s0 + $0x1c] sm:$0xf]
    %v29 = vld [vmem:[%s0 + $0x20] sm:$0xf]
    %v30 = vld [vmem:[%s0 + $0x24] sm:$0xf]
    %v31 = vld [vmem:[%s0 + $0x28] sm:$0xf]
    %v32 = vld [vmem:[%s0 + $0x2c] sm:$0xf]
    %v33 = vld [vmem:[%s0 + $0x30] sm:$0xf]
    %v34 = vld [vmem:[%s0 + $0x34] sm:$0xf]
    %v35 = vld [vmem:[%s0 + $0x38] sm:$0xf]
    %v36 = vld [vmem:[%s0 + $0x3c] sm:$0xf]
    %v37 = vld [vmem:[%s0 + $0x40] sm:$0xf]
    %v38 = vld [vmem:[%s0 + $0x44] sm:$0xf]
    %v39 = vld [vmem:[%s0 + $0x48] sm:$0xf]
    %v40 = vld [vmem:[%s0 + $0x4c] sm:$0xf]
    %v41 = vld [vmem:[%s0 + $0x50] sm:$0xf]
    %v42 = vld [vmem:[%s0 + $0x54] sm:$0xf]
    %v43 = vld [vmem:[%s0 + $0x58] sm:$0xf]
    %v44 = vld [vmem:[%s0 + $0x5c] sm:$0xf]
    %v45 = vld [vmem:[%s0 + $0x60] sm:$0xf]
    %v46 = vld [vmem:[%s0 + $0x64] sm:$0xf]
    %v47 = vld [vmem:[%s0 + $0x68] sm:$0xf]
    %v48 = vld [vmem:[%s0 + $0x6c] sm:$0xf]
    %v49 = vld [vmem:[%s0 + $0x70] sm:$0xf]
    %v50 = vld [vmem:[%s0 + $0x74] sm:$0xf]
    %v51 = vld [vmem:[%s0 + $0x78] sm:$0xf]
    %v52 = vld [vmem:[%s0 + $0x7c] sm:$0xf]
    %v53 = vld [vmem:[%s0 + $0x80] sm:$0xf]
    %v54 = vld [vmem:[%s0 + $0x84] sm:$0xf]
    %v55 = vld [vmem:[%s0 + $0x88] sm:$0xf]
    %v56 = vld [vmem:[%s0 + $0x8c] sm:$0xf]
    %v57 = vld [vmem:[%s0 + $0x90] sm:$0xf]
    %v58 = vld [vmem:[%s0 + $0x94] sm:$0xf]
    %v59 = vld [vmem:[%s0 + $0x98] sm:$0xf]
    %v60 = vld [vmem:[%s0 + $0x9c] sm:$0xf]
    %v61 = vld [vmem:[%s0 + $0xa0] sm:$0xf]
    %v62 = vld [vmem:[%s0 + $0xa4] sm:$0xf]
    %v63 = vld [vmem:[%s0 + $0xa8] sm:$0xf]
    %v64 = vld [vmem:[%s0 + $0xac] sm:$0xf]
    %v65 = vld [vmem:[%s0 + $0xb0] sm:$0xf]
    %v66 = vld [vmem:[%s0 + $0xb4] sm:$0xf]
    %v67 = vld [vmem:[%s0 + $0xb8] sm:$0xf]
    %v68 = vld [vmem:[%s0 + $0xbc] sm:$0xf]
    %v69 = vld [vmem:[%s0 + $0xc0] sm:$0xf]
    %v70 = vld [vmem:[%s0 + $0xc4] sm:$0xf]
    %v71 = vld [vmem:[%s0 + $0xc8] sm:$0xf]
    %v72 = vld [vmem:[%s0 + $0xcc] sm:$0xf]
    %v73 = vld [vmem:[%s0 + $0xd0] sm:$0xf]
    %v74 = vld [vmem:[%s0 + $0xd4] sm:$0xf]
    %v75 = vld [vmem:[%s0 + $0xd8] sm:$0xf]
    %v76 = vld [vmem:[%s0 + $0xdc] sm:$0xf]
    %v77 = vld [vmem:[%s0 + $0xe0] sm:$0xf]
    %v78 = vld [vmem:[%s0 + $0xe4] sm:$0xf]
    %v79 = vld [vmem:[%s0 + $0xe8] sm:$0xf]
    %v80 = vld [vmem:[%s0 + $0xec] sm:$0xf]
    %v81 = vld [vmem:[%s0 + $0xf0] sm:$0xf]
    %v82 = vld [vmem:[%s0 + $0xf4] sm:$0xf]
    %v83 = vld [vmem:[%s0 + $0xf8] sm:$0xf]
    %v84 = vld [vmem:[%s0 + $0xfc] sm:$0xf]
    %v85 = vunpack.c.l.bf16 %v21
    %v86 = vunpack.c.l.bf16 %v22
    %v87 = vunpack.c.l.bf16 %v23
    %v88 = vunpack.c.l.bf16 %v24
    %v89 = vunpack.c.l.bf16 %v25
    %v90 = vunpack.c.l.bf16 %v26
    %v91 = vunpack.c.l.bf16 %v27
    %v92 = vunpack.c.l.bf16 %v28
    %v93 = vunpack.c.l.bf16 %v29
    %v94 = vunpack.c.l.bf16 %v30
    %v95 = vunpack.c.l.bf16 %v31
    %v96 = vunpack.c.l.bf16 %v32
    %v97 = vunpack.c.l.bf16 %v33
    %v98 = vunpack.c.l.bf16 %v34
    %v99 = vunpack.c.l.bf16 %v35
    %v100 = vunpack.c.l.bf16 %v36
    %v101 = vunpack.c.l.bf16 %v37
    %v102 = vunpack.c.l.bf16 %v38
    %v103 = vunpack.c.l.bf16 %v39
    %v104 = vunpack.c.l.bf16 %v40
    %v105 = vunpack.c.l.bf16 %v41
    %v106 = vunpack.c.l.bf16 %v42
    %v107 = vunpack.c.l.bf16 %v43
    %v108 = vunpack.c.l.bf16 %v44
    %v109 = vunpack.c.l.bf16 %v45
    %v110 = vunpack.c.l.bf16 %v46
    %v111 = vunpack.c.l.bf16 %v47
    %v112 = vunpack.c.l.bf16 %v48
    %v113 = vunpack.c.l.bf16 %v49
    %v114 = vunpack.c.l.bf16 %v50
    %v115 = vunpack.c.l.bf16 %v51
    %v116 = vunpack.c.l.bf16 %v52
    %v117 = vunpack.c.l.bf16 %v53
    %v118 = vunpack.c.l.bf16 %v54
    %v119 = vunpack.c.l.bf16 %v55
    %v120 = vunpack.c.l.bf16 %v56
    %v121 = vunpack.c.l.bf16 %v57
    %v122 = vunpack.c.l.bf16 %v58
    %v123 = vunpack.c.l.bf16 %v59
    %v124 = vunpack.c.l.bf16 %v60
    %v125 = vunpack.c.l.bf16 %v61
    %v126 = vunpack.c.l.bf16 %v62
    %v127 = vunpack.c.l.bf16 %v63
    %v128 = vunpack.c.l.bf16 %v64
    %v129 = vunpack.c.l.bf16 %v65
    %v130 = vunpack.c.l.bf16 %v66
    %v131 = vunpack.c.l.bf16 %v67
    %v132 = vunpack.c.l.bf16 %v68
    %v133 = vunpack.c.l.bf16 %v69
    %v134 = vunpack.c.l.bf16 %v70
    %v135 = vunpack.c.l.bf16 %v71
    %v136 = vunpack.c.l.bf16 %v72
    %v137 = vunpack.c.l.bf16 %v73
    %v138 = vunpack.c.l.bf16 %v74
    %v139 = vunpack.c.l.bf16 %v75
    %v140 = vunpack.c.l.bf16 %v76
    %v141 = vunpack.c.l.bf16 %v77
    %v142 = vunpack.c.l.bf16 %v78
    %v143 = vunpack.c.l.bf16 %v79
    %v144 = vunpack.c.l.bf16 %v80
    %v145 = vunpack.c.l.bf16 %v81
    %v146 = vunpack.c.l.bf16 %v82
    %v147 = vunpack.c.l.bf16 %v83
    %v148 = vunpack.c.l.bf16 %v84
    %v149 = vld [vmem:[%s1] sm:$0x1]
    %v151 = vlaneseq
    %v152 = vshrl.u32 %v151, 7
    %v153 = vsub.s32 0, %v152
    %v154 = vrot.slane %v149, %v153
    %v156 = vmul.f32 %v85, %v154
    %v157 = vmul.f32 %v86, %v154
    %v158 = vmul.f32 %v87, %v154
    %v159 = vmul.f32 %v88, %v154
    %v160 = vmul.f32 %v89, %v154
    %v161 = vmul.f32 %v90, %v154
    %v162 = vmul.f32 %v91, %v154
    %v163 = vmul.f32 %v92, %v154
    %v164 = vmul.f32 %v93, %v154
    %v165 = vmul.f32 %v94, %v154
    %v166 = vmul.f32 %v95, %v154
    %v167 = vmul.f32 %v96, %v154
    %v168 = vmul.f32 %v97, %v154
    %v169 = vmul.f32 %v98, %v154
    %v170 = vmul.f32 %v99, %v154
    %v171 = vmul.f32 %v100, %v154
    %v172 = vmul.f32 %v101, %v154
    %v173 = vmul.f32 %v102, %v154
    %v174 = vmul.f32 %v103, %v154
    %v175 = vmul.f32 %v104, %v154
    %v176 = vmul.f32 %v105, %v154
    %v177 = vmul.f32 %v106, %v154
    %v178 = vmul.f32 %v107, %v154
    %v179 = vmul.f32 %v108, %v154
    %v180 = vmul.f32 %v109, %v154
    %v181 = vmul.f32 %v110, %v154
    %v182 = vmul.f32 %v111, %v154
    %v183 = vmul.f32 %v112, %v154
    %v184 = vmul.f32 %v113, %v154
    %v185 = vmul.f32 %v114, %v154
    %v186 = vmul.f32 %v115, %v154
    %v187 = vmul.f32 %v116, %v154
    %v188 = vmul.f32 %v117, %v154
    %v189 = vmul.f32 %v118, %v154
    %v190 = vmul.f32 %v119, %v154
    %v191 = vmul.f32 %v120, %v154
    %v192 = vmul.f32 %v121, %v154
    %v193 = vmul.f32 %v122, %v154
    %v194 = vmul.f32 %v123, %v154
    %v195 = vmul.f32 %v124, %v154
    %v196 = vmul.f32 %v125, %v154
    %v197 = vmul.f32 %v126, %v154
    %v198 = vmul.f32 %v127, %v154
    %v199 = vmul.f32 %v128, %v154
    %v200 = vmul.f32 %v129, %v154
    %v201 = vmul.f32 %v130, %v154
    %v202 = vmul.f32 %v131, %v154
    %v203 = vmul.f32 %v132, %v154
    %v204 = vmul.f32 %v133, %v154
    %v205 = vmul.f32 %v134, %v154
    %v206 = vmul.f32 %v135, %v154
    %v207 = vmul.f32 %v136, %v154
    %v208 = vmul.f32 %v137, %v154
    %v209 = vmul.f32 %v138, %v154
    %v210 = vmul.f32 %v139, %v154
    %v211 = vmul.f32 %v140, %v154
    %v212 = vmul.f32 %v141, %v154
    %v213 = vmul.f32 %v142, %v154
    %v214 = vmul.f32 %v143, %v154
    %v215 = vmul.f32 %v144, %v154
    %v216 = vmul.f32 %v145, %v154
    %v217 = vmul.f32 %v146, %v154
    %v218 = vmul.f32 %v147, %v154
    %v219 = vmul.f32 %v148, %v154
    %v220 = vld [vmem:[%s2] sm:$0x1]
    %v222 = vlaneseq
    %v223 = vshrl.u32 %v222, 7
    %v224 = vsub.s32 0, %v223
    %v225 = vrot.slane %v220, %v224
    %v227 = vadd.f32 %v156, %v225
    %v228 = vadd.f32 %v157, %v225
    %v229 = vadd.f32 %v158, %v225
    %v230 = vadd.f32 %v159, %v225
    %v231 = vadd.f32 %v160, %v225
    %v232 = vadd.f32 %v161, %v225
    %v233 = vadd.f32 %v162, %v225
    %v234 = vadd.f32 %v163, %v225
    %v235 = vadd.f32 %v164, %v225
    %v236 = vadd.f32 %v165, %v225
    %v237 = vadd.f32 %v166, %v225
    %v238 = vadd.f32 %v167, %v225
    %v239 = vadd.f32 %v168, %v225
    %v240 = vadd.f32 %v169, %v225
    %v241 = vadd.f32 %v170, %v225
    %v242 = vadd.f32 %v171, %v225
    %v243 = vadd.f32 %v172, %v225
    %v244 = vadd.f32 %v173, %v225
    %v245 = vadd.f32 %v174, %v225
    %v246 = vadd.f32 %v175, %v225
    %v247 = vadd.f32 %v176, %v225
    %v248 = vadd.f32 %v177, %v225
    %v249 = vadd.f32 %v178, %v225
    %v250 = vadd.f32 %v179, %v225
    %v251 = vadd.f32 %v180, %v225
    %v252 = vadd.f32 %v181, %v225
    %v253 = vadd.f32 %v182, %v225
    %v254 = vadd.f32 %v183, %v225
    %v255 = vadd.f32 %v184, %v225
    %v256 = vadd.f32 %v185, %v225
    %v257 = vadd.f32 %v186, %v225
    %v258 = vadd.f32 %v187, %v225
    %v259 = vadd.f32 %v188, %v225
    %v260 = vadd.f32 %v189, %v225
    %v261 = vadd.f32 %v190, %v225
    %v262 = vadd.f32 %v191, %v225
    %v263 = vadd.f32 %v192, %v225
    %v264 = vadd.f32 %v193, %v225
    %v265 = vadd.f32 %v194, %v225
    %v266 = vadd.f32 %v195, %v225
    %v267 = vadd.f32 %v196, %v225
    %v268 = vadd.f32 %v197, %v225
    %v269 = vadd.f32 %v198, %v225
    %v270 = vadd.f32 %v199, %v225
    %v271 = vadd.f32 %v200, %v225
    %v272 = vadd.f32 %v201, %v225
    %v273 = vadd.f32 %v202, %v225
    %v274 = vadd.f32 %v203, %v225
    %v275 = vadd.f32 %v204, %v225
    %v276 = vadd.f32 %v205, %v225
    %v277 = vadd.f32 %v206, %v225
    %v278 = vadd.f32 %v207, %v225
    %v279 = vadd.f32 %v208, %v225
    %v280 = vadd.f32 %v209, %v225
    %v281 = vadd.f32 %v210, %v225
    %v282 = vadd.f32 %v211, %v225
    %v283 = vadd.f32 %v212, %v225
    %v284 = vadd.f32 %v213, %v225
    %v285 = vadd.f32 %v214, %v225
    %v286 = vadd.f32 %v215, %v225
    %v287 = vadd.f32 %v216, %v225
    %v288 = vadd.f32 %v217, %v225
    %v289 = vadd.f32 %v218, %v225
    %v290 = vadd.f32 %v219, %v225
    %v291 = vmax.f32 %v227, 0.0
    %v292 = vmax.f32 %v228, 0.0
    %v293 = vmax.f32 %v229, 0.0
    %v294 = vmax.f32 %v230, 0.0
    %v295 = vmax.f32 %v231, 0.0
    %v296 = vmax.f32 %v232, 0.0
    %v297 = vmax.f32 %v233, 0.0
    %v298 = vmax.f32 %v234, 0.0
    %v299 = vmax.f32 %v235, 0.0
    %v300 = vmax.f32 %v236, 0.0
    %v301 = vmax.f32 %v237, 0.0
    %v302 = vmax.f32 %v238, 0.0
    %v303 = vmax.f32 %v239, 0.0
    %v304 = vmax.f32 %v240, 0.0
    %v305 = vmax.f32 %v241, 0.0
    %v306 = vmax.f32 %v242, 0.0
    %v307 = vmax.f32 %v243, 0.0
    %v308 = vmax.f32 %v244, 0.0
    %v309 = vmax.f32 %v245, 0.0
    %v310 = vmax.f32 %v246, 0.0
    %v311 = vmax.f32 %v247, 0.0
    %v312 = vmax.f32 %v248, 0.0
    %v313 = vmax.f32 %v249, 0.0
    %v314 = vmax.f32 %v250, 0.0
    %v315 = vmax.f32 %v251, 0.0
    %v316 = vmax.f32 %v252, 0.0
    %v317 = vmax.f32 %v253, 0.0
    %v318 = vmax.f32 %v254, 0.0
    %v319 = vmax.f32 %v255, 0.0
    %v320 = vmax.f32 %v256, 0.0
    %v321 = vmax.f32 %v257, 0.0
    %v322 = vmax.f32 %v258, 0.0
    %v323 = vmax.f32 %v259, 0.0
    %v324 = vmax.f32 %v260, 0.0
    %v325 = vmax.f32 %v261, 0.0
    %v326 = vmax.f32 %v262, 0.0
    %v327 = vmax.f32 %v263, 0.0
    %v328 = vmax.f32 %v264, 0.0
    %v329 = vmax.f32 %v265, 0.0
    %v330 = vmax.f32 %v266, 0.0
    %v331 = vmax.f32 %v267, 0.0
    %v332 = vmax.f32 %v268, 0.0
    %v333 = vmax.f32 %v269, 0.0
    %v334 = vmax.f32 %v270, 0.0
    %v335 = vmax.f32 %v271, 0.0
    %v336 = vmax.f32 %v272, 0.0
    %v337 = vmax.f32 %v273, 0.0
    %v338 = vmax.f32 %v274, 0.0
    %v339 = vmax.f32 %v275, 0.0
    %v340 = vmax.f32 %v276, 0.0
    %v341 = vmax.f32 %v277, 0.0
    %v342 = vmax.f32 %v278, 0.0
    %v343 = vmax.f32 %v279, 0.0
    %v344 = vmax.f32 %v280, 0.0
    %v345 = vmax.f32 %v281, 0.0
    %v346 = vmax.f32 %v282, 0.0
    %v347 = vmax.f32 %v283, 0.0
    %v348 = vmax.f32 %v284, 0.0
    %v349 = vmax.f32 %v285, 0.0
    %v350 = vmax.f32 %v286, 0.0
    %v351 = vmax.f32 %v287, 0.0
    %v352 = vmax.f32 %v288, 0.0
    %v353 = vmax.f32 %v289, 0.0
    %v354 = vmax.f32 %v290, 0.0
    %v355 = vpack.c.bf16 %v292, %v291
    %v356 = vpack.c.bf16 %v294, %v293
    %v357 = vpack.c.bf16 %v296, %v295
    %v358 = vpack.c.bf16 %v298, %v297
    %v359 = vpack.c.bf16 %v300, %v299
    %v360 = vpack.c.bf16 %v302, %v301
    %v361 = vpack.c.bf16 %v304, %v303
    %v362 = vpack.c.bf16 %v306, %v305
    %v363 = vpack.c.bf16 %v308, %v307
    %v364 = vpack.c.bf16 %v310, %v309
    %v365 = vpack.c.bf16 %v312, %v311
    %v366 = vpack.c.bf16 %v314, %v313
    %v367 = vpack.c.bf16 %v316, %v315
    %v368 = vpack.c.bf16 %v318, %v317
    %v369 = vpack.c.bf16 %v320, %v319
    %v370 = vpack.c.bf16 %v322, %v321
    %v371 = vpack.c.bf16 %v324, %v323
    %v372 = vpack.c.bf16 %v326, %v325
    %v373 = vpack.c.bf16 %v328, %v327
    %v374 = vpack.c.bf16 %v330, %v329
    %v375 = vpack.c.bf16 %v332, %v331
    %v376 = vpack.c.bf16 %v334, %v333
    %v377 = vpack.c.bf16 %v336, %v335
    %v378 = vpack.c.bf16 %v338, %v337
    %v379 = vpack.c.bf16 %v340, %v339
    %v380 = vpack.c.bf16 %v342, %v341
    %v381 = vpack.c.bf16 %v344, %v343
    %v382 = vpack.c.bf16 %v346, %v345
    %v383 = vpack.c.bf16 %v348, %v347
    %v384 = vpack.c.bf16 %v350, %v349
    %v385 = vpack.c.bf16 %v352, %v351
    %v386 = vpack.c.bf16 %v354, %v353
    %v387 = vld [vmem:[%s3] sm:$0xf]
    %v388 = vld [vmem:[%s3 + $0x4] sm:$0xf]
    %v389 = vld [vmem:[%s3 + $0x8] sm:$0xf]
    %v390 = vld [vmem:[%s3 + $0xc] sm:$0xf]
    %v395 = vunpack.c.l.b16 %v387
    %v396 = vunpack.c.l.b16 %v388
    %v397 = vunpack.c.l.b16 %v389
    %v398 = vunpack.c.l.b16 %v390
    %v399 = vpack.c.b16 %v396, %v395
    %v400 = vpack.c.b16 %v398, %v397
    %vm403 = vcmask 261120
    %v405 = vsel %vm403, %v355, 0
    %v408 = vsel %vm403, %v356, 0
    %v411 = vsel %vm403, %v357, 0
    %v414 = vsel %vm403, %v358, 0
    %v417 = vsel %vm403, %v359, 0
    %v420 = vsel %vm403, %v360, 0
    %v423 = vsel %vm403, %v361, 0
    %v426 = vsel %vm403, %v362, 0
    %v429 = vsel %vm403, %v363, 0
    %v432 = vsel %vm403, %v364, 0
    %v435 = vsel %vm403, %v365, 0
    %v438 = vsel %vm403, %v366, 0
    %v441 = vsel %vm403, %v367, 0
    %v444 = vsel %vm403, %v368, 0
    %v447 = vsel %vm403, %v369, 0
    %v450 = vsel %vm403, %v370, 0
    %v453 = vsel %vm403, %v371, 0
    %v456 = vsel %vm403, %v372, 0
    %v459 = vsel %vm403, %v373, 0
    %v462 = vsel %vm403, %v374, 0
    %v465 = vsel %vm403, %v375, 0
    %v468 = vsel %vm403, %v376, 0
    %v471 = vsel %vm403, %v377, 0
    %v474 = vsel %vm403, %v378, 0
    %v477 = vsel %vm403, %v379, 0
    %v480 = vsel %vm403, %v380, 0
    %v483 = vsel %vm403, %v381, 0
    %v486 = vsel %vm403, %v382, 0
    %v489 = vsel %vm403, %v383, 0
    %v492 = vsel %vm403, %v384, 0
    %v495 = vsel %vm403, %v385, 0
    %v498 = vsel %vm403, %v386, 0
    %500 = vmatprep.subr.bf16.mxu0 0
    %501 = vmatpush1.bf16.msra.mxu0 %v399
    %502 = vmatprep.subr.bf16.mxu0 0
    %503 = vmatpush1.bf16.msra.mxu0 %v400
    %504 = vmatprep.subr.bf16.mxu0 0
    %505 = vmatpush1.bf16.msra.mxu0 0
    %506 = vmatprep.subr.bf16.mxu0 0
    %507 = vmatpush1.bf16.msra.mxu0 0
    %508 = vmatprep.subr.bf16.mxu0 0
    %509 = vmatpush1.bf16.msra.mxu0 0
    %510 = vmatprep.subr.bf16.mxu0 0
    %511 = vmatpush1.bf16.msra.mxu0 0
    %512 = vmatprep.subr.bf16.mxu0 0
    %513 = vmatpush1.bf16.msra.mxu0 0
    %514 = vmatprep.subr.bf16.mxu0 0
    %515 = vmatpush1.bf16.msra.mxu0 0
    %516 = vmatprep.subr.bf16.mxu0 0
    %517 = vmatpush1.bf16.msra.mxu0 0
    %518 = vmatprep.subr.bf16.mxu0 0
    %519 = vmatpush1.bf16.msra.mxu0 0
    %520 = vmatprep.subr.bf16.mxu0 0
    %521 = vmatpush1.bf16.msra.mxu0 0
    %522 = vmatprep.subr.bf16.mxu0 0
    %523 = vmatpush1.bf16.msra.mxu0 0
    %524 = vmatprep.subr.bf16.mxu0 0
    %525 = vmatpush1.bf16.msra.mxu0 0
    %526 = vmatprep.subr.bf16.mxu0 0
    %527 = vmatpush1.bf16.msra.mxu0 0
    %528 = vmatprep.subr.bf16.mxu0 0
    %529 = vmatpush1.bf16.msra.mxu0 0
    %530 = vmatprep.subr.bf16.mxu0 0
    %531 = vmatpush1.bf16.msra.mxu0 0
    %532 = vmatprep.mubr.bf16.mxu0 0
    %533 = vmatmul.mubr.bf16.gmra.mrb[0].mxu0 %v405
    %v534 = vpop.f32.mrb[0].mxu0
    %v535 = vadd.f32 0.0, %v534
    %v536 = vpop.f32.mrb[0].mxu0
    %v537 = vpop.f32.mrb[0].mxu0
    %v538 = vadd.f32 0.0, %v537
    %v539 = vpop.f32.mrb[0].mxu0
    %540 = vmatprep.mubr.bf16.mxu0 0
    %541 = vmatmul.mubr.bf16.gmra.mrb[0].mxu0 %v408
    %v542 = vpop.f32.mrb[0].mxu0
    %v543 = vadd.f32 0.0, %v542
    %v544 = vpop.f32.mrb[0].mxu0
    %v545 = vpop.f32.mrb[0].mxu0
    %v546 = vadd.f32 0.0, %v545
    %v547 = vpop.f32.mrb[0].mxu0
    %548 = vmatprep.mubr.bf16.mxu0 0
    %549 = vmatmul.mubr.bf16.gmra.mrb[0].mxu0 %v411
    %v550 = vpop.f32.mrb[0].mxu0
    %v551 = vadd.f32 0.0, %v550
    %v552 = vpop.f32.mrb[0].mxu0
    %v553 = vpop.f32.mrb[0].mxu0
    %v554 = vadd.f32 0.0, %v553
    %v555 = vpop.f32.mrb[0].mxu0
    %556 = vmatprep.mubr.bf16.mxu0 0
    %557 = vmatmul.mubr.bf16.gmra.mrb[0].mxu0 %v414
    %v558 = vpop.f32.mrb[0].mxu0
    %v559 = vadd.f32 0.0, %v558
    %v560 = vpop.f32.mrb[0].mxu0
    %v561 = vpop.f32.mrb[0].mxu0
    %v562 = vadd.f32 0.0, %v561
    %v563 = vpop.f32.mrb[0].mxu0
    %564 = vmatprep.mubr.bf16.mxu0 0
    %565 = vmatmul.mubr.bf16.gmra.mrb[0].mxu0 %v417
    %v566 = vpop.f32.mrb[0].mxu0
    %v567 = vadd.f32 0.0, %v566
    %v568 = vpop.f32.mrb[0].mxu0
    %v569 = vpop.f32.mrb[0].mxu0
    %v570 = vadd.f32 0.0, %v569
    %v571 = vpop.f32.mrb[0].mxu0
    %572 = vmatprep.mubr.bf16.mxu0 0
    %573 = vmatmul.mubr.bf16.gmra.mrb[0].mxu0 %v420
    %v574 = vpop.f32.mrb[0].mxu0
    %v575 = vadd.f32 0.0, %v574
    %v576 = vpop.f32.mrb[0].mxu0
    %v577 = vpop.f32.mrb[0].mxu0
    %v578 = vadd.f32 0.0, %v577
    %v579 = vpop.f32.mrb[0].mxu0
    %580 = vmatprep.mubr.bf16.mxu0 0
    %581 = vmatmul.mubr.bf16.gmra.mrb[0].mxu0 %v423
    %v582 = vpop.f32.mrb[0].mxu0
    %v583 = vadd.f32 0.0, %v582
    %v584 = vpop.f32.mrb[0].mxu0
    %v585 = vpop.f32.mrb[0].mxu0
    %v586 = vadd.f32 0.0, %v585
    %v587 = vpop.f32.mrb[0].mxu0
    %588 = vmatprep.mubr.bf16.mxu0 0
    %589 = vmatmul.mubr.bf16.gmra.mrb[0].mxu0 %v426
    %v590 = vpop.f32.mrb[0].mxu0
    %v591 = vadd.f32 0.0, %v590
    %v592 = vpop.f32.mrb[0].mxu0
    %v593 = vpop.f32.mrb[0].mxu0
    %v594 = vadd.f32 0.0, %v593
    %v595 = vpop.f32.mrb[0].mxu0
    %596 = vmatprep.mubr.bf16.mxu0 0
    %597 = vmatmul.mubr.bf16.gmra.mrb[0].mxu0 %v429
    %v598 = vpop.f32.mrb[0].mxu0
    %v599 = vadd.f32 0.0, %v598
    %v600 = vpop.f32.mrb[0].mxu0
    %v601 = vpop.f32.mrb[0].mxu0
    %v602 = vadd.f32 0.0, %v601
    %v603 = vpop.f32.mrb[0].mxu0
    %604 = vmatprep.mubr.bf16.mxu0 0
    %605 = vmatmul.mubr.bf16.gmra.mrb[0].mxu0 %v432
    %v606 = vpop.f32.mrb[0].mxu0
    %v607 = vadd.f32 0.0, %v606
    %v608 = vpop.f32.mrb[0].mxu0
    %v609 = vpop.f32.mrb[0].mxu0
    %v610 = vadd.f32 0.0, %v609
    %v611 = vpop.f32.mrb[0].mxu0
    %612 = vmatprep.mubr.bf16.mxu0 0
    %613 = vmatmul.mubr.bf16.gmra.mrb[0].mxu0 %v435
    %v614 = vpop.f32.mrb[0].mxu0
    %v615 = vadd.f32 0.0, %v614
    %v616 = vpop.f32.mrb[0].mxu0
    %v617 = vpop.f32.mrb[0].mxu0
    %v618 = vadd.f32 0.0, %v617
    %v619 = vpop.f32.mrb[0].mxu0
    %620 = vmatprep.mubr.bf16.mxu0 0
    %621 = vmatmul.mubr.bf16.gmra.mrb[0].mxu0 %v438
    %v622 = vpop.f32.mrb[0].mxu0
    %v623 = vadd.f32 0.0, %v622
    %v624 = vpop.f32.mrb[0].mxu0
    %v625 = vpop.f32.mrb[0].mxu0
    %v626 = vadd.f32 0.0, %v625
    %v627 = vpop.f32.mrb[0].mxu0
    %628 = vmatprep.mubr.bf16.mxu0 0
    %629 = vmatmul.mubr.bf16.gmra.mrb[0].mxu0 %v441
    %v630 = vpop.f32.mrb[0].mxu0
    %v631 = vadd.f32 0.0, %v630
    %v632 = vpop.f32.mrb[0].mxu0
    %v633 = vpop.f32.mrb[0].mxu0
    %v634 = vadd.f32 0.0, %v633
    %v635 = vpop.f32.mrb[0].mxu0
    %636 = vmatprep.mubr.bf16.mxu0 0
    %637 = vmatmul.mubr.bf16.gmra.mrb[0].mxu0 %v444
    %v638 = vpop.f32.mrb[0].mxu0
    %v639 = vadd.f32 0.0, %v638
    %v640 = vpop.f32.mrb[0].mxu0
    %v641 = vpop.f32.mrb[0].mxu0
    %v642 = vadd.f32 0.0, %v641
    %v643 = vpop.f32.mrb[0].mxu0
    %644 = vmatprep.mubr.bf16.mxu0 0
    %645 = vmatmul.mubr.bf16.gmra.mrb[0].mxu0 %v447
    %v646 = vpop.f32.mrb[0].mxu0
    %v647 = vadd.f32 0.0, %v646
    %v648 = vpop.f32.mrb[0].mxu0
    %v649 = vpop.f32.mrb[0].mxu0
    %v650 = vadd.f32 0.0, %v649
    %v651 = vpop.f32.mrb[0].mxu0
    %652 = vmatprep.mubr.bf16.mxu0 0
    %653 = vmatmul.mubr.bf16.gmra.mrb[0].mxu0 %v450
    %v654 = vpop.f32.mrb[0].mxu0
    %v655 = vadd.f32 0.0, %v654
    %v656 = vpop.f32.mrb[0].mxu0
    %v657 = vpop.f32.mrb[0].mxu0
    %v658 = vadd.f32 0.0, %v657
    %v659 = vpop.f32.mrb[0].mxu0
    %660 = vmatprep.mubr.bf16.mxu0 0
    %661 = vmatmul.mubr.bf16.gmra.mrb[0].mxu0 %v453
    %v662 = vpop.f32.mrb[0].mxu0
    %v663 = vadd.f32 0.0, %v662
    %v664 = vpop.f32.mrb[0].mxu0
    %v665 = vpop.f32.mrb[0].mxu0
    %v666 = vadd.f32 0.0, %v665
    %v667 = vpop.f32.mrb[0].mxu0
    %668 = vmatprep.mubr.bf16.mxu0 0
    %669 = vmatmul.mubr.bf16.gmra.mrb[0].mxu0 %v456
    %v670 = vpop.f32.mrb[0].mxu0
    %v671 = vadd.f32 0.0, %v670
    %v672 = vpop.f32.mrb[0].mxu0
    %v673 = vpop.f32.mrb[0].mxu0
    %v674 = vadd.f32 0.0, %v673
    %v675 = vpop.f32.mrb[0].mxu0
    %676 = vmatprep.mubr.bf16.mxu0 0
    %677 = vmatmul.mubr.bf16.gmra.mrb[0].mxu0 %v459
    %v678 = vpop.f32.mrb[0].mxu0
    %v679 = vadd.f32 0.0, %v678
    %v680 = vpop.f32.mrb[0].mxu0
    %v681 = vpop.f32.mrb[0].mxu0
    %v682 = vadd.f32 0.0, %v681
    %v683 = vpop.f32.mrb[0].mxu0
    %684 = vmatprep.mubr.bf16.mxu0 0
    %685 = vmatmul.mubr.bf16.gmra.mrb[0].mxu0 %v462
    %v686 = vpop.f32.mrb[0].mxu0
    %v687 = vadd.f32 0.0, %v686
    %v688 = vpop.f32.mrb[0].mxu0
    %v689 = vpop.f32.mrb[0].mxu0
    %v690 = vadd.f32 0.0, %v689
    %v691 = vpop.f32.mrb[0].mxu0
    %692 = vmatprep.mubr.bf16.mxu0 0
    %693 = vmatmul.mubr.bf16.gmra.mrb[0].mxu0 %v465
    %v694 = vpop.f32.mrb[0].mxu0
    %v695 = vadd.f32 0.0, %v694
    %v696 = vpop.f32.mrb[0].mxu0
    %v697 = vpop.f32.mrb[0].mxu0
    %v698 = vadd.f32 0.0, %v697
    %v699 = vpop.f32.mrb[0].mxu0
    %700 = vmatprep.mubr.bf16.mxu0 0
    %701 = vmatmul.mubr.bf16.gmra.mrb[0].mxu0 %v468
    %v702 = vpop.f32.mrb[0].mxu0
    %v703 = vadd.f32 0.0, %v702
    %v704 = vpop.f32.mrb[0].mxu0
    %v705 = vpop.f32.mrb[0].mxu0
    %v706 = vadd.f32 0.0, %v705
    %v707 = vpop.f32.mrb[0].mxu0
    %708 = vmatprep.mubr.bf16.mxu0 0
    %709 = vmatmul.mubr.bf16.gmra.mrb[0].mxu0 %v471
    %v710 = vpop.f32.mrb[0].mxu0
    %v711 = vadd.f32 0.0, %v710
    %v712 = vpop.f32.mrb[0].mxu0
    %v713 = vpop.f32.mrb[0].mxu0
    %v714 = vadd.f32 0.0, %v713
    %v715 = vpop.f32.mrb[0].mxu0
    %716 = vmatprep.mubr.bf16.mxu0 0
    %717 = vmatmul.mubr.bf16.gmra.mrb[0].mxu0 %v474
    %v718 = vpop.f32.mrb[0].mxu0
    %v719 = vadd.f32 0.0, %v718
    %v720 = vpop.f32.mrb[0].mxu0
    %v721 = vpop.f32.mrb[0].mxu0
    %v722 = vadd.f32 0.0, %v721
    %v723 = vpop.f32.mrb[0].mxu0
    %724 = vmatprep.mubr.bf16.mxu0 0
    %725 = vmatmul.mubr.bf16.gmra.mrb[0].mxu0 %v477
    %v726 = vpop.f32.mrb[0].mxu0
    %v727 = vadd.f32 0.0, %v726
    %v728 = vpop.f32.mrb[0].mxu0
    %v729 = vpop.f32.mrb[0].mxu0
    %v730 = vadd.f32 0.0, %v729
    %v731 = vpop.f32.mrb[0].mxu0
    %732 = vmatprep.mubr.bf16.mxu0 0
    %733 = vmatmul.mubr.bf16.gmra.mrb[0].mxu0 %v480
    %v734 = vpop.f32.mrb[0].mxu0
    %v735 = vadd.f32 0.0, %v734
    %v736 = vpop.f32.mrb[0].mxu0
    %v737 = vpop.f32.mrb[0].mxu0
    %v738 = vadd.f32 0.0, %v737
    %v739 = vpop.f32.mrb[0].mxu0
    %740 = vmatprep.mubr.bf16.mxu0 0
    %741 = vmatmul.mubr.bf16.gmra.mrb[0].mxu0 %v483
    %v742 = vpop.f32.mrb[0].mxu0
    %v743 = vadd.f32 0.0, %v742
    %v744 = vpop.f32.mrb[0].mxu0
    %v745 = vpop.f32.mrb[0].mxu0
    %v746 = vadd.f32 0.0, %v745
    %v747 = vpop.f32.mrb[0].mxu0
    %748 = vmatprep.mubr.bf16.mxu0 0
    %749 = vmatmul.mubr.bf16.gmra.mrb[0].mxu0 %v486
    %v750 = vpop.f32.mrb[0].mxu0
    %v751 = vadd.f32 0.0, %v750
    %v752 = vpop.f32.mrb[0].mxu0
    %v753 = vpop.f32.mrb[0].mxu0
    %v754 = vadd.f32 0.0, %v753
    %v755 = vpop.f32.mrb[0].mxu0
    %756 = vmatprep.mubr.bf16.mxu0 0
    %757 = vmatmul.mubr.bf16.gmra.mrb[0].mxu0 %v489
    %v758 = vpop.f32.mrb[0].mxu0
    %v759 = vadd.f32 0.0, %v758
    %v760 = vpop.f32.mrb[0].mxu0
    %v761 = vpop.f32.mrb[0].mxu0
    %v762 = vadd.f32 0.0, %v761
    %v763 = vpop.f32.mrb[0].mxu0
    %764 = vmatprep.mubr.bf16.mxu0 0
    %765 = vmatmul.mubr.bf16.gmra.mrb[0].mxu0 %v492
    %v766 = vpop.f32.mrb[0].mxu0
    %v767 = vadd.f32 0.0, %v766
    %v768 = vpop.f32.mrb[0].mxu0
    %v769 = vpop.f32.mrb[0].mxu0
    %v770 = vadd.f32 0.0, %v769
    %v771 = vpop.f32.mrb[0].mxu0
    %772 = vmatprep.mubr.bf16.mxu0 0
    %773 = vmatmul.mubr.bf16.gmra.mrb[0].mxu0 %v495
    %v774 = vpop.f32.mrb[0].mxu0
    %v775 = vadd.f32 0.0, %v774
    %v776 = vpop.f32.mrb[0].mxu0
    %v777 = vpop.f32.mrb[0].mxu0
    %v778 = vadd.f32 0.0, %v777
    %v779 = vpop.f32.mrb[0].mxu0
    %780 = vmatprep.mubr.bf16.mxu0 0
    %781 = vmatmul.mubr.bf16.gmra.mrb[0].mxu0 %v498
    %v782 = vpop.f32.mrb[0].mxu0
    %v783 = vadd.f32 0.0, %v782
    %v784 = vpop.f32.mrb[0].mxu0
    %v785 = vpop.f32.mrb[0].mxu0
    %v786 = vadd.f32 0.0, %v785
    %v787 = vpop.f32.mrb[0].mxu0
    %788 = vdwg.mxu0
    %789 = vst [vmem:[%s4] sm:$0xff] %v535
    %790 = vst [vmem:[%s4 + $0x8] sm:$0xff] %v538
    %791 = vst [vmem:[%s4 + $0x10] sm:$0xff] %v543
    %792 = vst [vmem:[%s4 + $0x18] sm:$0xff] %v546
    %793 = vst [vmem:[%s4 + $0x20] sm:$0xff] %v551
    %794 = vst [vmem:[%s4 + $0x28] sm:$0xff] %v554
    %795 = vst [vmem:[%s4 + $0x30] sm:$0xff] %v559
    %796 = vst [vmem:[%s4 + $0x38] sm:$0xff] %v562
    %797 = vst [vmem:[%s4 + $0x40] sm:$0xff] %v567
    %798 = vst [vmem:[%s4 + $0x48] sm:$0xff] %v570
    %799 = vst [vmem:[%s4 + $0x50] sm:$0xff] %v575
    %800 = vst [vmem:[%s4 + $0x58] sm:$0xff] %v578
    %801 = vst [vmem:[%s4 + $0x60] sm:$0xff] %v583
    %802 = vst [vmem:[%s4 + $0x68] sm:$0xff] %v586
    %803 = vst [vmem:[%s4 + $0x70] sm:$0xff] %v591
    %804 = vst [vmem:[%s4 + $0x78] sm:$0xff] %v594
    %805 = vst [vmem:[%s4 + $0x80] sm:$0xff] %v599
    %806 = vst [vmem:[%s4 + $0x88] sm:$0xff] %v602
    %807 = vst [vmem:[%s4 + $0x90] sm:$0xff] %v607
    %808 = vst [vmem:[%s4 + $0x98] sm:$0xff] %v610
    %809 = vst [vmem:[%s4 + $0xa0] sm:$0xff] %v615
    %810 = vst [vmem:[%s4 + $0xa8] sm:$0xff] %v618
    %811 = vst [vmem:[%s4 + $0xb0] sm:$0xff] %v623
    %812 = vst [vmem:[%s4 + $0xb8] sm:$0xff] %v626
    %813 = vst [vmem:[%s4 + $0xc0] sm:$0xff] %v631
    %814 = vst [vmem:[%s4 + $0xc8] sm:$0xff] %v634
    %815 = vst [vmem:[%s4 + $0xd0] sm:$0xff] %v639
    %816 = vst [vmem:[%s4 + $0xd8] sm:$0xff] %v642
    %817 = vst [vmem:[%s4 + $0xe0] sm:$0xff] %v647
    %818 = vst [vmem:[%s4 + $0xe8] sm:$0xff] %v650
    %819 = vst [vmem:[%s4 + $0xf0] sm:$0xff] %v655
    %820 = vst [vmem:[%s4 + $0xf8] sm:$0xff] %v658
    %821 = vst [vmem:[%s4 + $0x100] sm:$0xff] %v663
    %822 = vst [vmem:[%s4 + $0x108] sm:$0xff] %v666
    %823 = vst [vmem:[%s4 + $0x110] sm:$0xff] %v671
    %824 = vst [vmem:[%s4 + $0x118] sm:$0xff] %v674
    %825 = vst [vmem:[%s4 + $0x120] sm:$0xff] %v679
    %826 = vst [vmem:[%s4 + $0x128] sm:$0xff] %v682
    %827 = vst [vmem:[%s4 + $0x130] sm:$0xff] %v687
    %828 = vst [vmem:[%s4 + $0x138] sm:$0xff] %v690
    %829 = vst [vmem:[%s4 + $0x140] sm:$0xff] %v695
    %830 = vst [vmem:[%s4 + $0x148] sm:$0xff] %v698
    %831 = vst [vmem:[%s4 + $0x150] sm:$0xff] %v703
    %832 = vst [vmem:[%s4 + $0x158] sm:$0xff] %v706
    %833 = vst [vmem:[%s4 + $0x160] sm:$0xff] %v711
    %834 = vst [vmem:[%s4 + $0x168] sm:$0xff] %v714
    %835 = vst [vmem:[%s4 + $0x170] sm:$0xff] %v719
    %836 = vst [vmem:[%s4 + $0x178] sm:$0xff] %v722
    %837 = vst [vmem:[%s4 + $0x180] sm:$0xff] %v727
    %838 = vst [vmem:[%s4 + $0x188] sm:$0xff] %v730
    %839 = vst [vmem:[%s4 + $0x190] sm:$0xff] %v735
    %840 = vst [vmem:[%s4 + $0x198] sm:$0xff] %v738
    %841 = vst [vmem:[%s4 + $0x1a0] sm:$0xff] %v743
    %842 = vst [vmem:[%s4 + $0x1a8] sm:$0xff] %v746
    %843 = vst [vmem:[%s4 + $0x1b0] sm:$0xff] %v751
    %844 = vst [vmem:[%s4 + $0x1b8] sm:$0xff] %v754
    %845 = vst [vmem:[%s4 + $0x1c0] sm:$0xff] %v759
    %846 = vst [vmem:[%s4 + $0x1c8] sm:$0xff] %v762
    %847 = vst [vmem:[%s4 + $0x1d0] sm:$0xff] %v767
    %848 = vst [vmem:[%s4 + $0x1d8] sm:$0xff] %v770
    %849 = vst [vmem:[%s4 + $0x1e0] sm:$0xff] %v775
    %850 = vst [vmem:[%s4 + $0x1e8] sm:$0xff] %v778
    %851 = vst [vmem:[%s4 + $0x1f0] sm:$0xff] %v783
    %852 = vst [vmem:[%s4 + $0x1f8] sm:$0xff] %v786
    %v853 = vadd.f32 %v535, %v538
    %v854 = vadd.f32 %v853, %v543
    %v855 = vadd.f32 %v854, %v546
    %v856 = vadd.f32 %v855, %v551
    %v857 = vadd.f32 %v856, %v554
    %v858 = vadd.f32 %v857, %v559
    %v859 = vadd.f32 %v858, %v562
    %v860 = vadd.f32 %v859, %v567
    %v861 = vadd.f32 %v860, %v570
    %v862 = vadd.f32 %v861, %v575
    %v863 = vadd.f32 %v862, %v578
    %v864 = vadd.f32 %v863, %v583
    %v865 = vadd.f32 %v864, %v586
    %v866 = vadd.f32 %v865, %v591
    %v867 = vadd.f32 %v866, %v594
    %v868 = vadd.f32 %v867, %v599
    %v869 = vadd.f32 %v868, %v602
    %v870 = vadd.f32 %v869, %v607
    %v871 = vadd.f32 %v870, %v610
    %v872 = vadd.f32 %v871, %v615
    %v873 = vadd.f32 %v872, %v618
    %v874 = vadd.f32 %v873, %v623
    %v875 = vadd.f32 %v874, %v626
    %v876 = vadd.f32 %v875, %v631
    %v877 = vadd.f32 %v876, %v634
    %v878 = vadd.f32 %v877, %v639
    %v879 = vadd.f32 %v878, %v642
    %v880 = vadd.f32 %v879, %v647
    %v881 = vadd.f32 %v880, %v650
    %v882 = vadd.f32 %v881, %v655
    %v883 = vadd.f32 %v882, %v658
    %v884 = vadd.f32 %v883, %v663
    %v885 = vadd.f32 %v884, %v666
    %v886 = vadd.f32 %v885, %v671
    %v887 = vadd.f32 %v886, %v674
    %v888 = vadd.f32 %v887, %v679
    %v889 = vadd.f32 %v888, %v682
    %v890 = vadd.f32 %v889, %v687
    %v891 = vadd.f32 %v890, %v690
    %v892 = vadd.f32 %v891, %v695
    %v893 = vadd.f32 %v892, %v698
    %v894 = vadd.f32 %v893, %v703
    %v895 = vadd.f32 %v894, %v706
    %v896 = vadd.f32 %v895, %v711
    %v897 = vadd.f32 %v896, %v714
    %v898 = vadd.f32 %v897, %v719
    %v899 = vadd.f32 %v898, %v722
    %v900 = vadd.f32 %v899, %v727
    %v901 = vadd.f32 %v900, %v730
    %v902 = vadd.f32 %v901, %v735
    %v903 = vadd.f32 %v902, %v738
    %v904 = vadd.f32 %v903, %v743
    %v905 = vadd.f32 %v904, %v746
    %v906 = vadd.f32 %v905, %v751
    %v907 = vadd.f32 %v906, %v754
    %v908 = vadd.f32 %v907, %v759
    %v909 = vadd.f32 %v908, %v762
    %v910 = vadd.f32 %v909, %v767
    %v911 = vadd.f32 %v910, %v770
    %v912 = vadd.f32 %v911, %v775
    %v913 = vadd.f32 %v912, %v778
    %v914 = vadd.f32 %v913, %v783
    %v915 = vadd.f32 %v914, %v786
    %v916 = vrot.slane %v915, 4
    %v917 = vadd.f32 %v915, %v916
    %v918 = vrot.slane %v917, 2
    %v919 = vadd.f32 %v917, %v918
    %v920 = vrot.slane %v919, 1
    %v921 = vadd.f32 %v919, %v920
    %v922 = vmul.f32 %v535, %v535
    %v923 = vmul.f32 %v538, %v538
    %v924 = vmul.f32 %v543, %v543
    %v925 = vmul.f32 %v546, %v546
    %v926 = vmul.f32 %v551, %v551
    %v927 = vmul.f32 %v554, %v554
    %v928 = vmul.f32 %v559, %v559
    %v929 = vmul.f32 %v562, %v562
    %v930 = vmul.f32 %v567, %v567
    %v931 = vmul.f32 %v570, %v570
    %v932 = vmul.f32 %v575, %v575
    %v933 = vmul.f32 %v578, %v578
    %v934 = vmul.f32 %v583, %v583
    %v935 = vmul.f32 %v586, %v586
    %v936 = vmul.f32 %v591, %v591
    %v937 = vmul.f32 %v594, %v594
    %v938 = vmul.f32 %v599, %v599
    %v939 = vmul.f32 %v602, %v602
    %v940 = vmul.f32 %v607, %v607
    %v941 = vmul.f32 %v610, %v610
    %v942 = vmul.f32 %v615, %v615
    %v943 = vmul.f32 %v618, %v618
    %v944 = vmul.f32 %v623, %v623
    %v945 = vmul.f32 %v626, %v626
    %v946 = vmul.f32 %v631, %v631
    %v947 = vmul.f32 %v634, %v634
    %v948 = vmul.f32 %v639, %v639
    %v949 = vmul.f32 %v642, %v642
    %v950 = vmul.f32 %v647, %v647
    %v951 = vmul.f32 %v650, %v650
    %v952 = vmul.f32 %v655, %v655
    %v953 = vmul.f32 %v658, %v658
    %v954 = vmul.f32 %v663, %v663
    %v955 = vmul.f32 %v666, %v666
    %v956 = vmul.f32 %v671, %v671
    %v957 = vmul.f32 %v674, %v674
    %v958 = vmul.f32 %v679, %v679
    %v959 = vmul.f32 %v682, %v682
    %v960 = vmul.f32 %v687, %v687
    %v961 = vmul.f32 %v690, %v690
    %v962 = vmul.f32 %v695, %v695
    %v963 = vmul.f32 %v698, %v698
    %v964 = vmul.f32 %v703, %v703
    %v965 = vmul.f32 %v706, %v706
    %v966 = vmul.f32 %v711, %v711
    %v967 = vmul.f32 %v714, %v714
    %v968 = vmul.f32 %v719, %v719
    %v969 = vmul.f32 %v722, %v722
    %v970 = vmul.f32 %v727, %v727
    %v971 = vmul.f32 %v730, %v730
    %v972 = vmul.f32 %v735, %v735
    %v973 = vmul.f32 %v738, %v738
    %v974 = vmul.f32 %v743, %v743
    %v975 = vmul.f32 %v746, %v746
    %v976 = vmul.f32 %v751, %v751
    %v977 = vmul.f32 %v754, %v754
    %v978 = vmul.f32 %v759, %v759
    %v979 = vmul.f32 %v762, %v762
    %v980 = vmul.f32 %v767, %v767
    %v981 = vmul.f32 %v770, %v770
    %v982 = vmul.f32 %v775, %v775
    %v983 = vmul.f32 %v778, %v778
    %v984 = vmul.f32 %v783, %v783
    %v985 = vmul.f32 %v786, %v786
    %v986 = vadd.f32 %v922, %v923
    %v987 = vadd.f32 %v986, %v924
    %v988 = vadd.f32 %v987, %v925
    %v989 = vadd.f32 %v988, %v926
    %v990 = vadd.f32 %v989, %v927
    %v991 = vadd.f32 %v990, %v928
    %v992 = vadd.f32 %v991, %v929
    %v993 = vadd.f32 %v992, %v930
    %v994 = vadd.f32 %v993, %v931
    %v995 = vadd.f32 %v994, %v932
    %v996 = vadd.f32 %v995, %v933
    %v997 = vadd.f32 %v996, %v934
    %v998 = vadd.f32 %v997, %v935
    %v999 = vadd.f32 %v998, %v936
    %v1000 = vadd.f32 %v999, %v937
    %v1001 = vadd.f32 %v1000, %v938
    %v1002 = vadd.f32 %v1001, %v939
    %v1003 = vadd.f32 %v1002, %v940
    %v1004 = vadd.f32 %v1003, %v941
    %v1005 = vadd.f32 %v1004, %v942
    %v1006 = vadd.f32 %v1005, %v943
    %v1007 = vadd.f32 %v1006, %v944
    %v1008 = vadd.f32 %v1007, %v945
    %v1009 = vadd.f32 %v1008, %v946
    %v1010 = vadd.f32 %v1009, %v947
    %v1011 = vadd.f32 %v1010, %v948
    %v1012 = vadd.f32 %v1011, %v949
    %v1013 = vadd.f32 %v1012, %v950
    %v1014 = vadd.f32 %v1013, %v951
    %v1015 = vadd.f32 %v1014, %v952
    %v1016 = vadd.f32 %v1015, %v953
    %v1017 = vadd.f32 %v1016, %v954
    %v1018 = vadd.f32 %v1017, %v955
    %v1019 = vadd.f32 %v1018, %v956
    %v1020 = vadd.f32 %v1019, %v957
    %v1021 = vadd.f32 %v1020, %v958
    %v1022 = vadd.f32 %v1021, %v959
    %v1023 = vadd.f32 %v1022, %v960
    %v1024 = vadd.f32 %v1023, %v961
    %v1025 = vadd.f32 %v1024, %v962
    %v1026 = vadd.f32 %v1025, %v963
    %v1027 = vadd.f32 %v1026, %v964
    %v1028 = vadd.f32 %v1027, %v965
    %v1029 = vadd.f32 %v1028, %v966
    %v1030 = vadd.f32 %v1029, %v967
    %v1031 = vadd.f32 %v1030, %v968
    %v1032 = vadd.f32 %v1031, %v969
    %v1033 = vadd.f32 %v1032, %v970
    %v1034 = vadd.f32 %v1033, %v971
    %v1035 = vadd.f32 %v1034, %v972
    %v1036 = vadd.f32 %v1035, %v973
    %v1037 = vadd.f32 %v1036, %v974
    %v1038 = vadd.f32 %v1037, %v975
    %v1039 = vadd.f32 %v1038, %v976
    %v1040 = vadd.f32 %v1039, %v977
    %v1041 = vadd.f32 %v1040, %v978
    %v1042 = vadd.f32 %v1041, %v979
    %v1043 = vadd.f32 %v1042, %v980
    %v1044 = vadd.f32 %v1043, %v981
    %v1045 = vadd.f32 %v1044, %v982
    %v1046 = vadd.f32 %v1045, %v983
    %v1047 = vadd.f32 %v1046, %v984
    %v1048 = vadd.f32 %v1047, %v985
    %v1049 = vrot.slane %v1048, 4
    %v1050 = vadd.f32 %v1048, %v1049
    %v1051 = vrot.slane %v1050, 2
    %v1052 = vadd.f32 %v1050, %v1051
    %v1053 = vrot.slane %v1052, 1
    %v1054 = vadd.f32 %v1052, %v1053
    %vm1055 = vcmask 1040384
    %v1056 = vsel %vm1055, %v921, %v1054
    %vm1057 = vcmask 1041408
    %v1058 = vsel %vm1057, %v1056, 0.0
    %1059 = vst [vmem:[#allocation2] sm:$0xff] %v1058
    // Predicated region
    $region18: #{dual_path_block_forward_nhwc.7} parent=1 // pred_check
      _
    $region19: #{dual_path_block_forward_nhwc.7} parent=1 // pred_check_branch
      %1061 = sbr.rel (0) target = $region21
    $region20: #{dual_path_block_forward_nhwc.7} parent=1 // pred_region
      _
    $region21: #{dual_path_block_forward_nhwc.7} parent=1 // pred_fallthru
      _
    // Predicated region
    $region22: #{dual_path_block_forward_nhwc.7} parent=1 // pred_check
      _
    $region23: #{dual_path_block_forward_nhwc.7} parent=1 // pred_check_branch
      %1063 = sbr.rel (0) target = $region25
    $region24: #{dual_path_block_forward_nhwc.7} parent=1 // pred_region
      %s1065 = ssub.s32 128, 128
      %1066 = vsyncadd [#allocation3], %s1065
      %s1068 = sshll.u32 [#allocation2], 4
      %s1069 = int_to_ptr.vmem [resolvable:$true] %s1068
      %1071 = dma.vmem_to_hbm [thread:$0]  %s1069, 128, %s5, [#allocation3]
    $region25: #{dual_path_block_forward_nhwc.7} parent=1 // pred_fallthru
      _
    // Predicated region
    $region26: #{dual_path_block_forward_nhwc.7} parent=1 // pred_check
      _
    $region27: #{dual_path_block_forward_nhwc.7} parent=1 // pred_check_branch
      %1073 = sbr.rel (0) target = $region29
    $region28: #{dual_path_block_forward_nhwc.7} parent=1 // pred_region
      _
    $region29: #{dual_path_block_forward_nhwc.7} parent=1 // pred_fallthru
      _
    // Predicated region
    $region30: #{dual_path_block_forward_nhwc.7} parent=1 // pred_check
      _
    $region31: #{dual_path_block_forward_nhwc.7} parent=1 // pred_check_branch
      %1075 = sbr.rel (0) target = $region33
    $region32: #{dual_path_block_forward_nhwc.7} parent=1 // pred_region
      %1076 = dma.done [#allocation3], 128
    $region33: #{dual_path_block_forward_nhwc.7} parent=1 // pred_fallthru
      _
    %1077 = vsyncpa [#allocation3], 1

// kernel: dual_path_block_forward_nhwc.4
$region0: #{dual_path_block_forward_nhwc.4}
  #allocation0 [shape = 'u32[]', space=smem, size = 0x4, offset = 0x4, fixed_abs, tag = 'smem constant byte address 0x4 - core index']
  #allocation1 [shape = 'u32[144,128]{1,0:T(1,128)}', space=vmem, size = 0x12000, scoped, tag = 'internal scratch']
  %s0 = inlined_call_operand.vmem [shape: f32[512,48], index: 0, kind: input, shape index: {}]
  %s1 = inlined_call_operand.vmem [shape: f32[1,48], index: 1, kind: input, shape index: {}]
  %s2 = inlined_call_operand.vmem [shape: f32[1,48], index: 2, kind: input, shape index: {}]
  %s3 = inlined_call_operand.vmem [shape: bf16[48,128], index: 3, kind: input, shape index: {}]
  %s4 = inlined_call_operand.vmem [shape: f32[512,128], index: 4, kind: output, shape index: {0}]
  %s5 = inlined_call_operand.hbm [shape: f32[1,8,128], index: 5, kind: output, shape index: {1}]
  %6 = xla_tuple %s4, %s5
  %s7 = sld [smem:[#allocation0]]
  $region34: #{dual_path_block_forward_nhwc.4} parent=0
    _
  %s9 = ssub.s32 1, %s7
  %s10 = scalar_select 0, %s9, %s7
  $region1: #{dual_path_block_forward_nhwc.4} parent=0
    #allocation2 [shape = 'u8[4096]{0}', space=vmem, size = 0x1000, scoped, tag = 'output window, operand 1, single buffered']
    #allocation3 [shape = 's32[1]{0}', space=sflag, size = 0x4, scoped, tag = 'scoped memory for dual_path_block_forward_nhwc.4']
    %11 = vsyncpa [#allocation3], 0
    // Predicated region
    $region2: #{dual_path_block_forward_nhwc.4} parent=1 // pred_check
      _
    $region3: #{dual_path_block_forward_nhwc.4} parent=1 // pred_check_branch
      %13 = sbr.rel (0) target = $region5
    $region4: #{dual_path_block_forward_nhwc.4} parent=1 // pred_region
      _
    $region5: #{dual_path_block_forward_nhwc.4} parent=1 // pred_fallthru
      _
    // Predicated region
    $region6: #{dual_path_block_forward_nhwc.4} parent=1 // pred_check
      _
    $region7: #{dual_path_block_forward_nhwc.4} parent=1 // pred_check_branch
      %15 = sbr.rel (0) target = $region9
    $region8: #{dual_path_block_forward_nhwc.4} parent=1 // pred_region
      _
    $region9: #{dual_path_block_forward_nhwc.4} parent=1 // pred_fallthru
      _
    // Predicated region
    $region10: #{dual_path_block_forward_nhwc.4} parent=1 // pred_check
      _
    $region11: #{dual_path_block_forward_nhwc.4} parent=1 // pred_check_branch
      %17 = sbr.rel (0) target = $region13
    $region12: #{dual_path_block_forward_nhwc.4} parent=1 // pred_region
      _
    $region13: #{dual_path_block_forward_nhwc.4} parent=1 // pred_fallthru
      _
    // Predicated region
    $region14: #{dual_path_block_forward_nhwc.4} parent=1 // pred_check
      _
    $region15: #{dual_path_block_forward_nhwc.4} parent=1 // pred_check_branch
      %19 = sbr.rel (0) target = $region17
    $region16: #{dual_path_block_forward_nhwc.4} parent=1 // pred_region
      _
    $region17: #{dual_path_block_forward_nhwc.4} parent=1 // pred_fallthru
      _
    %v21 = vld [vmem:[%s0] sm:$0xff]
    %v22 = vld [vmem:[%s0 + $0x8] sm:$0xff]
    %v23 = vld [vmem:[%s0 + $0x10] sm:$0xff]
    %v24 = vld [vmem:[%s0 + $0x18] sm:$0xff]
    %v25 = vld [vmem:[%s0 + $0x20] sm:$0xff]
    %v26 = vld [vmem:[%s0 + $0x28] sm:$0xff]
    %v27 = vld [vmem:[%s0 + $0x30] sm:$0xff]
    %v28 = vld [vmem:[%s0 + $0x38] sm:$0xff]
    %v29 = vld [vmem:[%s0 + $0x40] sm:$0xff]
    %v30 = vld [vmem:[%s0 + $0x48] sm:$0xff]
    %v31 = vld [vmem:[%s0 + $0x50] sm:$0xff]
    %v32 = vld [vmem:[%s0 + $0x58] sm:$0xff]
    %v33 = vld [vmem:[%s0 + $0x60] sm:$0xff]
    %v34 = vld [vmem:[%s0 + $0x68] sm:$0xff]
    %v35 = vld [vmem:[%s0 + $0x70] sm:$0xff]
    %v36 = vld [vmem:[%s0 + $0x78] sm:$0xff]
    %v37 = vld [vmem:[%s0 + $0x80] sm:$0xff]
    %v38 = vld [vmem:[%s0 + $0x88] sm:$0xff]
    %v39 = vld [vmem:[%s0 + $0x90] sm:$0xff]
    %v40 = vld [vmem:[%s0 + $0x98] sm:$0xff]
    %v41 = vld [vmem:[%s0 + $0xa0] sm:$0xff]
    %v42 = vld [vmem:[%s0 + $0xa8] sm:$0xff]
    %v43 = vld [vmem:[%s0 + $0xb0] sm:$0xff]
    %v44 = vld [vmem:[%s0 + $0xb8] sm:$0xff]
    %v45 = vld [vmem:[%s0 + $0xc0] sm:$0xff]
    %v46 = vld [vmem:[%s0 + $0xc8] sm:$0xff]
    %v47 = vld [vmem:[%s0 + $0xd0] sm:$0xff]
    %v48 = vld [vmem:[%s0 + $0xd8] sm:$0xff]
    %v49 = vld [vmem:[%s0 + $0xe0] sm:$0xff]
    %v50 = vld [vmem:[%s0 + $0xe8] sm:$0xff]
    %v51 = vld [vmem:[%s0 + $0xf0] sm:$0xff]
    %v52 = vld [vmem:[%s0 + $0xf8] sm:$0xff]
    %v53 = vld [vmem:[%s0 + $0x100] sm:$0xff]
    %v54 = vld [vmem:[%s0 + $0x108] sm:$0xff]
    %v55 = vld [vmem:[%s0 + $0x110] sm:$0xff]
    %v56 = vld [vmem:[%s0 + $0x118] sm:$0xff]
    %v57 = vld [vmem:[%s0 + $0x120] sm:$0xff]
    %v58 = vld [vmem:[%s0 + $0x128] sm:$0xff]
    %v59 = vld [vmem:[%s0 + $0x130] sm:$0xff]
    %v60 = vld [vmem:[%s0 + $0x138] sm:$0xff]
    %v61 = vld [vmem:[%s0 + $0x140] sm:$0xff]
    %v62 = vld [vmem:[%s0 + $0x148] sm:$0xff]
    %v63 = vld [vmem:[%s0 + $0x150] sm:$0xff]
    %v64 = vld [vmem:[%s0 + $0x158] sm:$0xff]
    %v65 = vld [vmem:[%s0 + $0x160] sm:$0xff]
    %v66 = vld [vmem:[%s0 + $0x168] sm:$0xff]
    %v67 = vld [vmem:[%s0 + $0x170] sm:$0xff]
    %v68 = vld [vmem:[%s0 + $0x178] sm:$0xff]
    %v69 = vld [vmem:[%s0 + $0x180] sm:$0xff]
    %v70 = vld [vmem:[%s0 + $0x188] sm:$0xff]
    %v71 = vld [vmem:[%s0 + $0x190] sm:$0xff]
    %v72 = vld [vmem:[%s0 + $0x198] sm:$0xff]
    %v73 = vld [vmem:[%s0 + $0x1a0] sm:$0xff]
    %v74 = vld [vmem:[%s0 + $0x1a8] sm:$0xff]
    %v75 = vld [vmem:[%s0 + $0x1b0] sm:$0xff]
    %v76 = vld [vmem:[%s0 + $0x1b8] sm:$0xff]
    %v77 = vld [vmem:[%s0 + $0x1c0] sm:$0xff]
    %v78 = vld [vmem:[%s0 + $0x1c8] sm:$0xff]
    %v79 = vld [vmem:[%s0 + $0x1d0] sm:$0xff]
    %v80 = vld [vmem:[%s0 + $0x1d8] sm:$0xff]
    %v81 = vld [vmem:[%s0 + $0x1e0] sm:$0xff]
    %v82 = vld [vmem:[%s0 + $0x1e8] sm:$0xff]
    %v83 = vld [vmem:[%s0 + $0x1f0] sm:$0xff]
    %v84 = vld [vmem:[%s0 + $0x1f8] sm:$0xff]
    %v85 = vld [vmem:[%s1] sm:$0x1]
    %v87 = vlaneseq
    %v88 = vshrl.u32 %v87, 7
    %v89 = vsub.s32 0, %v88
    %v90 = vrot.slane %v85, %v89
    %v92 = vmul.f32 %v21, %v90
    %v93 = vmul.f32 %v22, %v90
    %v94 = vmul.f32 %v23, %v90
    %v95 = vmul.f32 %v24, %v90
    %v96 = vmul.f32 %v25, %v90
    %v97 = vmul.f32 %v26, %v90
    %v98 = vmul.f32 %v27, %v90
    %v99 = vmul.f32 %v28, %v90
    %v100 = vmul.f32 %v29, %v90
    %v101 = vmul.f32 %v30, %v90
    %v102 = vmul.f32 %v31, %v90
    %v103 = vmul.f32 %v32, %v90
    %v104 = vmul.f32 %v33, %v90
    %v105 = vmul.f32 %v34, %v90
    %v106 = vmul.f32 %v35, %v90
    %v107 = vmul.f32 %v36, %v90
    %v108 = vmul.f32 %v37, %v90
    %v109 = vmul.f32 %v38, %v90
    %v110 = vmul.f32 %v39, %v90
    %v111 = vmul.f32 %v40, %v90
    %v112 = vmul.f32 %v41, %v90
    %v113 = vmul.f32 %v42, %v90
    %v114 = vmul.f32 %v43, %v90
    %v115 = vmul.f32 %v44, %v90
    %v116 = vmul.f32 %v45, %v90
    %v117 = vmul.f32 %v46, %v90
    %v118 = vmul.f32 %v47, %v90
    %v119 = vmul.f32 %v48, %v90
    %v120 = vmul.f32 %v49, %v90
    %v121 = vmul.f32 %v50, %v90
    %v122 = vmul.f32 %v51, %v90
    %v123 = vmul.f32 %v52, %v90
    %v124 = vmul.f32 %v53, %v90
    %v125 = vmul.f32 %v54, %v90
    %v126 = vmul.f32 %v55, %v90
    %v127 = vmul.f32 %v56, %v90
    %v128 = vmul.f32 %v57, %v90
    %v129 = vmul.f32 %v58, %v90
    %v130 = vmul.f32 %v59, %v90
    %v131 = vmul.f32 %v60, %v90
    %v132 = vmul.f32 %v61, %v90
    %v133 = vmul.f32 %v62, %v90
    %v134 = vmul.f32 %v63, %v90
    %v135 = vmul.f32 %v64, %v90
    %v136 = vmul.f32 %v65, %v90
    %v137 = vmul.f32 %v66, %v90
    %v138 = vmul.f32 %v67, %v90
    %v139 = vmul.f32 %v68, %v90
    %v140 = vmul.f32 %v69, %v90
    %v141 = vmul.f32 %v70, %v90
    %v142 = vmul.f32 %v71, %v90
    %v143 = vmul.f32 %v72, %v90
    %v144 = vmul.f32 %v73, %v90
    %v145 = vmul.f32 %v74, %v90
    %v146 = vmul.f32 %v75, %v90
    %v147 = vmul.f32 %v76, %v90
    %v148 = vmul.f32 %v77, %v90
    %v149 = vmul.f32 %v78, %v90
    %v150 = vmul.f32 %v79, %v90
    %v151 = vmul.f32 %v80, %v90
    %v152 = vmul.f32 %v81, %v90
    %v153 = vmul.f32 %v82, %v90
    %v154 = vmul.f32 %v83, %v90
    %v155 = vmul.f32 %v84, %v90
    %v156 = vld [vmem:[%s2] sm:$0x1]
    %v158 = vlaneseq
    %v159 = vshrl.u32 %v158, 7
    %v160 = vsub.s32 0, %v159
    %v161 = vrot.slane %v156, %v160
    %v163 = vadd.f32 %v92, %v161
    %v164 = vadd.f32 %v93, %v161
    %v165 = vadd.f32 %v94, %v161
    %v166 = vadd.f32 %v95, %v161
    %v167 = vadd.f32 %v96, %v161
    %v168 = vadd.f32 %v97, %v161
    %v169 = vadd.f32 %v98, %v161
    %v170 = vadd.f32 %v99, %v161
    %v171 = vadd.f32 %v100, %v161
    %v172 = vadd.f32 %v101, %v161
    %v173 = vadd.f32 %v102, %v161
    %v174 = vadd.f32 %v103, %v161
    %v175 = vadd.f32 %v104, %v161
    %v176 = vadd.f32 %v105, %v161
    %v177 = vadd.f32 %v106, %v161
    %v178 = vadd.f32 %v107, %v161
    %v179 = vadd.f32 %v108, %v161
    %v180 = vadd.f32 %v109, %v161
    %v181 = vadd.f32 %v110, %v161
    %v182 = vadd.f32 %v111, %v161
    %v183 = vadd.f32 %v112, %v161
    %v184 = vadd.f32 %v113, %v161
    %v185 = vadd.f32 %v114, %v161
    %v186 = vadd.f32 %v115, %v161
    %v187 = vadd.f32 %v116, %v161
    %v188 = vadd.f32 %v117, %v161
    %v189 = vadd.f32 %v118, %v161
    %v190 = vadd.f32 %v119, %v161
    %v191 = vadd.f32 %v120, %v161
    %v192 = vadd.f32 %v121, %v161
    %v193 = vadd.f32 %v122, %v161
    %v194 = vadd.f32 %v123, %v161
    %v195 = vadd.f32 %v124, %v161
    %v196 = vadd.f32 %v125, %v161
    %v197 = vadd.f32 %v126, %v161
    %v198 = vadd.f32 %v127, %v161
    %v199 = vadd.f32 %v128, %v161
    %v200 = vadd.f32 %v129, %v161
    %v201 = vadd.f32 %v130, %v161
    %v202 = vadd.f32 %v131, %v161
    %v203 = vadd.f32 %v132, %v161
    %v204 = vadd.f32 %v133, %v161
    %v205 = vadd.f32 %v134, %v161
    %v206 = vadd.f32 %v135, %v161
    %v207 = vadd.f32 %v136, %v161
    %v208 = vadd.f32 %v137, %v161
    %v209 = vadd.f32 %v138, %v161
    %v210 = vadd.f32 %v139, %v161
    %v211 = vadd.f32 %v140, %v161
    %v212 = vadd.f32 %v141, %v161
    %v213 = vadd.f32 %v142, %v161
    %v214 = vadd.f32 %v143, %v161
    %v215 = vadd.f32 %v144, %v161
    %v216 = vadd.f32 %v145, %v161
    %v217 = vadd.f32 %v146, %v161
    %v218 = vadd.f32 %v147, %v161
    %v219 = vadd.f32 %v148, %v161
    %v220 = vadd.f32 %v149, %v161
    %v221 = vadd.f32 %v150, %v161
    %v222 = vadd.f32 %v151, %v161
    %v223 = vadd.f32 %v152, %v161
    %v224 = vadd.f32 %v153, %v161
    %v225 = vadd.f32 %v154, %v161
    %v226 = vadd.f32 %v155, %v161
    %v227 = vmax.f32 %v163, 0.0
    %v228 = vmax.f32 %v164, 0.0
    %v229 = vmax.f32 %v165, 0.0
    %v230 = vmax.f32 %v166, 0.0
    %v231 = vmax.f32 %v167, 0.0
    %v232 = vmax.f32 %v168, 0.0
    %v233 = vmax.f32 %v169, 0.0
    %v234 = vmax.f32 %v170, 0.0
    %v235 = vmax.f32 %v171, 0.0
    %v236 = vmax.f32 %v172, 0.0
    %v237 = vmax.f32 %v173, 0.0
    %v238 = vmax.f32 %v174, 0.0
    %v239 = vmax.f32 %v175, 0.0
    %v240 = vmax.f32 %v176, 0.0
    %v241 = vmax.f32 %v177, 0.0
    %v242 = vmax.f32 %v178, 0.0
    %v243 = vmax.f32 %v179, 0.0
    %v244 = vmax.f32 %v180, 0.0
    %v245 = vmax.f32 %v181, 0.0
    %v246 = vmax.f32 %v182, 0.0
    %v247 = vmax.f32 %v183, 0.0
    %v248 = vmax.f32 %v184, 0.0
    %v249 = vmax.f32 %v185, 0.0
    %v250 = vmax.f32 %v186, 0.0
    %v251 = vmax.f32 %v187, 0.0
    %v252 = vmax.f32 %v188, 0.0
    %v253 = vmax.f32 %v189, 0.0
    %v254 = vmax.f32 %v190, 0.0
    %v255 = vmax.f32 %v191, 0.0
    %v256 = vmax.f32 %v192, 0.0
    %v257 = vmax.f32 %v193, 0.0
    %v258 = vmax.f32 %v194, 0.0
    %v259 = vmax.f32 %v195, 0.0
    %v260 = vmax.f32 %v196, 0.0
    %v261 = vmax.f32 %v197, 0.0
    %v262 = vmax.f32 %v198, 0.0
    %v263 = vmax.f32 %v199, 0.0
    %v264 = vmax.f32 %v200, 0.0
    %v265 = vmax.f32 %v201, 0.0
    %v266 = vmax.f32 %v202, 0.0
    %v267 = vmax.f32 %v203, 0.0
    %v268 = vmax.f32 %v204, 0.0
    %v269 = vmax.f32 %v205, 0.0
    %v270 = vmax.f32 %v206, 0.0
    %v271 = vmax.f32 %v207, 0.0
    %v272 = vmax.f32 %v208, 0.0
    %v273 = vmax.f32 %v209, 0.0
    %v274 = vmax.f32 %v210, 0.0
    %v275 = vmax.f32 %v211, 0.0
    %v276 = vmax.f32 %v212, 0.0
    %v277 = vmax.f32 %v213, 0.0
    %v278 = vmax.f32 %v214, 0.0
    %v279 = vmax.f32 %v215, 0.0
    %v280 = vmax.f32 %v216, 0.0
    %v281 = vmax.f32 %v217, 0.0
    %v282 = vmax.f32 %v218, 0.0
    %v283 = vmax.f32 %v219, 0.0
    %v284 = vmax.f32 %v220, 0.0
    %v285 = vmax.f32 %v221, 0.0
    %v286 = vmax.f32 %v222, 0.0
    %v287 = vmax.f32 %v223, 0.0
    %v288 = vmax.f32 %v224, 0.0
    %v289 = vmax.f32 %v225, 0.0
    %v290 = vmax.f32 %v226, 0.0
    %v291 = vpack.c.bf16 %v228, %v227
    %v292 = vpack.c.bf16 %v230, %v229
    %v293 = vpack.c.bf16 %v232, %v231
    %v294 = vpack.c.bf16 %v234, %v233
    %v295 = vpack.c.bf16 %v236, %v235
    %v296 = vpack.c.bf16 %v238, %v237
    %v297 = vpack.c.bf16 %v240, %v239
    %v298 = vpack.c.bf16 %v242, %v241
    %v299 = vpack.c.bf16 %v244, %v243
    %v300 = vpack.c.bf16 %v246, %v245
    %v301 = vpack.c.bf16 %v248, %v247
    %v302 = vpack.c.bf16 %v250, %v249
    %v303 = vpack.c.bf16 %v252, %v251
    %v304 = vpack.c.bf16 %v254, %v253
    %v305 = vpack.c.bf16 %v256, %v255
    %v306 = vpack.c.bf16 %v258, %v257
    %v307 = vpack.c.bf16 %v260, %v259
    %v308 = vpack.c.bf16 %v262, %v261
    %v309 = vpack.c.bf16 %v264, %v263
    %v310 = vpack.c.bf16 %v266, %v265
    %v311 = vpack.c.bf16 %v268, %v267
    %v312 = vpack.c.bf16 %v270, %v269
    %v313 = vpack.c.bf16 %v272, %v271
    %v314 = vpack.c.bf16 %v274, %v273
    %v315 = vpack.c.bf16 %v276, %v275
    %v316 = vpack.c.bf16 %v278, %v277
    %v317 = vpack.c.bf16 %v280, %v279
    %v318 = vpack.c.bf16 %v282, %v281
    %v319 = vpack.c.bf16 %v284, %v283
    %v320 = vpack.c.bf16 %v286, %v285
    %v321 = vpack.c.bf16 %v288, %v287
    %v322 = vpack.c.bf16 %v290, %v289
    %v323 = vld [vmem:[%s3] sm:$0xf]
    %v324 = vld [vmem:[%s3 + $0x4] sm:$0xf]
    %v325 = vld [vmem:[%s3 + $0x8] sm:$0xf]
    %v326 = vld [vmem:[%s3 + $0xc] sm:$0xf]
    %v327 = vld [vmem:[%s3 + $0x10] sm:$0xf]
    %v328 = vld [vmem:[%s3 + $0x14] sm:$0xf]
    %v335 = vunpack.c.l.b16 %v323
    %v336 = vunpack.c.l.b16 %v324
    %v337 = vunpack.c.l.b16 %v325
    %v338 = vunpack.c.l.b16 %v326
    %v339 = vunpack.c.l.b16 %v327
    %v340 = vunpack.c.l.b16 %v328
    %v341 = vpack.c.b16 %v336, %v335
    %v342 = vpack.c.b16 %v338, %v337
    %v343 = vpack.c.b16 %v340, %v339
    %vm347 = vcmask 392192
    %v349 = vsel %vm347, %v291, 0
    %v352 = vsel %vm347, %v292, 0
    %v355 = vsel %vm347, %v293, 0
    %v358 = vsel %vm347, %v294, 0
    %v361 = vsel %vm347, %v295, 0
    %v364 = vsel %vm347, %v296, 0
    %v367 = vsel %vm347, %v297, 0
    %v370 = vsel %vm347, %v298, 0
    %v373 = vsel %vm347, %v299, 0
    %v376 = vsel %vm347, %v300, 0
    %v379 = vsel %vm347, %v301, 0
    %v382 = vsel %vm347, %v302, 0
    %v385 = vsel %vm347, %v303, 0
    %v388 = vsel %vm347, %v304, 0
    %v391 = vsel %vm347, %v305, 0
    %v394 = vsel %vm347, %v306, 0
    %v397 = vsel %vm347, %v307, 0
    %v400 = vsel %vm347, %v308, 0
    %v403 = vsel %vm347, %v309, 0
    %v406 = vsel %vm347, %v310, 0
    %v409 = vsel %vm347, %v311, 0
    %v412 = vsel %vm347, %v312, 0
    %v415 = vsel %vm347, %v313, 0
    %v418 = vsel %vm347, %v314, 0
    %v421 = vsel %vm347, %v315, 0
    %v424 = vsel %vm347, %v316, 0
    %v427 = vsel %vm347, %v317, 0
    %v430 = vsel %vm347, %v318, 0
    %v433 = vsel %vm347, %v319, 0
    %v436 = vsel %vm347, %v320, 0
    %v439 = vsel %vm347, %v321, 0
    %v442 = vsel %vm347, %v322, 0
    %444 = vmatprep.subr.bf16.mxu0 0
    %445 = vmatpush1.bf16.msra.mxu0 %v341
    %446 = vmatprep.subr.bf16.mxu0 0
    %447 = vmatpush1.bf16.msra.mxu0 %v342
    %448 = vmatprep.subr.bf16.mxu0 0
    %449 = vmatpush1.bf16.msra.mxu0 %v343
    %450 = vmatprep.subr.bf16.mxu0 0
    %451 = vmatpush1.bf16.msra.mxu0 0
    %452 = vmatprep.subr.bf16.mxu0 0
    %453 = vmatpush1.bf16.msra.mxu0 0
    %454 = vmatprep.subr.bf16.mxu0 0
    %455 = vmatpush1.bf16.msra.mxu0 0
    %456 = vmatprep.subr.bf16.mxu0 0
    %457 = vmatpush1.bf16.msra.mxu0 0
    %458 = vmatprep.subr.bf16.mxu0 0
    %459 = vmatpush1.bf16.msra.mxu0 0
    %460 = vmatprep.subr.bf16.mxu0 0
    %461 = vmatpush1.bf16.msra.mxu0 0
    %462 = vmatprep.subr.bf16.mxu0 0
    %463 = vmatpush1.bf16.msra.mxu0 0
    %464 = vmatprep.subr.bf16.mxu0 0
    %465 = vmatpush1.bf16.msra.mxu0 0
    %466 = vmatprep.subr.bf16.mxu0 0
    %467 = vmatpush1.bf16.msra.mxu0 0
    %468 = vmatprep.subr.bf16.mxu0 0
    %469 = vmatpush1.bf16.msra.mxu0 0
    %470 = vmatprep.subr.bf16.mxu0 0
    %471 = vmatpush1.bf16.msra.mxu0 0
    %472 = vmatprep.subr.bf16.mxu0 0
    %473 = vmatpush1.bf16.msra.mxu0 0
    %474 = vmatprep.subr.bf16.mxu0 0
    %475 = vmatpush1.bf16.msra.mxu0 0
    %476 = vmatprep.mubr.bf16.mxu0 0
    %477 = vmatmul.mubr.bf16.gmra.mrb[0].mxu0 %v349
    %v478 = vpop.f32.mrb[0].mxu0
    %v479 = vadd.f32 0.0, %v478
    %v480 = vpop.f32.mrb[0].mxu0
    %v481 = vpop.f32.mrb[0].mxu0
    %v482 = vadd.f32 0.0, %v481
    %v483 = vpop.f32.mrb[0].mxu0
    %484 = vmatprep.mubr.bf16.mxu0 0
    %485 = vmatmul.mubr.bf16.gmra.mrb[0].mxu0 %v352
    %v486 = vpop.f32.mrb[0].mxu0
    %v487 = vadd.f32 0.0, %v486
    %v488 = vpop.f32.mrb[0].mxu0
    %v489 = vpop.f32.mrb[0].mxu0
    %v490 = vadd.f32 0.0, %v489
    %v491 = vpop.f32.mrb[0].mxu0
    %492 = vmatprep.mubr.bf16.mxu0 0
    %493 = vmatmul.mubr.bf16.gmra.mrb[0].mxu0 %v355
    %v494 = vpop.f32.mrb[0].mxu0
    %v495 = vadd.f32 0.0, %v494
    %v496 = vpop.f32.mrb[0].mxu0
    %v497 = vpop.f32.mrb[0].mxu0
    %v498 = vadd.f32 0.0, %v497
    %v499 = vpop.f32.mrb[0].mxu0
    %500 = vmatprep.mubr.bf16.mxu0 0
    %501 = vmatmul.mubr.bf16.gmra.mrb[0].mxu0 %v358
    %v502 = vpop.f32.mrb[0].mxu0
    %v503 = vadd.f32 0.0, %v502
    %v504 = vpop.f32.mrb[0].mxu0
    %v505 = vpop.f32.mrb[0].mxu0
    %v506 = vadd.f32 0.0, %v505
    %v507 = vpop.f32.mrb[0].mxu0
    %508 = vmatprep.mubr.bf16.mxu0 0
    %509 = vmatmul.mubr.bf16.gmra.mrb[0].mxu0 %v361
    %v510 = vpop.f32.mrb[0].mxu0
    %v511 = vadd.f32 0.0, %v510
    %v512 = vpop.f32.mrb[0].mxu0
    %v513 = vpop.f32.mrb[0].mxu0
    %v514 = vadd.f32 0.0, %v513
    %v515 = vpop.f32.mrb[0].mxu0
    %516 = vmatprep.mubr.bf16.mxu0 0
    %517 = vmatmul.mubr.bf16.gmra.mrb[0].mxu0 %v364
    %v518 = vpop.f32.mrb[0].mxu0
    %v519 = vadd.f32 0.0, %v518
    %v520 = vpop.f32.mrb[0].mxu0
    %v521 = vpop.f32.mrb[0].mxu0
    %v522 = vadd.f32 0.0, %v521
    %v523 = vpop.f32.mrb[0].mxu0
    %524 = vmatprep.mubr.bf16.mxu0 0
    %525 = vmatmul.mubr.bf16.gmra.mrb[0].mxu0 %v367
    %v526 = vpop.f32.mrb[0].mxu0
    %v527 = vadd.f32 0.0, %v526
    %v528 = vpop.f32.mrb[0].mxu0
    %v529 = vpop.f32.mrb[0].mxu0
    %v530 = vadd.f32 0.0, %v529
    %v531 = vpop.f32.mrb[0].mxu0
    %532 = vmatprep.mubr.bf16.mxu0 0
    %533 = vmatmul.mubr.bf16.gmra.mrb[0].mxu0 %v370
    %v534 = vpop.f32.mrb[0].mxu0
    %v535 = vadd.f32 0.0, %v534
    %v536 = vpop.f32.mrb[0].mxu0
    %v537 = vpop.f32.mrb[0].mxu0
    %v538 = vadd.f32 0.0, %v537
    %v539 = vpop.f32.mrb[0].mxu0
    %540 = vmatprep.mubr.bf16.mxu0 0
    %541 = vmatmul.mubr.bf16.gmra.mrb[0].mxu0 %v373
    %v542 = vpop.f32.mrb[0].mxu0
    %v543 = vadd.f32 0.0, %v542
    %v544 = vpop.f32.mrb[0].mxu0
    %v545 = vpop.f32.mrb[0].mxu0
    %v546 = vadd.f32 0.0, %v545
    %v547 = vpop.f32.mrb[0].mxu0
    %548 = vmatprep.mubr.bf16.mxu0 0
    %549 = vmatmul.mubr.bf16.gmra.mrb[0].mxu0 %v376
    %v550 = vpop.f32.mrb[0].mxu0
    %v551 = vadd.f32 0.0, %v550
    %v552 = vpop.f32.mrb[0].mxu0
    %v553 = vpop.f32.mrb[0].mxu0
    %v554 = vadd.f32 0.0, %v553
    %v555 = vpop.f32.mrb[0].mxu0
    %556 = vmatprep.mubr.bf16.mxu0 0
    %557 = vmatmul.mubr.bf16.gmra.mrb[0].mxu0 %v379
    %v558 = vpop.f32.mrb[0].mxu0
    %v559 = vadd.f32 0.0, %v558
    %v560 = vpop.f32.mrb[0].mxu0
    %v561 = vpop.f32.mrb[0].mxu0
    %v562 = vadd.f32 0.0, %v561
    %v563 = vpop.f32.mrb[0].mxu0
    %564 = vmatprep.mubr.bf16.mxu0 0
    %565 = vmatmul.mubr.bf16.gmra.mrb[0].mxu0 %v382
    %v566 = vpop.f32.mrb[0].mxu0
    %v567 = vadd.f32 0.0, %v566
    %v568 = vpop.f32.mrb[0].mxu0
    %v569 = vpop.f32.mrb[0].mxu0
    %v570 = vadd.f32 0.0, %v569
    %v571 = vpop.f32.mrb[0].mxu0
    %572 = vmatprep.mubr.bf16.mxu0 0
    %573 = vmatmul.mubr.bf16.gmra.mrb[0].mxu0 %v385
    %v574 = vpop.f32.mrb[0].mxu0
    %v575 = vadd.f32 0.0, %v574
    %v576 = vpop.f32.mrb[0].mxu0
    %v577 = vpop.f32.mrb[0].mxu0
    %v578 = vadd.f32 0.0, %v577
    %v579 = vpop.f32.mrb[0].mxu0
    %580 = vmatprep.mubr.bf16.mxu0 0
    %581 = vmatmul.mubr.bf16.gmra.mrb[0].mxu0 %v388
    %v582 = vpop.f32.mrb[0].mxu0
    %v583 = vadd.f32 0.0, %v582
    %v584 = vpop.f32.mrb[0].mxu0
    %v585 = vpop.f32.mrb[0].mxu0
    %v586 = vadd.f32 0.0, %v585
    %v587 = vpop.f32.mrb[0].mxu0
    %588 = vmatprep.mubr.bf16.mxu0 0
    %589 = vmatmul.mubr.bf16.gmra.mrb[0].mxu0 %v391
    %v590 = vpop.f32.mrb[0].mxu0
    %v591 = vadd.f32 0.0, %v590
    %v592 = vpop.f32.mrb[0].mxu0
    %v593 = vpop.f32.mrb[0].mxu0
    %v594 = vadd.f32 0.0, %v593
    %v595 = vpop.f32.mrb[0].mxu0
    %596 = vmatprep.mubr.bf16.mxu0 0
    %597 = vmatmul.mubr.bf16.gmra.mrb[0].mxu0 %v394
    %v598 = vpop.f32.mrb[0].mxu0
    %v599 = vadd.f32 0.0, %v598
    %v600 = vpop.f32.mrb[0].mxu0
    %v601 = vpop.f32.mrb[0].mxu0
    %v602 = vadd.f32 0.0, %v601
    %v603 = vpop.f32.mrb[0].mxu0
    %604 = vmatprep.mubr.bf16.mxu0 0
    %605 = vmatmul.mubr.bf16.gmra.mrb[0].mxu0 %v397
    %v606 = vpop.f32.mrb[0].mxu0
    %v607 = vadd.f32 0.0, %v606
    %v608 = vpop.f32.mrb[0].mxu0
    %v609 = vpop.f32.mrb[0].mxu0
    %v610 = vadd.f32 0.0, %v609
    %v611 = vpop.f32.mrb[0].mxu0
    %612 = vmatprep.mubr.bf16.mxu0 0
    %613 = vmatmul.mubr.bf16.gmra.mrb[0].mxu0 %v400
    %v614 = vpop.f32.mrb[0].mxu0
    %v615 = vadd.f32 0.0, %v614
    %v616 = vpop.f32.mrb[0].mxu0
    %v617 = vpop.f32.mrb[0].mxu0
    %v618 = vadd.f32 0.0, %v617
    %v619 = vpop.f32.mrb[0].mxu0
    %620 = vmatprep.mubr.bf16.mxu0 0
    %621 = vmatmul.mubr.bf16.gmra.mrb[0].mxu0 %v403
    %v622 = vpop.f32.mrb[0].mxu0
    %v623 = vadd.f32 0.0, %v622
    %v624 = vpop.f32.mrb[0].mxu0
    %v625 = vpop.f32.mrb[0].mxu0
    %v626 = vadd.f32 0.0, %v625
    %v627 = vpop.f32.mrb[0].mxu0
    %628 = vmatprep.mubr.bf16.mxu0 0
    %629 = vmatmul.mubr.bf16.gmra.mrb[0].mxu0 %v406
    %v630 = vpop.f32.mrb[0].mxu0
    %v631 = vadd.f32 0.0, %v630
    %v632 = vpop.f32.mrb[0].mxu0
    %v633 = vpop.f32.mrb[0].mxu0
    %v634 = vadd.f32 0.0, %v633
    %v635 = vpop.f32.mrb[0].mxu0
    %636 = vmatprep.mubr.bf16.mxu0 0
    %637 = vmatmul.mubr.bf16.gmra.mrb[0].mxu0 %v409
    %v638 = vpop.f32.mrb[0].mxu0
    %v639 = vadd.f32 0.0, %v638
    %v640 = vpop.f32.mrb[0].mxu0
    %v641 = vpop.f32.mrb[0].mxu0
    %v642 = vadd.f32 0.0, %v641
    %v643 = vpop.f32.mrb[0].mxu0
    %644 = vmatprep.mubr.bf16.mxu0 0
    %645 = vmatmul.mubr.bf16.gmra.mrb[0].mxu0 %v412
    %v646 = vpop.f32.mrb[0].mxu0
    %v647 = vadd.f32 0.0, %v646
    %v648 = vpop.f32.mrb[0].mxu0
    %v649 = vpop.f32.mrb[0].mxu0
    %v650 = vadd.f32 0.0, %v649
    %v651 = vpop.f32.mrb[0].mxu0
    %652 = vmatprep.mubr.bf16.mxu0 0
    %653 = vmatmul.mubr.bf16.gmra.mrb[0].mxu0 %v415
    %v654 = vpop.f32.mrb[0].mxu0
    %v655 = vadd.f32 0.0, %v654
    %v656 = vpop.f32.mrb[0].mxu0
    %v657 = vpop.f32.mrb[0].mxu0
    %v658 = vadd.f32 0.0, %v657
    %v659 = vpop.f32.mrb[0].mxu0
    %660 = vmatprep.mubr.bf16.mxu0 0
    %661 = vmatmul.mubr.bf16.gmra.mrb[0].mxu0 %v418
    %v662 = vpop.f32.mrb[0].mxu0
    %v663 = vadd.f32 0.0, %v662
    %v664 = vpop.f32.mrb[0].mxu0
    %v665 = vpop.f32.mrb[0].mxu0
    %v666 = vadd.f32 0.0, %v665
    %v667 = vpop.f32.mrb[0].mxu0
    %668 = vmatprep.mubr.bf16.mxu0 0
    %669 = vmatmul.mubr.bf16.gmra.mrb[0].mxu0 %v421
    %v670 = vpop.f32.mrb[0].mxu0
    %v671 = vadd.f32 0.0, %v670
    %v672 = vpop.f32.mrb[0].mxu0
    %v673 = vpop.f32.mrb[0].mxu0
    %v674 = vadd.f32 0.0, %v673
    %v675 = vpop.f32.mrb[0].mxu0
    %676 = vmatprep.mubr.bf16.mxu0 0
    %677 = vmatmul.mubr.bf16.gmra.mrb[0].mxu0 %v424
    %v678 = vpop.f32.mrb[0].mxu0
    %v679 = vadd.f32 0.0, %v678
    %v680 = vpop.f32.mrb[0].mxu0
    %v681 = vpop.f32.mrb[0].mxu0
    %v682 = vadd.f32 0.0, %v681
    %v683 = vpop.f32.mrb[0].mxu0
    %684 = vmatprep.mubr.bf16.mxu0 0
    %685 = vmatmul.mubr.bf16.gmra.mrb[0].mxu0 %v427
    %v686 = vpop.f32.mrb[0].mxu0
    %v687 = vadd.f32 0.0, %v686
    %v688 = vpop.f32.mrb[0].mxu0
    %v689 = vpop.f32.mrb[0].mxu0
    %v690 = vadd.f32 0.0, %v689
    %v691 = vpop.f32.mrb[0].mxu0
    %692 = vmatprep.mubr.bf16.mxu0 0
    %693 = vmatmul.mubr.bf16.gmra.mrb[0].mxu0 %v430
    %v694 = vpop.f32.mrb[0].mxu0
    %v695 = vadd.f32 0.0, %v694
    %v696 = vpop.f32.mrb[0].mxu0
    %v697 = vpop.f32.mrb[0].mxu0
    %v698 = vadd.f32 0.0, %v697
    %v699 = vpop.f32.mrb[0].mxu0
    %700 = vmatprep.mubr.bf16.mxu0 0
    %701 = vmatmul.mubr.bf16.gmra.mrb[0].mxu0 %v433
    %v702 = vpop.f32.mrb[0].mxu0
    %v703 = vadd.f32 0.0, %v702
    %v704 = vpop.f32.mrb[0].mxu0
    %v705 = vpop.f32.mrb[0].mxu0
    %v706 = vadd.f32 0.0, %v705
    %v707 = vpop.f32.mrb[0].mxu0
    %708 = vmatprep.mubr.bf16.mxu0 0
    %709 = vmatmul.mubr.bf16.gmra.mrb[0].mxu0 %v436
    %v710 = vpop.f32.mrb[0].mxu0
    %v711 = vadd.f32 0.0, %v710
    %v712 = vpop.f32.mrb[0].mxu0
    %v713 = vpop.f32.mrb[0].mxu0
    %v714 = vadd.f32 0.0, %v713
    %v715 = vpop.f32.mrb[0].mxu0
    %716 = vmatprep.mubr.bf16.mxu0 0
    %717 = vmatmul.mubr.bf16.gmra.mrb[0].mxu0 %v439
    %v718 = vpop.f32.mrb[0].mxu0
    %v719 = vadd.f32 0.0, %v718
    %v720 = vpop.f32.mrb[0].mxu0
    %v721 = vpop.f32.mrb[0].mxu0
    %v722 = vadd.f32 0.0, %v721
    %v723 = vpop.f32.mrb[0].mxu0
    %724 = vmatprep.mubr.bf16.mxu0 0
    %725 = vmatmul.mubr.bf16.gmra.mrb[0].mxu0 %v442
    %v726 = vpop.f32.mrb[0].mxu0
    %v727 = vadd.f32 0.0, %v726
    %v728 = vpop.f32.mrb[0].mxu0
    %v729 = vpop.f32.mrb[0].mxu0
    %v730 = vadd.f32 0.0, %v729
    %v731 = vpop.f32.mrb[0].mxu0
    %732 = vdwg.mxu0
    %733 = vst [vmem:[%s4] sm:$0xff] %v479
    %734 = vst [vmem:[%s4 + $0x8] sm:$0xff] %v482
    %735 = vst [vmem:[%s4 + $0x10] sm:$0xff] %v487
    %736 = vst [vmem:[%s4 + $0x18] sm:$0xff] %v490
    %737 = vst [vmem:[%s4 + $0x20] sm:$0xff] %v495
    %738 = vst [vmem:[%s4 + $0x28] sm:$0xff] %v498
    %739 = vst [vmem:[%s4 + $0x30] sm:$0xff] %v503
    %740 = vst [vmem:[%s4 + $0x38] sm:$0xff] %v506
    %741 = vst [vmem:[%s4 + $0x40] sm:$0xff] %v511
    %742 = vst [vmem:[%s4 + $0x48] sm:$0xff] %v514
    %743 = vst [vmem:[%s4 + $0x50] sm:$0xff] %v519
    %744 = vst [vmem:[%s4 + $0x58] sm:$0xff] %v522
    %745 = vst [vmem:[%s4 + $0x60] sm:$0xff] %v527
    %746 = vst [vmem:[%s4 + $0x68] sm:$0xff] %v530
    %747 = vst [vmem:[%s4 + $0x70] sm:$0xff] %v535
    %748 = vst [vmem:[%s4 + $0x78] sm:$0xff] %v538
    %749 = vst [vmem:[%s4 + $0x80] sm:$0xff] %v543
    %750 = vst [vmem:[%s4 + $0x88] sm:$0xff] %v546
    %751 = vst [vmem:[%s4 + $0x90] sm:$0xff] %v551
    %752 = vst [vmem:[%s4 + $0x98] sm:$0xff] %v554
    %753 = vst [vmem:[%s4 + $0xa0] sm:$0xff] %v559
    %754 = vst [vmem:[%s4 + $0xa8] sm:$0xff] %v562
    %755 = vst [vmem:[%s4 + $0xb0] sm:$0xff] %v567
    %756 = vst [vmem:[%s4 + $0xb8] sm:$0xff] %v570
    %757 = vst [vmem:[%s4 + $0xc0] sm:$0xff] %v575
    %758 = vst [vmem:[%s4 + $0xc8] sm:$0xff] %v578
    %759 = vst [vmem:[%s4 + $0xd0] sm:$0xff] %v583
    %760 = vst [vmem:[%s4 + $0xd8] sm:$0xff] %v586
    %761 = vst [vmem:[%s4 + $0xe0] sm:$0xff] %v591
    %762 = vst [vmem:[%s4 + $0xe8] sm:$0xff] %v594
    %763 = vst [vmem:[%s4 + $0xf0] sm:$0xff] %v599
    %764 = vst [vmem:[%s4 + $0xf8] sm:$0xff] %v602
    %765 = vst [vmem:[%s4 + $0x100] sm:$0xff] %v607
    %766 = vst [vmem:[%s4 + $0x108] sm:$0xff] %v610
    %767 = vst [vmem:[%s4 + $0x110] sm:$0xff] %v615
    %768 = vst [vmem:[%s4 + $0x118] sm:$0xff] %v618
    %769 = vst [vmem:[%s4 + $0x120] sm:$0xff] %v623
    %770 = vst [vmem:[%s4 + $0x128] sm:$0xff] %v626
    %771 = vst [vmem:[%s4 + $0x130] sm:$0xff] %v631
    %772 = vst [vmem:[%s4 + $0x138] sm:$0xff] %v634
    %773 = vst [vmem:[%s4 + $0x140] sm:$0xff] %v639
    %774 = vst [vmem:[%s4 + $0x148] sm:$0xff] %v642
    %775 = vst [vmem:[%s4 + $0x150] sm:$0xff] %v647
    %776 = vst [vmem:[%s4 + $0x158] sm:$0xff] %v650
    %777 = vst [vmem:[%s4 + $0x160] sm:$0xff] %v655
    %778 = vst [vmem:[%s4 + $0x168] sm:$0xff] %v658
    %779 = vst [vmem:[%s4 + $0x170] sm:$0xff] %v663
    %780 = vst [vmem:[%s4 + $0x178] sm:$0xff] %v666
    %781 = vst [vmem:[%s4 + $0x180] sm:$0xff] %v671
    %782 = vst [vmem:[%s4 + $0x188] sm:$0xff] %v674
    %783 = vst [vmem:[%s4 + $0x190] sm:$0xff] %v679
    %784 = vst [vmem:[%s4 + $0x198] sm:$0xff] %v682
    %785 = vst [vmem:[%s4 + $0x1a0] sm:$0xff] %v687
    %786 = vst [vmem:[%s4 + $0x1a8] sm:$0xff] %v690
    %787 = vst [vmem:[%s4 + $0x1b0] sm:$0xff] %v695
    %788 = vst [vmem:[%s4 + $0x1b8] sm:$0xff] %v698
    %789 = vst [vmem:[%s4 + $0x1c0] sm:$0xff] %v703
    %790 = vst [vmem:[%s4 + $0x1c8] sm:$0xff] %v706
    %791 = vst [vmem:[%s4 + $0x1d0] sm:$0xff] %v711
    %792 = vst [vmem:[%s4 + $0x1d8] sm:$0xff] %v714
    %793 = vst [vmem:[%s4 + $0x1e0] sm:$0xff] %v719
    %794 = vst [vmem:[%s4 + $0x1e8] sm:$0xff] %v722
    %795 = vst [vmem:[%s4 + $0x1f0] sm:$0xff] %v727
    %796 = vst [vmem:[%s4 + $0x1f8] sm:$0xff] %v730
    %v797 = vadd.f32 %v479, %v482
    %v798 = vadd.f32 %v797, %v487
    %v799 = vadd.f32 %v798, %v490
    %v800 = vadd.f32 %v799, %v495
    %v801 = vadd.f32 %v800, %v498
    %v802 = vadd.f32 %v801, %v503
    %v803 = vadd.f32 %v802, %v506
    %v804 = vadd.f32 %v803, %v511
    %v805 = vadd.f32 %v804, %v514
    %v806 = vadd.f32 %v805, %v519
    %v807 = vadd.f32 %v806, %v522
    %v808 = vadd.f32 %v807, %v527
    %v809 = vadd.f32 %v808, %v530
    %v810 = vadd.f32 %v809, %v535
    %v811 = vadd.f32 %v810, %v538
    %v812 = vadd.f32 %v811, %v543
    %v813 = vadd.f32 %v812, %v546
    %v814 = vadd.f32 %v813, %v551
    %v815 = vadd.f32 %v814, %v554
    %v816 = vadd.f32 %v815, %v559
    %v817 = vadd.f32 %v816, %v562
    %v818 = vadd.f32 %v817, %v567
    %v819 = vadd.f32 %v818, %v570
    %v820 = vadd.f32 %v819, %v575
    %v821 = vadd.f32 %v820, %v578
    %v822 = vadd.f32 %v821, %v583
    %v823 = vadd.f32 %v822, %v586
    %v824 = vadd.f32 %v823, %v591
    %v825 = vadd.f32 %v824, %v594
    %v826 = vadd.f32 %v825, %v599
    %v827 = vadd.f32 %v826, %v602
    %v828 = vadd.f32 %v827, %v607
    %v829 = vadd.f32 %v828, %v610
    %v830 = vadd.f32 %v829, %v615
    %v831 = vadd.f32 %v830, %v618
    %v832 = vadd.f32 %v831, %v623
    %v833 = vadd.f32 %v832, %v626
    %v834 = vadd.f32 %v833, %v631
    %v835 = vadd.f32 %v834, %v634
    %v836 = vadd.f32 %v835, %v639
    %v837 = vadd.f32 %v836, %v642
    %v838 = vadd.f32 %v837, %v647
    %v839 = vadd.f32 %v838, %v650
    %v840 = vadd.f32 %v839, %v655
    %v841 = vadd.f32 %v840, %v658
    %v842 = vadd.f32 %v841, %v663
    %v843 = vadd.f32 %v842, %v666
    %v844 = vadd.f32 %v843, %v671
    %v845 = vadd.f32 %v844, %v674
    %v846 = vadd.f32 %v845, %v679
    %v847 = vadd.f32 %v846, %v682
    %v848 = vadd.f32 %v847, %v687
    %v849 = vadd.f32 %v848, %v690
    %v850 = vadd.f32 %v849, %v695
    %v851 = vadd.f32 %v850, %v698
    %v852 = vadd.f32 %v851, %v703
    %v853 = vadd.f32 %v852, %v706
    %v854 = vadd.f32 %v853, %v711
    %v855 = vadd.f32 %v854, %v714
    %v856 = vadd.f32 %v855, %v719
    %v857 = vadd.f32 %v856, %v722
    %v858 = vadd.f32 %v857, %v727
    %v859 = vadd.f32 %v858, %v730
    %v860 = vrot.slane %v859, 4
    %v861 = vadd.f32 %v859, %v860
    %v862 = vrot.slane %v861, 2
    %v863 = vadd.f32 %v861, %v862
    %v864 = vrot.slane %v863, 1
    %v865 = vadd.f32 %v863, %v864
    %v866 = vmul.f32 %v479, %v479
    %v867 = vmul.f32 %v482, %v482
    %v868 = vmul.f32 %v487, %v487
    %v869 = vmul.f32 %v490, %v490
    %v870 = vmul.f32 %v495, %v495
    %v871 = vmul.f32 %v498, %v498
    %v872 = vmul.f32 %v503, %v503
    %v873 = vmul.f32 %v506, %v506
    %v874 = vmul.f32 %v511, %v511
    %v875 = vmul.f32 %v514, %v514
    %v876 = vmul.f32 %v519, %v519
    %v877 = vmul.f32 %v522, %v522
    %v878 = vmul.f32 %v527, %v527
    %v879 = vmul.f32 %v530, %v530
    %v880 = vmul.f32 %v535, %v535
    %v881 = vmul.f32 %v538, %v538
    %v882 = vmul.f32 %v543, %v543
    %v883 = vmul.f32 %v546, %v546
    %v884 = vmul.f32 %v551, %v551
    %v885 = vmul.f32 %v554, %v554
    %v886 = vmul.f32 %v559, %v559
    %v887 = vmul.f32 %v562, %v562
    %v888 = vmul.f32 %v567, %v567
    %v889 = vmul.f32 %v570, %v570
    %v890 = vmul.f32 %v575, %v575
    %v891 = vmul.f32 %v578, %v578
    %v892 = vmul.f32 %v583, %v583
    %v893 = vmul.f32 %v586, %v586
    %v894 = vmul.f32 %v591, %v591
    %v895 = vmul.f32 %v594, %v594
    %v896 = vmul.f32 %v599, %v599
    %v897 = vmul.f32 %v602, %v602
    %v898 = vmul.f32 %v607, %v607
    %v899 = vmul.f32 %v610, %v610
    %v900 = vmul.f32 %v615, %v615
    %v901 = vmul.f32 %v618, %v618
    %v902 = vmul.f32 %v623, %v623
    %v903 = vmul.f32 %v626, %v626
    %v904 = vmul.f32 %v631, %v631
    %v905 = vmul.f32 %v634, %v634
    %v906 = vmul.f32 %v639, %v639
    %v907 = vmul.f32 %v642, %v642
    %v908 = vmul.f32 %v647, %v647
    %v909 = vmul.f32 %v650, %v650
    %v910 = vmul.f32 %v655, %v655
    %v911 = vmul.f32 %v658, %v658
    %v912 = vmul.f32 %v663, %v663
    %v913 = vmul.f32 %v666, %v666
    %v914 = vmul.f32 %v671, %v671
    %v915 = vmul.f32 %v674, %v674
    %v916 = vmul.f32 %v679, %v679
    %v917 = vmul.f32 %v682, %v682
    %v918 = vmul.f32 %v687, %v687
    %v919 = vmul.f32 %v690, %v690
    %v920 = vmul.f32 %v695, %v695
    %v921 = vmul.f32 %v698, %v698
    %v922 = vmul.f32 %v703, %v703
    %v923 = vmul.f32 %v706, %v706
    %v924 = vmul.f32 %v711, %v711
    %v925 = vmul.f32 %v714, %v714
    %v926 = vmul.f32 %v719, %v719
    %v927 = vmul.f32 %v722, %v722
    %v928 = vmul.f32 %v727, %v727
    %v929 = vmul.f32 %v730, %v730
    %v930 = vadd.f32 %v866, %v867
    %v931 = vadd.f32 %v930, %v868
    %v932 = vadd.f32 %v931, %v869
    %v933 = vadd.f32 %v932, %v870
    %v934 = vadd.f32 %v933, %v871
    %v935 = vadd.f32 %v934, %v872
    %v936 = vadd.f32 %v935, %v873
    %v937 = vadd.f32 %v936, %v874
    %v938 = vadd.f32 %v937, %v875
    %v939 = vadd.f32 %v938, %v876
    %v940 = vadd.f32 %v939, %v877
    %v941 = vadd.f32 %v940, %v878
    %v942 = vadd.f32 %v941, %v879
    %v943 = vadd.f32 %v942, %v880
    %v944 = vadd.f32 %v943, %v881
    %v945 = vadd.f32 %v944, %v882
    %v946 = vadd.f32 %v945, %v883
    %v947 = vadd.f32 %v946, %v884
    %v948 = vadd.f32 %v947, %v885
    %v949 = vadd.f32 %v948, %v886
    %v950 = vadd.f32 %v949, %v887
    %v951 = vadd.f32 %v950, %v888
    %v952 = vadd.f32 %v951, %v889
    %v953 = vadd.f32 %v952, %v890
    %v954 = vadd.f32 %v953, %v891
    %v955 = vadd.f32 %v954, %v892
    %v956 = vadd.f32 %v955, %v893
    %v957 = vadd.f32 %v956, %v894
    %v958 = vadd.f32 %v957, %v895
    %v959 = vadd.f32 %v958, %v896
    %v960 = vadd.f32 %v959, %v897
    %v961 = vadd.f32 %v960, %v898
    %v962 = vadd.f32 %v961, %v899
    %v963 = vadd.f32 %v962, %v900
    %v964 = vadd.f32 %v963, %v901
    %v965 = vadd.f32 %v964, %v902
    %v966 = vadd.f32 %v965, %v903
    %v967 = vadd.f32 %v966, %v904
    %v968 = vadd.f32 %v967, %v905
    %v969 = vadd.f32 %v968, %v906
    %v970 = vadd.f32 %v969, %v907
    %v971 = vadd.f32 %v970, %v908
    %v972 = vadd.f32 %v971, %v909
    %v973 = vadd.f32 %v972, %v910
    %v974 = vadd.f32 %v973, %v911
    %v975 = vadd.f32 %v974, %v912
    %v976 = vadd.f32 %v975, %v913
    %v977 = vadd.f32 %v976, %v914
    %v978 = vadd.f32 %v977, %v915
    %v979 = vadd.f32 %v978, %v916
    %v980 = vadd.f32 %v979, %v917
    %v981 = vadd.f32 %v980, %v918
    %v982 = vadd.f32 %v981, %v919
    %v983 = vadd.f32 %v982, %v920
    %v984 = vadd.f32 %v983, %v921
    %v985 = vadd.f32 %v984, %v922
    %v986 = vadd.f32 %v985, %v923
    %v987 = vadd.f32 %v986, %v924
    %v988 = vadd.f32 %v987, %v925
    %v989 = vadd.f32 %v988, %v926
    %v990 = vadd.f32 %v989, %v927
    %v991 = vadd.f32 %v990, %v928
    %v992 = vadd.f32 %v991, %v929
    %v993 = vrot.slane %v992, 4
    %v994 = vadd.f32 %v992, %v993
    %v995 = vrot.slane %v994, 2
    %v996 = vadd.f32 %v994, %v995
    %v997 = vrot.slane %v996, 1
    %v998 = vadd.f32 %v996, %v997
    %vm999 = vcmask 1040384
    %v1000 = vsel %vm999, %v865, %v998
    %vm1001 = vcmask 1041408
    %v1002 = vsel %vm1001, %v1000, 0.0
    %1003 = vst [vmem:[#allocation2] sm:$0xff] %v1002
    // Predicated region
    $region18: #{dual_path_block_forward_nhwc.4} parent=1 // pred_check
      _
    $region19: #{dual_path_block_forward_nhwc.4} parent=1 // pred_check_branch
      %1005 = sbr.rel (0) target = $region21
    $region20: #{dual_path_block_forward_nhwc.4} parent=1 // pred_region
      _
    $region21: #{dual_path_block_forward_nhwc.4} parent=1 // pred_fallthru
      _
    // Predicated region
    $region22: #{dual_path_block_forward_nhwc.4} parent=1 // pred_check
      _
    $region23: #{dual_path_block_forward_nhwc.4} parent=1 // pred_check_branch
      %1007 = sbr.rel (0) target = $region25
    $region24: #{dual_path_block_forward_nhwc.4} parent=1 // pred_region
      %s1009 = ssub.s32 128, 128
      %1010 = vsyncadd [#allocation3], %s1009
      %s1012 = sshll.u32 [#allocation2], 4
      %s1013 = int_to_ptr.vmem [resolvable:$true] %s1012
      %1015 = dma.vmem_to_hbm [thread:$0]  %s1013, 128, %s5, [#allocation3]
    $region25: #{dual_path_block_forward_nhwc.4} parent=1 // pred_fallthru
      _
    // Predicated region
    $region26: #{dual_path_block_forward_nhwc.4} parent=1 // pred_check
      _
    $region27: #{dual_path_block_forward_nhwc.4} parent=1 // pred_check_branch
      %1017 = sbr.rel (0) target = $region29
    $region28: #{dual_path_block_forward_nhwc.4} parent=1 // pred_region
      _
    $region29: #{dual_path_block_forward_nhwc.4} parent=1 // pred_fallthru
      _
    // Predicated region
    $region30: #{dual_path_block_forward_nhwc.4} parent=1 // pred_check
      _
    $region31: #{dual_path_block_forward_nhwc.4} parent=1 // pred_check_branch
      %1019 = sbr.rel (0) target = $region33
    $region32: #{dual_path_block_forward_nhwc.4} parent=1 // pred_region
      %1020 = dma.done [#allocation3], 128
    $region33: #{dual_path_block_forward_nhwc.4} parent=1 // pred_fallthru
      _
    %1021 = vsyncpa [#allocation3], 1

// kernel: dual_path_block_forward_nhwc.6
$region0: #{dual_path_block_forward_nhwc.6}
  #allocation0 [shape = 'u32[]', space=smem, size = 0x4, offset = 0x4, fixed_abs, tag = 'smem constant byte address 0x4 - core index']
  #allocation1 [shape = 'u32[144,128]{1,0:T(1,128)}', space=vmem, size = 0x12000, scoped, tag = 'internal scratch']
  #allocation2 [shape = 'f32[18,18,32]{2,1,0:T(8,128)}', space=vmem, size = 0x36000, scoped, tag = 'scratch operand']
  %s0 = inlined_call_operand.vmem [shape: bf16[2,16,16,32], index: 0, kind: input, shape index: {}]
  %s1 = inlined_call_operand.vmem [shape: f32[1,32], index: 1, kind: input, shape index: {}]
  %s2 = inlined_call_operand.vmem [shape: f32[1,32], index: 2, kind: input, shape index: {}]
  %s3 = inlined_call_operand.vmem [shape: bf16[288,128], index: 3, kind: input, shape index: {}]
  %s4 = inlined_call_operand.vmem [shape: bf16[2,256,128], index: 4, kind: output, shape index: {0}]
  %s5 = inlined_call_operand.vmem [shape: f32[2,8,128], index: 5, kind: output, shape index: {1}]
  %6 = xla_tuple %s4, %s5
  %s7 = sld [smem:[#allocation0]]
  $region57: #{dual_path_block_forward_nhwc.6} parent=0
    _
  %s9 = ssub.s32 1, %s7
  %s10 = scalar_select 0, %s9, %s7
  loop: start=0, step=1, limit=4
  $region2: #{dual_path_block_forward_nhwc.6} parent=0 // loop_pre_header
    _
  $region3: #{dual_path_block_forward_nhwc.6} parent=0 // loop_header
    %s12 = sphi 0, %s16
    %p13 = scmp.ge.s32.totalorder %s12, 4
    %s22 = sphi 0, %s24
    %s25 = sphi 0, %s22
    %s26 = sphi 0, %s25
    %s42 = sphi 0, %s26
    %s46 = sphi 0, %s46
    %s48 = sphi 0, %s46
    %s49 = sphi 0, %s48
    %s63 = sphi 0, %s49
    %s67 = sphi 0, %s67
    %s69 = sphi 0, %s67
    %s70 = sphi 0, %s69
    %s84 = sphi 0, %s70
    %s88 = sphi 0, %s88
    %s90 = sphi 0, %s88
    %s91 = sphi 0, %s90
    %s105 = sphi 0, %s91
    %s111 = sphi 0, %s113
    %s114 = sphi 0, %s111
    %s115 = sphi 0, %s114
    %s131 = sphi 0, %s115
    %s137 = sphi 0, %s139
    %s140 = sphi 0, %s137
    %s141 = sphi 0, %s140
    %s157 = sphi 0, %s141
  $region4: #{dual_path_block_forward_nhwc.6} parent=0 // loop_header_branch
    %15 = sbr.rel (%p13) target = $region8
  $region5: #{dual_path_block_forward_nhwc.6} parent=0 // loop_body
    %s17 = ssub.s32 %s12, 1
    %s18 = ssub.s32 %s12, 2
    %s19 = sadd.s32 %s12, 1
    %s20 = ssub.s32 %s12, %s19
    %p21 = scmp.eq.s32.totalorder %s20, 0
    %s23 = sadd.s32 %s22, 1
    %s24 = scalar_select %p21, %s22, %s23
    %p27 = pneg %p21
    %p28 = scmp.eq.s32.totalorder %s12, 1
    %p29 = por %p27, %p28
    %p30 = scmp.ne.s32.totalorder %s22, %s25
    %p31 = scmp.eq.s32.totalorder %s12, 0
    %p32 = por %p30, %p31
    %p33 = scmp.ne.s32.totalorder %s22, %s25
    %p34 = scmp.eq.s32.totalorder %s17, 1
    %p35 = por %p33, %p34
    %p36 = scmp.ne.s32.totalorder %s25, %s26
    %p37 = scmp.eq.s32.totalorder %s17, 0
    %p38 = por %p36, %p37
    %p39 = scmp.ne.s32.totalorder %s25, %s26
    %p40 = scmp.eq.s32.totalorder %s18, 1
    %p41 = por %p39, %p40
    %p43 = scmp.ne.s32.totalorder %s26, %s42
    %p44 = scmp.eq.s32.totalorder %s18, 0
    %p45 = por %p43, %p44
    %s47 = sadd.s32 %s46, 1
    %p50 = scmp.eq.s32.totalorder %s12, 1
    %p51 = scmp.ne.s32.totalorder %s46, %s48
    %p52 = scmp.eq.s32.totalorder %s12, 0
    %p53 = por %p51, %p52
    %p54 = scmp.ne.s32.totalorder %s46, %s48
    %p55 = scmp.eq.s32.totalorder %s17, 1
    %p56 = por %p54, %p55
    %p57 = scmp.ne.s32.totalorder %s48, %s49
    %p58 = scmp.eq.s32.totalorder %s17, 0
    %p59 = por %p57, %p58
    %p60 = scmp.ne.s32.totalorder %s48, %s49
    %p61 = scmp.eq.s32.totalorder %s18, 1
    %p62 = por %p60, %p61
    %p64 = scmp.ne.s32.totalorder %s49, %s63
    %p65 = scmp.eq.s32.totalorder %s18, 0
    %p66 = por %p64, %p65
    %s68 = sadd.s32 %s67, 1
    %p71 = scmp.eq.s32.totalorder %s12, 1
    %p72 = scmp.ne.s32.totalorder %s67, %s69
    %p73 = scmp.eq.s32.totalorder %s12, 0
    %p74 = por %p72, %p73
    %p75 = scmp.ne.s32.totalorder %s67, %s69
    %p76 = scmp.eq.s32.totalorder %s17, 1
    %p77 = por %p75, %p76
    %p78 = scmp.ne.s32.totalorder %s69, %s70
    %p79 = scmp.eq.s32.totalorder %s17, 0
    %p80 = por %p78, %p79
    %p81 = scmp.ne.s32.totalorder %s69, %s70
    %p82 = scmp.eq.s32.totalorder %s18, 1
    %p83 = por %p81, %p82
    %p85 = scmp.ne.s32.totalorder %s70, %s84
    %p86 = scmp.eq.s32.totalorder %s18, 0
    %p87 = por %p85, %p86
    %s89 = sadd.s32 %s88, 1
    %p92 = scmp.eq.s32.totalorder %s12, 1
    %p93 = scmp.ne.s32.totalorder %s88, %s90
    %p94 = scmp.eq.s32.totalorder %s12, 0
    %p95 = por %p93, %p94
    %p96 = scmp.ne.s32.totalorder %s88, %s90
    %p97 = scmp.eq.s32.totalorder %s17, 1
    %p98 = por %p96, %p97
    %p99 = scmp.ne.s32.totalorder %s90, %s91
    %p100 = scmp.eq.s32.totalorder %s17, 0
    %p101 = por %p99, %p100
    %p102 = scmp.ne.s32.totalorder %s90, %s91
    %p103 = scmp.eq.s32.totalorder %s18, 1
    %p104 = por %p102, %p103
    %p106 = scmp.ne.s32.totalorder %s91, %s105
    %p107 = scmp.eq.s32.totalorder %s18, 0
    %p108 = por %p106, %p107
    %s109 = ssub.s32 %s12, %s19
    %p110 = scmp.eq.s32.totalorder %s109, 0
    %s112 = sadd.s32 %s111, 1
    %s113 = scalar_select %p110, %s111, %s112
    %p116 = pneg %p110
    %p117 = scmp.eq.s32.totalorder %s12, 1
    %p118 = por %p116, %p117
    %p119 = scmp.ne.s32.totalorder %s111, %s114
    %p120 = scmp.eq.s32.totalorder %s12, 0
    %p121 = por %p119, %p120
    %p122 = scmp.ne.s32.totalorder %s111, %s114
    %p123 = scmp.eq.s32.totalorder %s17, 1
    %p124 = por %p122, %p123
    %p125 = scmp.ne.s32.totalorder %s114, %s115
    %p126 = scmp.eq.s32.totalorder %s17, 0
    %p127 = por %p125, %p126
    %p128 = scmp.ne.s32.totalorder %s114, %s115
    %p129 = scmp.eq.s32.totalorder %s18, 1
    %p130 = por %p128, %p129
    %p132 = scmp.ne.s32.totalorder %s115, %s131
    %p133 = scmp.eq.s32.totalorder %s18, 0
    %p134 = por %p132, %p133
    %s135 = ssub.s32 %s12, %s19
    %p136 = scmp.eq.s32.totalorder %s135, 0
    %s138 = sadd.s32 %s137, 1
    %s139 = scalar_select %p136, %s137, %s138
    %p142 = pneg %p136
    %p143 = scmp.eq.s32.totalorder %s12, 1
    %p144 = por %p142, %p143
    %p145 = scmp.ne.s32.totalorder %s137, %s140
    %p146 = scmp.eq.s32.totalorder %s12, 0
    %p147 = por %p145, %p146
    %p148 = scmp.ne.s32.totalorder %s137, %s140
    %p149 = scmp.eq.s32.totalorder %s17, 1
    %p150 = por %p148, %p149
    %p151 = scmp.ne.s32.totalorder %s140, %s141
    %p152 = scmp.eq.s32.totalorder %s17, 0
    %p153 = por %p151, %p152
    %p154 = scmp.ne.s32.totalorder %s140, %s141
    %p155 = scmp.eq.s32.totalorder %s18, 1
    %p156 = por %p154, %p155
    %p158 = scmp.ne.s32.totalorder %s141, %s157
    %p159 = scmp.eq.s32.totalorder %s18, 0
    %p160 = por %p158, %p159
    %p161 = scmp.le.s32.totalorder 1, %s12
    %p162 = scmp.lt.s32.totalorder %s12, 3
    %p163 = pnand %p161, %p162
    %p164 = pneg %p163
    // Predicated region
    $region9: #{dual_path_block_forward_nhwc.6} parent=5 // pred_check
      _
    $region10: #{dual_path_block_forward_nhwc.6} parent=5 // pred_check_branch
      %166 = sbr.rel (%p163) target = $region12
    $region11: #{dual_path_block_forward_nhwc.6} parent=5 // pred_region
      %s167 = ssub.s32 %s12, 1
      // Predicated region
      $region13: #{dual_path_block_forward_nhwc.6} parent=11 // pred_check
        %p168 = pneg %p59
      $region14: #{dual_path_block_forward_nhwc.6} parent=11 // pred_check_branch
        %170 = sbr.rel (%p168) target = $region16
      $region15: #{dual_path_block_forward_nhwc.6} parent=11 // pred_region
        _
      $region16: #{dual_path_block_forward_nhwc.6} parent=11 // pred_fallthru
        _
      // Predicated region
      $region17: #{dual_path_block_forward_nhwc.6} parent=11 // pred_check
        %p171 = pneg %p80
      $region18: #{dual_path_block_forward_nhwc.6} parent=11 // pred_check_branch
        %173 = sbr.rel (%p171) target = $region20
      $region19: #{dual_path_block_forward_nhwc.6} parent=11 // pred_region
        _
      $region20: #{dual_path_block_forward_nhwc.6} parent=11 // pred_fallthru
        _
      // Predicated region
      $region21: #{dual_path_block_forward_nhwc.6} parent=11 // pred_check
        %p174 = pneg %p101
      $region22: #{dual_path_block_forward_nhwc.6} parent=11 // pred_check_branch
        %176 = sbr.rel (%p174) target = $region24
      $region23: #{dual_path_block_forward_nhwc.6} parent=11 // pred_region
        _
      $region24: #{dual_path_block_forward_nhwc.6} parent=11 // pred_fallthru
        _
    $region12: #{dual_path_block_forward_nhwc.6} parent=5 // pred_fallthru
      _
    %p177 = scmp.lt.s32.totalorder %s12, 2
    // Predicated region
    $region25: #{dual_path_block_forward_nhwc.6} parent=5 // pred_check
      %p178 = pneg %p177
    $region26: #{dual_path_block_forward_nhwc.6} parent=5 // pred_check_branch
      %180 = sbr.rel (%p178) target = $region28
    $region27: #{dual_path_block_forward_nhwc.6} parent=5 // pred_region
      // Predicated region
      $region29: #{dual_path_block_forward_nhwc.6} parent=27 // pred_check
        %p181 = pneg %p32
      $region30: #{dual_path_block_forward_nhwc.6} parent=27 // pred_check_branch
        %183 = sbr.rel (%p181) target = $region32
      $region31: #{dual_path_block_forward_nhwc.6} parent=27 // pred_region
        %p184 = scmp.lt.s32.totalorder %s12, 1
        %s185 = scalar_select %p184, %s12, 1
        %s186 = smul.addr %s185, 32
        %s187 = smul.addr %s186, 4
        %s188 = scalar_lea.vmem %s0, %s187
      $region32: #{dual_path_block_forward_nhwc.6} parent=27 // pred_fallthru
        _
    $region28: #{dual_path_block_forward_nhwc.6} parent=5 // pred_fallthru
      _
    %p189 = scmp.le.s32.totalorder 1, %s12
    %p190 = scmp.lt.s32.totalorder %s12, 3
    %p191 = pnand %p189, %p190
    %p192 = pneg %p191
    // Predicated region
    $region33: #{dual_path_block_forward_nhwc.6} parent=5 // pred_check
      _
    $region34: #{dual_path_block_forward_nhwc.6} parent=5 // pred_check_branch
      %194 = sbr.rel (%p191) target = $region36
    $region35: #{dual_path_block_forward_nhwc.6} parent=5 // pred_region
      %s195 = ssub.s32 %s12, 1
      %p196 = scmp.lt.s32.totalorder %s17, 1
      %s197 = scalar_select %p196, %s17, 1
      %s198 = smul.addr %s197, 32
      %s199 = smul.addr %s198, 4
      %s200 = scalar_lea.vmem %s0, %s199
      %p201 = pneg %p38
      %p202 = pneg %p35
      %p203 = pneg %p59
      %p204 = pneg %p56
      %p205 = pneg %p80
      %p206 = pneg %p77
      %p207 = pneg %p101
      %p208 = pneg %p98
      %p209 = pneg %p127
      %p210 = pneg %p124
      %p211 = scmp.lt.s32.totalorder %s17, 1
      %s212 = scalar_select %p211, %s17, 1
      %s213 = smul.addr %s212, 32
      %s214 = smul.addr %s213, 4
      %s215 = scalar_lea.vmem %s4, %s214
      %p216 = pneg %p153
      %p217 = pneg %p150
      %p218 = scmp.lt.s32.totalorder %s17, 1
      %s219 = scalar_select %p218, %s17, 1
      %s220 = smul.addr %s219, 8
      %s221 = scalar_lea.vmem %s5, %s220
      %p222 = scmp.lt.s32.totalorder %s17, 1
      %s223 = scalar_select %p222, %s17, 1
      %s224 = smul.addr %s223, 32
      %s225 = smul.addr %s224, 4
      %s226 = scalar_lea.vmem %s0, %s225
      %p227 = scmp.lt.s32.totalorder %s17, 1
      %s228 = scalar_select %p227, %s17, 1
      %s229 = smul.addr %s228, 32
      %s230 = smul.addr %s229, 4
      %s231 = scalar_lea.vmem %s4, %s230
      %p232 = scmp.lt.s32.totalorder %s17, 1
      %s233 = scalar_select %p232, %s17, 1
      %s234 = smul.addr %s233, 8
      %s235 = scalar_lea.vmem %s5, %s234
      %v237 = vld [vmem:[%s226] sm:$0xf]
      %v238 = vld [vmem:[%s226 + $0x4] sm:$0xf]
      %v239 = vld [vmem:[%s226 + $0x8] sm:$0xf]
      %v240 = vld [vmem:[%s226 + $0xc] sm:$0xf]
      %v241 = vld [vmem:[%s226 + $0x10] sm:$0xf]
      %v242 = vld [vmem:[%s226 + $0x14] sm:$0xf]
      %v243 = vld [vmem:[%s226 + $0x18] sm:$0xf]
      %v244 = vld [vmem:[%s226 + $0x1c] sm:$0xf]
      %v245 = vld [vmem:[%s226 + $0x20] sm:$0xf]
      %v246 = vld [vmem:[%s226 + $0x24] sm:$0xf]
      %v247 = vld [vmem:[%s226 + $0x28] sm:$0xf]
      %v248 = vld [vmem:[%s226 + $0x2c] sm:$0xf]
      %v249 = vld [vmem:[%s226 + $0x30] sm:$0xf]
      %v250 = vld [vmem:[%s226 + $0x34] sm:$0xf]
      %v251 = vld [vmem:[%s226 + $0x38] sm:$0xf]
      %v252 = vld [vmem:[%s226 + $0x3c] sm:$0xf]
      %v253 = vld [vmem:[%s226 + $0x40] sm:$0xf]
      %v254 = vld [vmem:[%s226 + $0x44] sm:$0xf]
      %v255 = vld [vmem:[%s226 + $0x48] sm:$0xf]
      %v256 = vld [vmem:[%s226 + $0x4c] sm:$0xf]
      %v257 = vld [vmem:[%s226 + $0x50] sm:$0xf]
      %v258 = vld [vmem:[%s226 + $0x54] sm:$0xf]
      %v259 = vld [vmem:[%s226 + $0x58] sm:$0xf]
      %v260 = vld [vmem:[%s226 + $0x5c] sm:$0xf]
      %v261 = vld [vmem:[%s226 + $0x60] sm:$0xf]
      %v262 = vld [vmem:[%s226 + $0x64] sm:$0xf]
      %v263 = vld [vmem:[%s226 + $0x68] sm:$0xf]
      %v264 = vld [vmem:[%s226 + $0x6c] sm:$0xf]
      %v265 = vld [vmem:[%s226 + $0x70] sm:$0xf]
      %v266 = vld [vmem:[%s226 + $0x74] sm:$0xf]
      %v267 = vld [vmem:[%s226 + $0x78] sm:$0xf]
      %v268 = vld [vmem:[%s226 + $0x7c] sm:$0xf]
      %v269 = vunpack.c.l.bf16 %v237
      %v270 = vunpack.c.l.bf16 %v238
      %v271 = vunpack.c.l.bf16 %v239
      %v272 = vunpack.c.l.bf16 %v240
      %v273 = vunpack.c.l.bf16 %v241
      %v274 = vunpack.c.l.bf16 %v242
      %v275 = vunpack.c.l.bf16 %v243
      %v276 = vunpack.c.l.bf16 %v244
      %v277 = vunpack.c.l.bf16 %v245
      %v278 = vunpack.c.l.bf16 %v246
      %v279 = vunpack.c.l.bf16 %v247
      %v280 = vunpack.c.l.bf16 %v248
      %v281 = vunpack.c.l.bf16 %v249
      %v282 = vunpack.c.l.bf16 %v250
      %v283 = vunpack.c.l.bf16 %v251
      %v284 = vunpack.c.l.bf16 %v252
      %v285 = vunpack.c.l.bf16 %v253
      %v286 = vunpack.c.l.bf16 %v254
      %v287 = vunpack.c.l.bf16 %v255
      %v288 = vunpack.c.l.bf16 %v256
      %v289 = vunpack.c.l.bf16 %v257
      %v290 = vunpack.c.l.bf16 %v258
      %v291 = vunpack.c.l.bf16 %v259
      %v292 = vunpack.c.l.bf16 %v260
      %v293 = vunpack.c.l.bf16 %v261
      %v294 = vunpack.c.l.bf16 %v262
      %v295 = vunpack.c.l.bf16 %v263
      %v296 = vunpack.c.l.bf16 %v264
      %v297 = vunpack.c.l.bf16 %v265
      %v298 = vunpack.c.l.bf16 %v266
      %v299 = vunpack.c.l.bf16 %v267
      %v300 = vunpack.c.l.bf16 %v268
      %v301 = vld [vmem:[%s1] sm:$0x1]
      %v303 = vlaneseq
      %v304 = vshrl.u32 %v303, 7
      %v305 = vsub.s32 0, %v304
      %v306 = vrot.slane %v301, %v305
      %v308 = vmul.f32 %v269, %v306
      %v309 = vmul.f32 %v270, %v306
      %v310 = vmul.f32 %v271, %v306
      %v311 = vmul.f32 %v272, %v306
      %v312 = vmul.f32 %v273, %v306
      %v313 = vmul.f32 %v274, %v306
      %v314 = vmul.f32 %v275, %v306
      %v315 = vmul.f32 %v276, %v306
      %v316 = vmul.f32 %v277, %v306
      %v317 = vmul.f32 %v278, %v306
      %v318 = vmul.f32 %v279, %v306
      %v319 = vmul.f32 %v280, %v306
      %v320 = vmul.f32 %v281, %v306
      %v321 = vmul.f32 %v282, %v306
      %v322 = vmul.f32 %v283, %v306
      %v323 = vmul.f32 %v284, %v306
      %v324 = vmul.f32 %v285, %v306
      %v325 = vmul.f32 %v286, %v306
      %v326 = vmul.f32 %v287, %v306
      %v327 = vmul.f32 %v288, %v306
      %v328 = vmul.f32 %v289, %v306
      %v329 = vmul.f32 %v290, %v306
      %v330 = vmul.f32 %v291, %v306
      %v331 = vmul.f32 %v292, %v306
      %v332 = vmul.f32 %v293, %v306
      %v333 = vmul.f32 %v294, %v306
      %v334 = vmul.f32 %v295, %v306
      %v335 = vmul.f32 %v296, %v306
      %v336 = vmul.f32 %v297, %v306
      %v337 = vmul.f32 %v298, %v306
      %v338 = vmul.f32 %v299, %v306
      %v339 = vmul.f32 %v300, %v306
      %v340 = vld [vmem:[%s2] sm:$0x1]
      %v342 = vlaneseq
      %v343 = vshrl.u32 %v342, 7
      %v344 = vsub.s32 0, %v343
      %v345 = vrot.slane %v340, %v344
      %v347 = vadd.f32 %v308, %v345
      %v348 = vadd.f32 %v309, %v345
      %v349 = vadd.f32 %v310, %v345
      %v350 = vadd.f32 %v311, %v345
      %v351 = vadd.f32 %v312, %v345
      %v352 = vadd.f32 %v313, %v345
      %v353 = vadd.f32 %v314, %v345
      %v354 = vadd.f32 %v315, %v345
      %v355 = vadd.f32 %v316, %v345
      %v356 = vadd.f32 %v317, %v345
      %v357 = vadd.f32 %v318, %v345
      %v358 = vadd.f32 %v319, %v345
      %v359 = vadd.f32 %v320, %v345
      %v360 = vadd.f32 %v321, %v345
      %v361 = vadd.f32 %v322, %v345
      %v362 = vadd.f32 %v323, %v345
      %v363 = vadd.f32 %v324, %v345
      %v364 = vadd.f32 %v325, %v345
      %v365 = vadd.f32 %v326, %v345
      %v366 = vadd.f32 %v327, %v345
      %v367 = vadd.f32 %v328, %v345
      %v368 = vadd.f32 %v329, %v345
      %v369 = vadd.f32 %v330, %v345
      %v370 = vadd.f32 %v331, %v345
      %v371 = vadd.f32 %v332, %v345
      %v372 = vadd.f32 %v333, %v345
      %v373 = vadd.f32 %v334, %v345
      %v374 = vadd.f32 %v335, %v345
      %v375 = vadd.f32 %v336, %v345
      %v376 = vadd.f32 %v337, %v345
      %v377 = vadd.f32 %v338, %v345
      %v378 = vadd.f32 %v339, %v345
      %v379 = vmax.f32 %v347, 0.0
      %v380 = vmax.f32 %v348, 0.0
      %v381 = vmax.f32 %v349, 0.0
      %v382 = vmax.f32 %v350, 0.0
      %v383 = vmax.f32 %v351, 0.0
      %v384 = vmax.f32 %v352, 0.0
      %v385 = vmax.f32 %v353, 0.0
      %v386 = vmax.f32 %v354, 0.0
      %v387 = vmax.f32 %v355, 0.0
      %v388 = vmax.f32 %v356, 0.0
      %v389 = vmax.f32 %v357, 0.0
      %v390 = vmax.f32 %v358, 0.0
      %v391 = vmax.f32 %v359, 0.0
      %v392 = vmax.f32 %v360, 0.0
      %v393 = vmax.f32 %v361, 0.0
      %v394 = vmax.f32 %v362, 0.0
      %v395 = vmax.f32 %v363, 0.0
      %v396 = vmax.f32 %v364, 0.0
      %v397 = vmax.f32 %v365, 0.0
      %v398 = vmax.f32 %v366, 0.0
      %v399 = vmax.f32 %v367, 0.0
      %v400 = vmax.f32 %v368, 0.0
      %v401 = vmax.f32 %v369, 0.0
      %v402 = vmax.f32 %v370, 0.0
      %v403 = vmax.f32 %v371, 0.0
      %v404 = vmax.f32 %v372, 0.0
      %v405 = vmax.f32 %v373, 0.0
      %v406 = vmax.f32 %v374, 0.0
      %v407 = vmax.f32 %v375, 0.0
      %v408 = vmax.f32 %v376, 0.0
      %v409 = vmax.f32 %v377, 0.0
      %v410 = vmax.f32 %v378, 0.0
      %vm411 = vcmask 261120
      %412 = vst.msk [vmem:[#allocation2] sm:$0xff] %vm411, 0.0
      %413 = vst.msk [vmem:[#allocation2 + $0x8] sm:$0xff] %vm411, 0.0
      %vm414 = vcmask 254976
      %415 = vst.msk [vmem:[#allocation2 + $0x10] sm:$0x3] %vm414, 0.0
      %416 = vst.msk [vmem:[#allocation2 + $0x18] sm:$0xff] %vm411, 0.0
      %417 = vst.msk [vmem:[#allocation2 + $0x20] sm:$0xff] %vm411, 0.0
      %418 = vst.msk [vmem:[#allocation2 + $0x28] sm:$0x3] %vm414, 0.0
      %419 = vst.msk [vmem:[#allocation2 + $0x30] sm:$0xff] %vm411, 0.0
      %420 = vst.msk [vmem:[#allocation2 + $0x38] sm:$0xff] %vm411, 0.0
      %421 = vst.msk [vmem:[#allocation2 + $0x40] sm:$0x3] %vm414, 0.0
      %422 = vst.msk [vmem:[#allocation2 + $0x48] sm:$0xff] %vm411, 0.0
      %423 = vst.msk [vmem:[#allocation2 + $0x50] sm:$0xff] %vm411, 0.0
      %424 = vst.msk [vmem:[#allocation2 + $0x58] sm:$0x3] %vm414, 0.0
      %425 = vst.msk [vmem:[#allocation2 + $0x60] sm:$0xff] %vm411, 0.0
      %426 = vst.msk [vmem:[#allocation2 + $0x68] sm:$0xff] %vm411, 0.0
      %427 = vst.msk [vmem:[#allocation2 + $0x70] sm:$0x3] %vm414, 0.0
      %428 = vst.msk [vmem:[#allocation2 + $0x78] sm:$0xff] %vm411, 0.0
      %429 = vst.msk [vmem:[#allocation2 + $0x80] sm:$0xff] %vm411, 0.0
      %430 = vst.msk [vmem:[#allocation2 + $0x88] sm:$0x3] %vm414, 0.0
      %431 = vst.msk [vmem:[#allocation2 + $0x90] sm:$0xff] %vm411, 0.0
      %432 = vst.msk [vmem:[#allocation2 + $0x98] sm:$0xff] %vm411, 0.0
      %433 = vst.msk [vmem:[#allocation2 + $0xa0] sm:$0x3] %vm414, 0.0
      %434 = vst.msk [vmem:[#allocation2 + $0xa8] sm:$0xff] %vm411, 0.0
      %435 = vst.msk [vmem:[#allocation2 + $0xb0] sm:$0xff] %vm411, 0.0
      %436 = vst.msk [vmem:[#allocation2 + $0xb8] sm:$0x3] %vm414, 0.0
      %437 = vst.msk [vmem:[#allocation2 + $0xc0] sm:$0xff] %vm411, 0.0
      %438 = vst.msk [vmem:[#allocation2 + $0xc8] sm:$0xff] %vm411, 0.0
      %439 = vst.msk [vmem:[#allocation2 + $0xd0] sm:$0x3] %vm414, 0.0
      %440 = vst.msk [vmem:[#allocation2 + $0xd8] sm:$0xff] %vm411, 0.0
      %441 = vst.msk [vmem:[#allocation2 + $0xe0] sm:$0xff] %vm411, 0.0
      %442 = vst.msk [vmem:[#allocation2 + $0xe8] sm:$0x3] %vm414, 0.0
      %443 = vst.msk [vmem:[#allocation2 + $0xf0] sm:$0xff] %vm411, 0.0
      %444 = vst.msk [vmem:[#allocation2 + $0xf8] sm:$0xff] %vm411, 0.0
      %445 = vst.msk [vmem:[#allocation2 + $0x100] sm:$0x3] %vm414, 0.0
      %446 = vst.msk [vmem:[#allocation2 + $0x108] sm:$0xff] %vm411, 0.0
      %447 = vst.msk [vmem:[#allocation2 + $0x110] sm:$0xff] %vm411, 0.0
      %448 = vst.msk [vmem:[#allocation2 + $0x118] sm:$0x3] %vm414, 0.0
      %449 = vst.msk [vmem:[#allocation2 + $0x120] sm:$0xff] %vm411, 0.0
      %450 = vst.msk [vmem:[#allocation2 + $0x128] sm:$0xff] %vm411, 0.0
      %451 = vst.msk [vmem:[#allocation2 + $0x130] sm:$0x3] %vm414, 0.0
      %452 = vst.msk [vmem:[#allocation2 + $0x138] sm:$0xff] %vm411, 0.0
      %453 = vst.msk [vmem:[#allocation2 + $0x140] sm:$0xff] %vm411, 0.0
      %454 = vst.msk [vmem:[#allocation2 + $0x148] sm:$0x3] %vm414, 0.0
      %455 = vst.msk [vmem:[#allocation2 + $0x150] sm:$0xff] %vm411, 0.0
      %456 = vst.msk [vmem:[#allocation2 + $0x158] sm:$0xff] %vm411, 0.0
      %457 = vst.msk [vmem:[#allocation2 + $0x160] sm:$0x3] %vm414, 0.0
      %458 = vst.msk [vmem:[#allocation2 + $0x168] sm:$0xff] %vm411, 0.0
      %459 = vst.msk [vmem:[#allocation2 + $0x170] sm:$0xff] %vm411, 0.0
      %460 = vst.msk [vmem:[#allocation2 + $0x178] sm:$0x3] %vm414, 0.0
      %461 = vst.msk [vmem:[#allocation2 + $0x180] sm:$0xff] %vm411, 0.0
      %462 = vst.msk [vmem:[#allocation2 + $0x188] sm:$0xff] %vm411, 0.0
      %463 = vst.msk [vmem:[#allocation2 + $0x190] sm:$0x3] %vm414, 0.0
      %464 = vst.msk [vmem:[#allocation2 + $0x198] sm:$0xff] %vm411, 0.0
      %465 = vst.msk [vmem:[#allocation2 + $0x1a0] sm:$0xff] %vm411, 0.0
      %466 = vst.msk [vmem:[#allocation2 + $0x1a8] sm:$0x3] %vm414, 0.0
      %s467 = scalar_lea.vmem [#allocation2], 24
      %468 = vst.msk [vmem:[%s467 + $0x1] sm:$0xff] %vm411, %v379
      %469 = vst.msk [vmem:[%s467 + $0x9] sm:$0xff] %vm411, %v380
      %470 = vst.msk [vmem:[%s467 + $0x19] sm:$0xff] %vm411, %v381
      %471 = vst.msk [vmem:[%s467 + $0x21] sm:$0xff] %vm411, %v382
      %472 = vst.msk [vmem:[%s467 + $0x31] sm:$0xff] %vm411, %v383
      %473 = vst.msk [vmem:[%s467 + $0x39] sm:$0xff] %vm411, %v384
      %474 = vst.msk [vmem:[%s467 + $0x49] sm:$0xff] %vm411, %v385
      %475 = vst.msk [vmem:[%s467 + $0x51] sm:$0xff] %vm411, %v386
      %476 = vst.msk [vmem:[%s467 + $0x61] sm:$0xff] %vm411, %v387
      %477 = vst.msk [vmem:[%s467 + $0x69] sm:$0xff] %vm411, %v388
      %478 = vst.msk [vmem:[%s467 + $0x79] sm:$0xff] %vm411, %v389
      %479 = vst.msk [vmem:[%s467 + $0x81] sm:$0xff] %vm411, %v390
      %480 = vst.msk [vmem:[%s467 + $0x91] sm:$0xff] %vm411, %v391
      %481 = vst.msk [vmem:[%s467 + $0x99] sm:$0xff] %vm411, %v392
      %482 = vst.msk [vmem:[%s467 + $0xa9] sm:$0xff] %vm411, %v393
      %483 = vst.msk [vmem:[%s467 + $0xb1] sm:$0xff] %vm411, %v394
      %484 = vst.msk [vmem:[%s467 + $0xc1] sm:$0xff] %vm411, %v395
      %485 = vst.msk [vmem:[%s467 + $0xc9] sm:$0xff] %vm411, %v396
      %486 = vst.msk [vmem:[%s467 + $0xd9] sm:$0xff] %vm411, %v397
      %487 = vst.msk [vmem:[%s467 + $0xe1] sm:$0xff] %vm411, %v398
      %488 = vst.msk [vmem:[%s467 + $0xf1] sm:$0xff] %vm411, %v399
      %489 = vst.msk [vmem:[%s467 + $0xf9] sm:$0xff] %vm411, %v400
      %490 = vst.msk [vmem:[%s467 + $0x109] sm:$0xff] %vm411, %v401
      %491 = vst.msk [vmem:[%s467 + $0x111] sm:$0xff] %vm411, %v402
      %492 = vst.msk [vmem:[%s467 + $0x121] sm:$0xff] %vm411, %v403
      %493 = vst.msk [vmem:[%s467 + $0x129] sm:$0xff] %vm411, %v404
      %494 = vst.msk [vmem:[%s467 + $0x139] sm:$0xff] %vm411, %v405
      %495 = vst.msk [vmem:[%s467 + $0x141] sm:$0xff] %vm411, %v406
      %496 = vst.msk [vmem:[%s467 + $0x151] sm:$0xff] %vm411, %v407
      %497 = vst.msk [vmem:[%s467 + $0x159] sm:$0xff] %vm411, %v408
      %498 = vst.msk [vmem:[%s467 + $0x169] sm:$0xff] %vm411, %v409
      %499 = vst.msk [vmem:[%s467 + $0x171] sm:$0xff] %vm411, %v410
      %v500 = vld [vmem:[#allocation2] sm:$0xff]
      %v501 = vld [vmem:[#allocation2 + $0x8] sm:$0xff]
      %v502 = vld [vmem:[#allocation2 + $0x18] sm:$0xff]
      %v503 = vld [vmem:[#allocation2 + $0x20] sm:$0xff]
      %v504 = vld [vmem:[#allocation2 + $0x30] sm:$0xff]
      %v505 = vld [vmem:[#allocation2 + $0x38] sm:$0xff]
      %v506 = vld [vmem:[#allocation2 + $0x48] sm:$0xff]
      %v507 = vld [vmem:[#allocation2 + $0x50] sm:$0xff]
      %v508 = vld [vmem:[#allocation2 + $0x60] sm:$0xff]
      %v509 = vld [vmem:[#allocation2 + $0x68] sm:$0xff]
      %v510 = vld [vmem:[#allocation2 + $0x78] sm:$0xff]
      %v511 = vld [vmem:[#allocation2 + $0x80] sm:$0xff]
      %v512 = vld [vmem:[#allocation2 + $0x90] sm:$0xff]
      %v513 = vld [vmem:[#allocation2 + $0x98] sm:$0xff]
      %v514 = vld [vmem:[#allocation2 + $0xa8] sm:$0xff]
      %v515 = vld [vmem:[#allocation2 + $0xb0] sm:$0xff]
      %v516 = vld [vmem:[#allocation2 + $0xc0] sm:$0xff]
      %v517 = vld [vmem:[#allocation2 + $0xc8] sm:$0xff]
      %v518 = vld [vmem:[#allocation2 + $0xd8] sm:$0xff]
      %v519 = vld [vmem:[#allocation2 + $0xe0] sm:$0xff]
      %v520 = vld [vmem:[#allocation2 + $0xf0] sm:$0xff]
      %v521 = vld [vmem:[#allocation2 + $0xf8] sm:$0xff]
      %v522 = vld [vmem:[#allocation2 + $0x108] sm:$0xff]
      %v523 = vld [vmem:[#allocation2 + $0x110] sm:$0xff]
      %v524 = vld [vmem:[#allocation2 + $0x120] sm:$0xff]
      %v525 = vld [vmem:[#allocation2 + $0x128] sm:$0xff]
      %v526 = vld [vmem:[#allocation2 + $0x138] sm:$0xff]
      %v527 = vld [vmem:[#allocation2 + $0x140] sm:$0xff]
      %v528 = vld [vmem:[#allocation2 + $0x150] sm:$0xff]
      %v529 = vld [vmem:[#allocation2 + $0x158] sm:$0xff]
      %v530 = vld [vmem:[#allocation2 + $0x168] sm:$0xff]
      %v531 = vld [vmem:[#allocation2 + $0x170] sm:$0xff]
      %v532 = vld [vmem:[#allocation2 + $0x1] sm:$0xff]
      %v533 = vld [vmem:[#allocation2 + $0x9] sm:$0xff]
      %v534 = vld [vmem:[#allocation2 + $0x19] sm:$0xff]
      %v535 = vld [vmem:[#allocation2 + $0x21] sm:$0xff]
      %v536 = vld [vmem:[#allocation2 + $0x31] sm:$0xff]
      %v537 = vld [vmem:[#allocation2 + $0x39] sm:$0xff]
      %v538 = vld [vmem:[#allocation2 + $0x49] sm:$0xff]
      %v539 = vld [vmem:[#allocation2 + $0x51] sm:$0xff]
      %v540 = vld [vmem:[#allocation2 + $0x61] sm:$0xff]
      %v541 = vld [vmem:[#allocation2 + $0x69] sm:$0xff]
      %v542 = vld [vmem:[#allocation2 + $0x79] sm:$0xff]
      %v543 = vld [vmem:[#allocation2 + $0x81] sm:$0xff]
      %v544 = vld [vmem:[#allocation2 + $0x91] sm:$0xff]
      %v545 = vld [vmem:[#allocation2 + $0x99] sm:$0xff]
      %v546 = vld [vmem:[#allocation2 + $0xa9] sm:$0xff]
      %v547 = vld [vmem:[#allocation2 + $0xb1] sm:$0xff]
      %v548 = vld [vmem:[#allocation2 + $0xc1] sm:$0xff]
      %v549 = vld [vmem:[#allocation2 + $0xc9] sm:$0xff]
      %v550 = vld [vmem:[#allocation2 + $0xd9] sm:$0xff]
      %v551 = vld [vmem:[#allocation2 + $0xe1] sm:$0xff]
      %v552 = vld [vmem:[#allocation2 + $0xf1] sm:$0xff]
      %v553 = vld [vmem:[#allocation2 + $0xf9] sm:$0xff]
      %v554 = vld [vmem:[#allocation2 + $0x109] sm:$0xff]
      %v555 = vld [vmem:[#allocation2 + $0x111] sm:$0xff]
      %v556 = vld [vmem:[#allocation2 + $0x121] sm:$0xff]
      %v557 = vld [vmem:[#allocation2 + $0x129] sm:$0xff]
      %v558 = vld [vmem:[#allocation2 + $0x139] sm:$0xff]
      %v559 = vld [vmem:[#allocation2 + $0x141] sm:$0xff]
      %v560 = vld [vmem:[#allocation2 + $0x151] sm:$0xff]
      %v561 = vld [vmem:[#allocation2 + $0x159] sm:$0xff]
      %v562 = vld [vmem:[#allocation2 + $0x169] sm:$0xff]
      %v563 = vld [vmem:[#allocation2 + $0x171] sm:$0xff]
      %v564 = vld [vmem:[#allocation2 + $0x2] sm:$0xff]
      %v565 = vld [vmem:[#allocation2 + $0xa] sm:$0xff]
      %v566 = vld [vmem:[#allocation2 + $0x1a] sm:$0xff]
      %v567 = vld [vmem:[#allocation2 + $0x22] sm:$0xff]
      %v568 = vld [vmem:[#allocation2 + $0x32] sm:$0xff]
      %v569 = vld [vmem:[#allocation2 + $0x3a] sm:$0xff]
      %v570 = vld [vmem:[#allocation2 + $0x4a] sm:$0xff]
      %v571 = vld [vmem:[#allocation2 + $0x52] sm:$0xff]
      %v572 = vld [vmem:[#allocation2 + $0x62] sm:$0xff]
      %v573 = vld [vmem:[#allocation2 + $0x6a] sm:$0xff]
      %v574 = vld [vmem:[#allocation2 + $0x7a] sm:$0xff]
      %v575 = vld [vmem:[#allocation2 + $0x82] sm:$0xff]
      %v576 = vld [vmem:[#allocation2 + $0x92] sm:$0xff]
      %v577 = vld [vmem:[#allocation2 + $0x9a] sm:$0xff]
      %v578 = vld [vmem:[#allocation2 + $0xaa] sm:$0xff]
      %v579 = vld [vmem:[#allocation2 + $0xb2] sm:$0xff]
      %v580 = vld [vmem:[#allocation2 + $0xc2] sm:$0xff]
      %v581 = vld [vmem:[#allocation2 + $0xca] sm:$0xff]
      %v582 = vld [vmem:[#allocation2 + $0xda] sm:$0xff]
      %v583 = vld [vmem:[#allocation2 + $0xe2] sm:$0xff]
      %v584 = vld [vmem:[#allocation2 + $0xf2] sm:$0xff]
      %v585 = vld [vmem:[#allocation2 + $0xfa] sm:$0xff]
      %v586 = vld [vmem:[#allocation2 + $0x10a] sm:$0xff]
      %v587 = vld [vmem:[#allocation2 + $0x112] sm:$0xff]
      %v588 = vld [vmem:[#allocation2 + $0x122] sm:$0xff]
      %v589 = vld [vmem:[#allocation2 + $0x12a] sm:$0xff]
      %v590 = vld [vmem:[#allocation2 + $0x13a] sm:$0xff]
      %v591 = vld [vmem:[#allocation2 + $0x142] sm:$0xff]
      %v592 = vld [vmem:[#allocation2 + $0x152] sm:$0xff]
      %v593 = vld [vmem:[#allocation2 + $0x15a] sm:$0xff]
      %v594 = vld [vmem:[#allocation2 + $0x16a] sm:$0xff]
      %v595 = vld [vmem:[#allocation2 + $0x172] sm:$0xff]
      %v596 = vld [vmem:[%s467] sm:$0xff]
      %v597 = vld [vmem:[%s467 + $0x8] sm:$0xff]
      %v598 = vld [vmem:[%s467 + $0x18] sm:$0xff]
      %v599 = vld [vmem:[%s467 + $0x20] sm:$0xff]
      %v600 = vld [vmem:[%s467 + $0x30] sm:$0xff]
      %v601 = vld [vmem:[%s467 + $0x38] sm:$0xff]
      %v602 = vld [vmem:[%s467 + $0x48] sm:$0xff]
      %v603 = vld [vmem:[%s467 + $0x50] sm:$0xff]
      %v604 = vld [vmem:[%s467 + $0x60] sm:$0xff]
      %v605 = vld [vmem:[%s467 + $0x68] sm:$0xff]
      %v606 = vld [vmem:[%s467 + $0x78] sm:$0xff]
      %v607 = vld [vmem:[%s467 + $0x80] sm:$0xff]
      %v608 = vld [vmem:[%s467 + $0x90] sm:$0xff]
      %v609 = vld [vmem:[%s467 + $0x98] sm:$0xff]
      %v610 = vld [vmem:[%s467 + $0xa8] sm:$0xff]
      %v611 = vld [vmem:[%s467 + $0xb0] sm:$0xff]
      %v612 = vld [vmem:[%s467 + $0xc0] sm:$0xff]
      %v613 = vld [vmem:[%s467 + $0xc8] sm:$0xff]
      %v614 = vld [vmem:[%s467 + $0xd8] sm:$0xff]
      %v615 = vld [vmem:[%s467 + $0xe0] sm:$0xff]
      %v616 = vld [vmem:[%s467 + $0xf0] sm:$0xff]
      %v617 = vld [vmem:[%s467 + $0xf8] sm:$0xff]
      %v618 = vld [vmem:[%s467 + $0x108] sm:$0xff]
      %v619 = vld [vmem:[%s467 + $0x110] sm:$0xff]
      %v620 = vld [vmem:[%s467 + $0x120] sm:$0xff]
      %v621 = vld [vmem:[%s467 + $0x128] sm:$0xff]
      %v622 = vld [vmem:[%s467 + $0x138] sm:$0xff]
      %v623 = vld [vmem:[%s467 + $0x140] sm:$0xff]
      %v624 = vld [vmem:[%s467 + $0x150] sm:$0xff]
      %v625 = vld [vmem:[%s467 + $0x158] sm:$0xff]
      %v626 = vld [vmem:[%s467 + $0x168] sm:$0xff]
      %v627 = vld [vmem:[%s467 + $0x170] sm:$0xff]
      %v628 = vld [vmem:[%s467 + $0x1] sm:$0xff]
      %v629 = vld [vmem:[%s467 + $0x9] sm:$0xff]
      %v630 = vld [vmem:[%s467 + $0x19] sm:$0xff]
      %v631 = vld [vmem:[%s467 + $0x21] sm:$0xff]
      %v632 = vld [vmem:[%s467 + $0x31] sm:$0xff]
      %v633 = vld [vmem:[%s467 + $0x39] sm:$0xff]
      %v634 = vld [vmem:[%s467 + $0x49] sm:$0xff]
      %v635 = vld [vmem:[%s467 + $0x51] sm:$0xff]
      %v636 = vld [vmem:[%s467 + $0x61] sm:$0xff]
      %v637 = vld [vmem:[%s467 + $0x69] sm:$0xff]
      %v638 = vld [vmem:[%s467 + $0x79] sm:$0xff]
      %v639 = vld [vmem:[%s467 + $0x81] sm:$0xff]
      %v640 = vld [vmem:[%s467 + $0x91] sm:$0xff]
      %v641 = vld [vmem:[%s467 + $0x99] sm:$0xff]
      %v642 = vld [vmem:[%s467 + $0xa9] sm:$0xff]
      %v643 = vld [vmem:[%s467 + $0xb1] sm:$0xff]
      %v644 = vld [vmem:[%s467 + $0xc1] sm:$0xff]
      %v645 = vld [vmem:[%s467 + $0xc9] sm:$0xff]
      %v646 = vld [vmem:[%s467 + $0xd9] sm:$0xff]
      %v647 = vld [vmem:[%s467 + $0xe1] sm:$0xff]
      %v648 = vld [vmem:[%s467 + $0xf1] sm:$0xff]
      %v649 = vld [vmem:[%s467 + $0xf9] sm:$0xff]
      %v650 = vld [vmem:[%s467 + $0x109] sm:$0xff]
      %v651 = vld [vmem:[%s467 + $0x111] sm:$0xff]
      %v652 = vld [vmem:[%s467 + $0x121] sm:$0xff]
      %v653 = vld [vmem:[%s467 + $0x129] sm:$0xff]
      %v654 = vld [vmem:[%s467 + $0x139] sm:$0xff]
      %v655 = vld [vmem:[%s467 + $0x141] sm:$0xff]
      %v656 = vld [vmem:[%s467 + $0x151] sm:$0xff]
      %v657 = vld [vmem:[%s467 + $0x159] sm:$0xff]
      %v658 = vld [vmem:[%s467 + $0x169] sm:$0xff]
      %v659 = vld [vmem:[%s467 + $0x171] sm:$0xff]
      %v660 = vld [vmem:[%s467 + $0x2] sm:$0xff]
      %v661 = vld [vmem:[%s467 + $0xa] sm:$0xff]
      %v662 = vld [vmem:[%s467 + $0x1a] sm:$0xff]
      %v663 = vld [vmem:[%s467 + $0x22] sm:$0xff]
      %v664 = vld [vmem:[%s467 + $0x32] sm:$0xff]
      %v665 = vld [vmem:[%s467 + $0x3a] sm:$0xff]
      %v666 = vld [vmem:[%s467 + $0x4a] sm:$0xff]
      %v667 = vld [vmem:[%s467 + $0x52] sm:$0xff]
      %v668 = vld [vmem:[%s467 + $0x62] sm:$0xff]
      %v669 = vld [vmem:[%s467 + $0x6a] sm:$0xff]
      %v670 = vld [vmem:[%s467 + $0x7a] sm:$0xff]
      %v671 = vld [vmem:[%s467 + $0x82] sm:$0xff]
      %v672 = vld [vmem:[%s467 + $0x92] sm:$0xff]
      %v673 = vld [vmem:[%s467 + $0x9a] sm:$0xff]
      %v674 = vld [vmem:[%s467 + $0xaa] sm:$0xff]
      %v675 = vld [vmem:[%s467 + $0xb2] sm:$0xff]
      %v676 = vld [vmem:[%s467 + $0xc2] sm:$0xff]
      %v677 = vld [vmem:[%s467 + $0xca] sm:$0xff]
      %v678 = vld [vmem:[%s467 + $0xda] sm:$0xff]
      %v679 = vld [vmem:[%s467 + $0xe2] sm:$0xff]
      %v680 = vld [vmem:[%s467 + $0xf2] sm:$0xff]
      %v681 = vld [vmem:[%s467 + $0xfa] sm:$0xff]
      %v682 = vld [vmem:[%s467 + $0x10a] sm:$0xff]
      %v683 = vld [vmem:[%s467 + $0x112] sm:$0xff]
      %v684 = vld [vmem:[%s467 + $0x122] sm:$0xff]
      %v685 = vld [vmem:[%s467 + $0x12a] sm:$0xff]
      %v686 = vld [vmem:[%s467 + $0x13a] sm:$0xff]
      %v687 = vld [vmem:[%s467 + $0x142] sm:$0xff]
      %v688 = vld [vmem:[%s467 + $0x152] sm:$0xff]
      %v689 = vld [vmem:[%s467 + $0x15a] sm:$0xff]
      %v690 = vld [vmem:[%s467 + $0x16a] sm:$0xff]
      %v691 = vld [vmem:[%s467 + $0x172] sm:$0xff]
      %s692 = scalar_lea.vmem [#allocation2], 48
      %v693 = vld [vmem:[%s692] sm:$0xff]
      %v694 = vld [vmem:[%s692 + $0x8] sm:$0xff]
      %v695 = vld [vmem:[%s692 + $0x18] sm:$0xff]
      %v696 = vld [vmem:[%s692 + $0x20] sm:$0xff]
      %v697 = vld [vmem:[%s692 + $0x30] sm:$0xff]
      %v698 = vld [vmem:[%s692 + $0x38] sm:$0xff]
      %v699 = vld [vmem:[%s692 + $0x48] sm:$0xff]
      %v700 = vld [vmem:[%s692 + $0x50] sm:$0xff]
      %v701 = vld [vmem:[%s692 + $0x60] sm:$0xff]
      %v702 = vld [vmem:[%s692 + $0x68] sm:$0xff]
      %v703 = vld [vmem:[%s692 + $0x78] sm:$0xff]
      %v704 = vld [vmem:[%s692 + $0x80] sm:$0xff]
      %v705 = vld [vmem:[%s692 + $0x90] sm:$0xff]
      %v706 = vld [vmem:[%s692 + $0x98] sm:$0xff]
      %v707 = vld [vmem:[%s692 + $0xa8] sm:$0xff]
      %v708 = vld [vmem:[%s692 + $0xb0] sm:$0xff]
      %v709 = vld [vmem:[%s692 + $0xc0] sm:$0xff]
      %v710 = vld [vmem:[%s692 + $0xc8] sm:$0xff]
      %v711 = vld [vmem:[%s692 + $0xd8] sm:$0xff]
      %v712 = vld [vmem:[%s692 + $0xe0] sm:$0xff]
      %v713 = vld [vmem:[%s692 + $0xf0] sm:$0xff]
      %v714 = vld [vmem:[%s692 + $0xf8] sm:$0xff]
      %v715 = vld [vmem:[%s692 + $0x108] sm:$0xff]
      %v716 = vld [vmem:[%s692 + $0x110] sm:$0xff]
      %v717 = vld [vmem:[%s692 + $0x120] sm:$0xff]
      %v718 = vld [vmem:[%s692 + $0x128] sm:$0xff]
      %v719 = vld [vmem:[%s692 + $0x138] sm:$0xff]
      %v720 = vld [vmem:[%s692 + $0x140] sm:$0xff]
      %v721 = vld [vmem:[%s692 + $0x150] sm:$0xff]
      %v722 = vld [vmem:[%s692 + $0x158] sm:$0xff]
      %v723 = vld [vmem:[%s692 + $0x168] sm:$0xff]
      %v724 = vld [vmem:[%s692 + $0x170] sm:$0xff]
      %v725 = vld [vmem:[%s692 + $0x1] sm:$0xff]
      %v726 = vld [vmem:[%s692 + $0x9] sm:$0xff]
      %v727 = vld [vmem:[%s692 + $0x19] sm:$0xff]
      %v728 = vld [vmem:[%s692 + $0x21] sm:$0xff]
      %v729 = vld [vmem:[%s692 + $0x31] sm:$0xff]
      %v730 = vld [vmem:[%s692 + $0x39] sm:$0xff]
      %v731 = vld [vmem:[%s692 + $0x49] sm:$0xff]
      %v732 = vld [vmem:[%s692 + $0x51] sm:$0xff]
      %v733 = vld [vmem:[%s692 + $0x61] sm:$0xff]
      %v734 = vld [vmem:[%s692 + $0x69] sm:$0xff]
      %v735 = vld [vmem:[%s692 + $0x79] sm:$0xff]
      %v736 = vld [vmem:[%s692 + $0x81] sm:$0xff]
      %v737 = vld [vmem:[%s692 + $0x91] sm:$0xff]
      %v738 = vld [vmem:[%s692 + $0x99] sm:$0xff]
      %v739 = vld [vmem:[%s692 + $0xa9] sm:$0xff]
      %v740 = vld [vmem:[%s692 + $0xb1] sm:$0xff]
      %v741 = vld [vmem:[%s692 + $0xc1] sm:$0xff]
      %v742 = vld [vmem:[%s692 + $0xc9] sm:$0xff]
      %v743 = vld [vmem:[%s692 + $0xd9] sm:$0xff]
      %v744 = vld [vmem:[%s692 + $0xe1] sm:$0xff]
      %v745 = vld [vmem:[%s692 + $0xf1] sm:$0xff]
      %v746 = vld [vmem:[%s692 + $0xf9] sm:$0xff]
      %v747 = vld [vmem:[%s692 + $0x109] sm:$0xff]
      %v748 = vld [vmem:[%s692 + $0x111] sm:$0xff]
      %v749 = vld [vmem:[%s692 + $0x121] sm:$0xff]
      %v750 = vld [vmem:[%s692 + $0x129] sm:$0xff]
      %v751 = vld [vmem:[%s692 + $0x139] sm:$0xff]
      %v752 = vld [vmem:[%s692 + $0x141] sm:$0xff]
      %v753 = vld [vmem:[%s692 + $0x151] sm:$0xff]
      %v754 = vld [vmem:[%s692 + $0x159] sm:$0xff]
      %v755 = vld [vmem:[%s692 + $0x169] sm:$0xff]
      %v756 = vld [vmem:[%s692 + $0x171] sm:$0xff]
      %v757 = vld [vmem:[%s692 + $0x2] sm:$0xff]
      %v758 = vld [vmem:[%s692 + $0xa] sm:$0xff]
      %v759 = vld [vmem:[%s692 + $0x1a] sm:$0xff]
      %v760 = vld [vmem:[%s692 + $0x22] sm:$0xff]
      %v761 = vld [vmem:[%s692 + $0x32] sm:$0xff]
      %v762 = vld [vmem:[%s692 + $0x3a] sm:$0xff]
      %v763 = vld [vmem:[%s692 + $0x4a] sm:$0xff]
      %v764 = vld [vmem:[%s692 + $0x52] sm:$0xff]
      %v765 = vld [vmem:[%s692 + $0x62] sm:$0xff]
      %v766 = vld [vmem:[%s692 + $0x6a] sm:$0xff]
      %v767 = vld [vmem:[%s692 + $0x7a] sm:$0xff]
      %v768 = vld [vmem:[%s692 + $0x82] sm:$0xff]
      %v769 = vld [vmem:[%s692 + $0x92] sm:$0xff]
      %v770 = vld [vmem:[%s692 + $0x9a] sm:$0xff]
      %v771 = vld [vmem:[%s692 + $0xaa] sm:$0xff]
      %v772 = vld [vmem:[%s692 + $0xb2] sm:$0xff]
      %v773 = vld [vmem:[%s692 + $0xc2] sm:$0xff]
      %v774 = vld [vmem:[%s692 + $0xca] sm:$0xff]
      %v775 = vld [vmem:[%s692 + $0xda] sm:$0xff]
      %v776 = vld [vmem:[%s692 + $0xe2] sm:$0xff]
      %v777 = vld [vmem:[%s692 + $0xf2] sm:$0xff]
      %v778 = vld [vmem:[%s692 + $0xfa] sm:$0xff]
      %v779 = vld [vmem:[%s692 + $0x10a] sm:$0xff]
      %v780 = vld [vmem:[%s692 + $0x112] sm:$0xff]
      %v781 = vld [vmem:[%s692 + $0x122] sm:$0xff]
      %v782 = vld [vmem:[%s692 + $0x12a] sm:$0xff]
      %v783 = vld [vmem:[%s692 + $0x13a] sm:$0xff]
      %v784 = vld [vmem:[%s692 + $0x142] sm:$0xff]
      %v785 = vld [vmem:[%s692 + $0x152] sm:$0xff]
      %v786 = vld [vmem:[%s692 + $0x15a] sm:$0xff]
      %v787 = vld [vmem:[%s692 + $0x16a] sm:$0xff]
      %v788 = vld [vmem:[%s692 + $0x172] sm:$0xff]
      %821 = vrot.lane.b32.xlu0 %v532, 32
      %v822 = vpop.permute.xlu0 %821
      %823 = vrot.lane.b32.xlu0 %v533, 32
      %v824 = vpop.permute.xlu0 %823
      %825 = vrot.lane.b32.xlu0 %v534, 32
      %v826 = vpop.permute.xlu0 %825
      %827 = vrot.lane.b32.xlu0 %v535, 32
      %v828 = vpop.permute.xlu0 %827
      %829 = vrot.lane.b32.xlu0 %v536, 32
      %v830 = vpop.permute.xlu0 %829
      %831 = vrot.lane.b32.xlu0 %v537, 32
      %v832 = vpop.permute.xlu0 %831
      %833 = vrot.lane.b32.xlu0 %v538, 32
      %v834 = vpop.permute.xlu0 %833
      %835 = vrot.lane.b32.xlu0 %v539, 32
      %v836 = vpop.permute.xlu0 %835
      %837 = vrot.lane.b32.xlu0 %v540, 32
      %v838 = vpop.permute.xlu0 %837
      %839 = vrot.lane.b32.xlu0 %v541, 32
      %v840 = vpop.permute.xlu0 %839
      %841 = vrot.lane.b32.xlu0 %v542, 32
      %v842 = vpop.permute.xlu0 %841
      %843 = vrot.lane.b32.xlu0 %v543, 32
      %v844 = vpop.permute.xlu0 %843
      %845 = vrot.lane.b32.xlu0 %v544, 32
      %v846 = vpop.permute.xlu0 %845
      %847 = vrot.lane.b32.xlu0 %v545, 32
      %v848 = vpop.permute.xlu0 %847
      %849 = vrot.lane.b32.xlu0 %v546, 32
      %v850 = vpop.permute.xlu0 %849
      %851 = vrot.lane.b32.xlu0 %v547, 32
      %v852 = vpop.permute.xlu0 %851
      %853 = vrot.lane.b32.xlu0 %v548, 32
      %v854 = vpop.permute.xlu0 %853
      %855 = vrot.lane.b32.xlu0 %v549, 32
      %v856 = vpop.permute.xlu0 %855
      %857 = vrot.lane.b32.xlu0 %v550, 32
      %v858 = vpop.permute.xlu0 %857
      %859 = vrot.lane.b32.xlu0 %v551, 32
      %v860 = vpop.permute.xlu0 %859
      %861 = vrot.lane.b32.xlu0 %v552, 32
      %v862 = vpop.permute.xlu0 %861
      %863 = vrot.lane.b32.xlu0 %v553, 32
      %v864 = vpop.permute.xlu0 %863
      %865 = vrot.lane.b32.xlu0 %v554, 32
      %v866 = vpop.permute.xlu0 %865
      %867 = vrot.lane.b32.xlu0 %v555, 32
      %v868 = vpop.permute.xlu0 %867
      %869 = vrot.lane.b32.xlu0 %v556, 32
      %v870 = vpop.permute.xlu0 %869
      %871 = vrot.lane.b32.xlu0 %v557, 32
      %v872 = vpop.permute.xlu0 %871
      %873 = vrot.lane.b32.xlu0 %v558, 32
      %v874 = vpop.permute.xlu0 %873
      %875 = vrot.lane.b32.xlu0 %v559, 32
      %v876 = vpop.permute.xlu0 %875
      %877 = vrot.lane.b32.xlu0 %v560, 32
      %v878 = vpop.permute.xlu0 %877
      %879 = vrot.lane.b32.xlu0 %v561, 32
      %v880 = vpop.permute.xlu0 %879
      %881 = vrot.lane.b32.xlu0 %v562, 32
      %v882 = vpop.permute.xlu0 %881
      %883 = vrot.lane.b32.xlu0 %v563, 32
      %v884 = vpop.permute.xlu0 %883
      %949 = vrot.lane.b32.xlu0 %v564, 64
      %v950 = vpop.permute.xlu0 %949
      %951 = vrot.lane.b32.xlu0 %v565, 64
      %v952 = vpop.permute.xlu0 %951
      %953 = vrot.lane.b32.xlu0 %v566, 64
      %v954 = vpop.permute.xlu0 %953
      %955 = vrot.lane.b32.xlu0 %v567, 64
      %v956 = vpop.permute.xlu0 %955
      %957 = vrot.lane.b32.xlu0 %v568, 64
      %v958 = vpop.permute.xlu0 %957
      %959 = vrot.lane.b32.xlu0 %v569, 64
      %v960 = vpop.permute.xlu0 %959
      %961 = vrot.lane.b32.xlu0 %v570, 64
      %v962 = vpop.permute.xlu0 %961
      %963 = vrot.lane.b32.xlu0 %v571, 64
      %v964 = vpop.permute.xlu0 %963
      %965 = vrot.lane.b32.xlu0 %v572, 64
      %v966 = vpop.permute.xlu0 %965
      %967 = vrot.lane.b32.xlu0 %v573, 64
      %v968 = vpop.permute.xlu0 %967
      %969 = vrot.lane.b32.xlu0 %v574, 64
      %v970 = vpop.permute.xlu0 %969
      %971 = vrot.lane.b32.xlu0 %v575, 64
      %v972 = vpop.permute.xlu0 %971
      %973 = vrot.lane.b32.xlu0 %v576, 64
      %v974 = vpop.permute.xlu0 %973
      %975 = vrot.lane.b32.xlu0 %v577, 64
      %v976 = vpop.permute.xlu0 %975
      %977 = vrot.lane.b32.xlu0 %v578, 64
      %v978 = vpop.permute.xlu0 %977
      %979 = vrot.lane.b32.xlu0 %v579, 64
      %v980 = vpop.permute.xlu0 %979
      %981 = vrot.lane.b32.xlu0 %v580, 64
      %v982 = vpop.permute.xlu0 %981
      %983 = vrot.lane.b32.xlu0 %v581, 64
      %v984 = vpop.permute.xlu0 %983
      %985 = vrot.lane.b32.xlu0 %v582, 64
      %v986 = vpop.permute.xlu0 %985
      %987 = vrot.lane.b32.xlu0 %v583, 64
      %v988 = vpop.permute.xlu0 %987
      %989 = vrot.lane.b32.xlu0 %v584, 64
      %v990 = vpop.permute.xlu0 %989
      %991 = vrot.lane.b32.xlu0 %v585, 64
      %v992 = vpop.permute.xlu0 %991
      %993 = vrot.lane.b32.xlu0 %v586, 64
      %v994 = vpop.permute.xlu0 %993
      %995 = vrot.lane.b32.xlu0 %v587, 64
      %v996 = vpop.permute.xlu0 %995
      %997 = vrot.lane.b32.xlu0 %v588, 64
      %v998 = vpop.permute.xlu0 %997
      %999 = vrot.lane.b32.xlu0 %v589, 64
      %v1000 = vpop.permute.xlu0 %999
      %1001 = vrot.lane.b32.xlu0 %v590, 64
      %v1002 = vpop.permute.xlu0 %1001
      %1003 = vrot.lane.b32.xlu0 %v591, 64
      %v1004 = vpop.permute.xlu0 %1003
      %1005 = vrot.lane.b32.xlu0 %v592, 64
      %v1006 = vpop.permute.xlu0 %1005
      %1007 = vrot.lane.b32.xlu0 %v593, 64
      %v1008 = vpop.permute.xlu0 %1007
      %1009 = vrot.lane.b32.xlu0 %v594, 64
      %v1010 = vpop.permute.xlu0 %1009
      %1011 = vrot.lane.b32.xlu0 %v595, 64
      %v1012 = vpop.permute.xlu0 %1011
      %1077 = vrot.lane.b32.xlu0 %v596, 96
      %v1078 = vpop.permute.xlu0 %1077
      %1079 = vrot.lane.b32.xlu0 %v597, 96
      %v1080 = vpop.permute.xlu0 %1079
      %1081 = vrot.lane.b32.xlu0 %v598, 96
      %v1082 = vpop.permute.xlu0 %1081
      %1083 = vrot.lane.b32.xlu0 %v599, 96
      %v1084 = vpop.permute.xlu0 %1083
      %1085 = vrot.lane.b32.xlu0 %v600, 96
      %v1086 = vpop.permute.xlu0 %1085
      %1087 = vrot.lane.b32.xlu0 %v601, 96
      %v1088 = vpop.permute.xlu0 %1087
      %1089 = vrot.lane.b32.xlu0 %v602, 96
      %v1090 = vpop.permute.xlu0 %1089
      %1091 = vrot.lane.b32.xlu0 %v603, 96
      %v1092 = vpop.permute.xlu0 %1091
      %1093 = vrot.lane.b32.xlu0 %v604, 96
      %v1094 = vpop.permute.xlu0 %1093
      %1095 = vrot.lane.b32.xlu0 %v605, 96
      %v1096 = vpop.permute.xlu0 %1095
      %1097 = vrot.lane.b32.xlu0 %v606, 96
      %v1098 = vpop.permute.xlu0 %1097
      %1099 = vrot.lane.b32.xlu0 %v607, 96
      %v1100 = vpop.permute.xlu0 %1099
      %1101 = vrot.lane.b32.xlu0 %v608, 96
      %v1102 = vpop.permute.xlu0 %1101
      %1103 = vrot.lane.b32.xlu0 %v609, 96
      %v1104 = vpop.permute.xlu0 %1103
      %1105 = vrot.lane.b32.xlu0 %v610, 96
      %v1106 = vpop.permute.xlu0 %1105
      %1107 = vrot.lane.b32.xlu0 %v611, 96
      %v1108 = vpop.permute.xlu0 %1107
      %1109 = vrot.lane.b32.xlu0 %v612, 96
      %v1110 = vpop.permute.xlu0 %1109
      %1111 = vrot.lane.b32.xlu0 %v613, 96
      %v1112 = vpop.permute.xlu0 %1111
      %1113 = vrot.lane.b32.xlu0 %v614, 96
      %v1114 = vpop.permute.xlu0 %1113
      %1115 = vrot.lane.b32.xlu0 %v615, 96
      %v1116 = vpop.permute.xlu0 %1115
      %1117 = vrot.lane.b32.xlu0 %v616, 96
      %v1118 = vpop.permute.xlu0 %1117
      %1119 = vrot.lane.b32.xlu0 %v617, 96
      %v1120 = vpop.permute.xlu0 %1119
      %1121 = vrot.lane.b32.xlu0 %v618, 96
      %v1122 = vpop.permute.xlu0 %1121
      %1123 = vrot.lane.b32.xlu0 %v619, 96
      %v1124 = vpop.permute.xlu0 %1123
      %1125 = vrot.lane.b32.xlu0 %v620, 96
      %v1126 = vpop.permute.xlu0 %1125
      %1127 = vrot.lane.b32.xlu0 %v621, 96
      %v1128 = vpop.permute.xlu0 %1127
      %1129 = vrot.lane.b32.xlu0 %v622, 96
      %v1130 = vpop.permute.xlu0 %1129
      %1131 = vrot.lane.b32.xlu0 %v623, 96
      %v1132 = vpop.permute.xlu0 %1131
      %1133 = vrot.lane.b32.xlu0 %v624, 96
      %v1134 = vpop.permute.xlu0 %1133
      %1135 = vrot.lane.b32.xlu0 %v625, 96
      %v1136 = vpop.permute.xlu0 %1135
      %1137 = vrot.lane.b32.xlu0 %v626, 96
      %v1138 = vpop.permute.xlu0 %1137
      %1139 = vrot.lane.b32.xlu0 %v627, 96
      %v1140 = vpop.permute.xlu0 %1139
      %1205 = vrot.lane.b32.xlu0 %v660, 32
      %v1206 = vpop.permute.xlu0 %1205
      %1207 = vrot.lane.b32.xlu0 %v661, 32
      %v1208 = vpop.permute.xlu0 %1207
      %1209 = vrot.lane.b32.xlu0 %v662, 32
      %v1210 = vpop.permute.xlu0 %1209
      %1211 = vrot.lane.b32.xlu0 %v663, 32
      %v1212 = vpop.permute.xlu0 %1211
      %1213 = vrot.lane.b32.xlu0 %v664, 32
      %v1214 = vpop.permute.xlu0 %1213
      %1215 = vrot.lane.b32.xlu0 %v665, 32
      %v1216 = vpop.permute.xlu0 %1215
      %1217 = vrot.lane.b32.xlu0 %v666, 32
      %v1218 = vpop.permute.xlu0 %1217
      %1219 = vrot.lane.b32.xlu0 %v667, 32
      %v1220 = vpop.permute.xlu0 %1219
      %1221 = vrot.lane.b32.xlu0 %v668, 32
      %v1222 = vpop.permute.xlu0 %1221
      %1223 = vrot.lane.b32.xlu0 %v669, 32
      %v1224 = vpop.permute.xlu0 %1223
      %1225 = vrot.lane.b32.xlu0 %v670, 32
      %v1226 = vpop.permute.xlu0 %1225
      %1227 = vrot.lane.b32.xlu0 %v671, 32
      %v1228 = vpop.permute.xlu0 %1227
      %1229 = vrot.lane.b32.xlu0 %v672, 32
      %v1230 = vpop.permute.xlu0 %1229
      %1231 = vrot.lane.b32.xlu0 %v673, 32
      %v1232 = vpop.permute.xlu0 %1231
      %1233 = vrot.lane.b32.xlu0 %v674, 32
      %v1234 = vpop.permute.xlu0 %1233
      %1235 = vrot.lane.b32.xlu0 %v675, 32
      %v1236 = vpop.permute.xlu0 %1235
      %1237 = vrot.lane.b32.xlu0 %v676, 32
      %v1238 = vpop.permute.xlu0 %1237
      %1239 = vrot.lane.b32.xlu0 %v677, 32
      %v1240 = vpop.permute.xlu0 %1239
      %1241 = vrot.lane.b32.xlu0 %v678, 32
      %v1242 = vpop.permute.xlu0 %1241
      %1243 = vrot.lane.b32.xlu0 %v679, 32
      %v1244 = vpop.permute.xlu0 %1243
      %1245 = vrot.lane.b32.xlu0 %v680, 32
      %v1246 = vpop.permute.xlu0 %1245
      %1247 = vrot.lane.b32.xlu0 %v681, 32
      %v1248 = vpop.permute.xlu0 %1247
      %1249 = vrot.lane.b32.xlu0 %v682, 32
      %v1250 = vpop.permute.xlu0 %1249
      %1251 = vrot.lane.b32.xlu0 %v683, 32
      %v1252 = vpop.permute.xlu0 %1251
      %1253 = vrot.lane.b32.xlu0 %v684, 32
      %v1254 = vpop.permute.xlu0 %1253
      %1255 = vrot.lane.b32.xlu0 %v685, 32
      %v1256 = vpop.permute.xlu0 %1255
      %1257 = vrot.lane.b32.xlu0 %v686, 32
      %v1258 = vpop.permute.xlu0 %1257
      %1259 = vrot.lane.b32.xlu0 %v687, 32
      %v1260 = vpop.permute.xlu0 %1259
      %1261 = vrot.lane.b32.xlu0 %v688, 32
      %v1262 = vpop.permute.xlu0 %1261
      %1263 = vrot.lane.b32.xlu0 %v689, 32
      %v1264 = vpop.permute.xlu0 %1263
      %1265 = vrot.lane.b32.xlu0 %v690, 32
      %v1266 = vpop.permute.xlu0 %1265
      %1267 = vrot.lane.b32.xlu0 %v691, 32
      %v1268 = vpop.permute.xlu0 %1267
      %1333 = vrot.lane.b32.xlu0 %v693, 64
      %v1334 = vpop.permute.xlu0 %1333
      %1335 = vrot.lane.b32.xlu0 %v694, 64
      %v1336 = vpop.permute.xlu0 %1335
      %1337 = vrot.lane.b32.xlu0 %v695, 64
      %v1338 = vpop.permute.xlu0 %1337
      %1339 = vrot.lane.b32.xlu0 %v696, 64
      %v1340 = vpop.permute.xlu0 %1339
      %1341 = vrot.lane.b32.xlu0 %v697, 64
      %v1342 = vpop.permute.xlu0 %1341
      %1343 = vrot.lane.b32.xlu0 %v698, 64
      %v1344 = vpop.permute.xlu0 %1343
      %1345 = vrot.lane.b32.xlu0 %v699, 64
      %v1346 = vpop.permute.xlu0 %1345
      %1347 = vrot.lane.b32.xlu0 %v700, 64
      %v1348 = vpop.permute.xlu0 %1347
      %1349 = vrot.lane.b32.xlu0 %v701, 64
      %v1350 = vpop.permute.xlu0 %1349
      %1351 = vrot.lane.b32.xlu0 %v702, 64
      %v1352 = vpop.permute.xlu0 %1351
      %1353 = vrot.lane.b32.xlu0 %v703, 64
      %v1354 = vpop.permute.xlu0 %1353
      %1355 = vrot.lane.b32.xlu0 %v704, 64
      %v1356 = vpop.permute.xlu0 %1355
      %1357 = vrot.lane.b32.xlu0 %v705, 64
      %v1358 = vpop.permute.xlu0 %1357
      %1359 = vrot.lane.b32.xlu0 %v706, 64
      %v1360 = vpop.permute.xlu0 %1359
      %1361 = vrot.lane.b32.xlu0 %v707, 64
      %v1362 = vpop.permute.xlu0 %1361
      %1363 = vrot.lane.b32.xlu0 %v708, 64
      %v1364 = vpop.permute.xlu0 %1363
      %1365 = vrot.lane.b32.xlu0 %v709, 64
      %v1366 = vpop.permute.xlu0 %1365
      %1367 = vrot.lane.b32.xlu0 %v710, 64
      %v1368 = vpop.permute.xlu0 %1367
      %1369 = vrot.lane.b32.xlu0 %v711, 64
      %v1370 = vpop.permute.xlu0 %1369
      %1371 = vrot.lane.b32.xlu0 %v712, 64
      %v1372 = vpop.permute.xlu0 %1371
      %1373 = vrot.lane.b32.xlu0 %v713, 64
      %v1374 = vpop.permute.xlu0 %1373
      %1375 = vrot.lane.b32.xlu0 %v714, 64
      %v1376 = vpop.permute.xlu0 %1375
      %1377 = vrot.lane.b32.xlu0 %v715, 64
      %v1378 = vpop.permute.xlu0 %1377
      %1379 = vrot.lane.b32.xlu0 %v716, 64
      %v1380 = vpop.permute.xlu0 %1379
      %1381 = vrot.lane.b32.xlu0 %v717, 64
      %v1382 = vpop.permute.xlu0 %1381
      %1383 = vrot.lane.b32.xlu0 %v718, 64
      %v1384 = vpop.permute.xlu0 %1383
      %1385 = vrot.lane.b32.xlu0 %v719, 64
      %v1386 = vpop.permute.xlu0 %1385
      %1387 = vrot.lane.b32.xlu0 %v720, 64
      %v1388 = vpop.permute.xlu0 %1387
      %1389 = vrot.lane.b32.xlu0 %v721, 64
      %v1390 = vpop.permute.xlu0 %1389
      %1391 = vrot.lane.b32.xlu0 %v722, 64
      %v1392 = vpop.permute.xlu0 %1391
      %1393 = vrot.lane.b32.xlu0 %v723, 64
      %v1394 = vpop.permute.xlu0 %1393
      %1395 = vrot.lane.b32.xlu0 %v724, 64
      %v1396 = vpop.permute.xlu0 %1395
      %1461 = vrot.lane.b32.xlu0 %v725, 96
      %v1462 = vpop.permute.xlu0 %1461
      %1463 = vrot.lane.b32.xlu0 %v726, 96
      %v1464 = vpop.permute.xlu0 %1463
      %1465 = vrot.lane.b32.xlu0 %v727, 96
      %v1466 = vpop.permute.xlu0 %1465
      %1467 = vrot.lane.b32.xlu0 %v728, 96
      %v1468 = vpop.permute.xlu0 %1467
      %1469 = vrot.lane.b32.xlu0 %v729, 96
      %v1470 = vpop.permute.xlu0 %1469
      %1471 = vrot.lane.b32.xlu0 %v730, 96
      %v1472 = vpop.permute.xlu0 %1471
      %1473 = vrot.lane.b32.xlu0 %v731, 96
      %v1474 = vpop.permute.xlu0 %1473
      %1475 = vrot.lane.b32.xlu0 %v732, 96
      %v1476 = vpop.permute.xlu0 %1475
      %1477 = vrot.lane.b32.xlu0 %v733, 96
      %v1478 = vpop.permute.xlu0 %1477
      %1479 = vrot.lane.b32.xlu0 %v734, 96
      %v1480 = vpop.permute.xlu0 %1479
      %1481 = vrot.lane.b32.xlu0 %v735, 96
      %v1482 = vpop.permute.xlu0 %1481
      %1483 = vrot.lane.b32.xlu0 %v736, 96
      %v1484 = vpop.permute.xlu0 %1483
      %1485 = vrot.lane.b32.xlu0 %v737, 96
      %v1486 = vpop.permute.xlu0 %1485
      %1487 = vrot.lane.b32.xlu0 %v738, 96
      %v1488 = vpop.permute.xlu0 %1487
      %1489 = vrot.lane.b32.xlu0 %v739, 96
      %v1490 = vpop.permute.xlu0 %1489
      %1491 = vrot.lane.b32.xlu0 %v740, 96
      %v1492 = vpop.permute.xlu0 %1491
      %1493 = vrot.lane.b32.xlu0 %v741, 96
      %v1494 = vpop.permute.xlu0 %1493
      %1495 = vrot.lane.b32.xlu0 %v742, 96
      %v1496 = vpop.permute.xlu0 %1495
      %1497 = vrot.lane.b32.xlu0 %v743, 96
      %v1498 = vpop.permute.xlu0 %1497
      %1499 = vrot.lane.b32.xlu0 %v744, 96
      %v1500 = vpop.permute.xlu0 %1499
      %1501 = vrot.lane.b32.xlu0 %v745, 96
      %v1502 = vpop.permute.xlu0 %1501
      %1503 = vrot.lane.b32.xlu0 %v746, 96
      %v1504 = vpop.permute.xlu0 %1503
      %1505 = vrot.lane.b32.xlu0 %v747, 96
      %v1506 = vpop.permute.xlu0 %1505
      %1507 = vrot.lane.b32.xlu0 %v748, 96
      %v1508 = vpop.permute.xlu0 %1507
      %1509 = vrot.lane.b32.xlu0 %v749, 96
      %v1510 = vpop.permute.xlu0 %1509
      %1511 = vrot.lane.b32.xlu0 %v750, 96
      %v1512 = vpop.permute.xlu0 %1511
      %1513 = vrot.lane.b32.xlu0 %v751, 96
      %v1514 = vpop.permute.xlu0 %1513
      %1515 = vrot.lane.b32.xlu0 %v752, 96
      %v1516 = vpop.permute.xlu0 %1515
      %1517 = vrot.lane.b32.xlu0 %v753, 96
      %v1518 = vpop.permute.xlu0 %1517
      %1519 = vrot.lane.b32.xlu0 %v754, 96
      %v1520 = vpop.permute.xlu0 %1519
      %1521 = vrot.lane.b32.xlu0 %v755, 96
      %v1522 = vpop.permute.xlu0 %1521
      %1523 = vrot.lane.b32.xlu0 %v756, 96
      %v1524 = vpop.permute.xlu0 %1523
      %v1557 = vsel %vm411, %v500, %v822
      %v1558 = vsel %vm411, %v501, %v824
      %v1559 = vsel %vm411, %v502, %v826
      %v1560 = vsel %vm411, %v503, %v828
      %v1561 = vsel %vm411, %v504, %v830
      %v1562 = vsel %vm411, %v505, %v832
      %v1563 = vsel %vm411, %v506, %v834
      %v1564 = vsel %vm411, %v507, %v836
      %v1565 = vsel %vm411, %v508, %v838
      %v1566 = vsel %vm411, %v509, %v840
      %v1567 = vsel %vm411, %v510, %v842
      %v1568 = vsel %vm411, %v511, %v844
      %v1569 = vsel %vm411, %v512, %v846
      %v1570 = vsel %vm411, %v513, %v848
      %v1571 = vsel %vm411, %v514, %v850
      %v1572 = vsel %vm411, %v515, %v852
      %v1573 = vsel %vm411, %v516, %v854
      %v1574 = vsel %vm411, %v517, %v856
      %v1575 = vsel %vm411, %v518, %v858
      %v1576 = vsel %vm411, %v519, %v860
      %v1577 = vsel %vm411, %v520, %v862
      %v1578 = vsel %vm411, %v521, %v864
      %v1579 = vsel %vm411, %v522, %v866
      %v1580 = vsel %vm411, %v523, %v868
      %v1581 = vsel %vm411, %v524, %v870
      %v1582 = vsel %vm411, %v525, %v872
      %v1583 = vsel %vm411, %v526, %v874
      %v1584 = vsel %vm411, %v527, %v876
      %v1585 = vsel %vm411, %v528, %v878
      %v1586 = vsel %vm411, %v529, %v880
      %v1587 = vsel %vm411, %v530, %v882
      %v1588 = vsel %vm411, %v531, %v884
      %vm1589 = vcmask 523264
      %v1590 = vsel %vm1589, %v1557, %v950
      %v1591 = vsel %vm1589, %v1558, %v952
      %v1592 = vsel %vm1589, %v1559, %v954
      %v1593 = vsel %vm1589, %v1560, %v956
      %v1594 = vsel %vm1589, %v1561, %v958
      %v1595 = vsel %vm1589, %v1562, %v960
      %v1596 = vsel %vm1589, %v1563, %v962
      %v1597 = vsel %vm1589, %v1564, %v964
      %v1598 = vsel %vm1589, %v1565, %v966
      %v1599 = vsel %vm1589, %v1566, %v968
      %v1600 = vsel %vm1589, %v1567, %v970
      %v1601 = vsel %vm1589, %v1568, %v972
      %v1602 = vsel %vm1589, %v1569, %v974
      %v1603 = vsel %vm1589, %v1570, %v976
      %v1604 = vsel %vm1589, %v1571, %v978
      %v1605 = vsel %vm1589, %v1572, %v980
      %v1606 = vsel %vm1589, %v1573, %v982
      %v1607 = vsel %vm1589, %v1574, %v984
      %v1608 = vsel %vm1589, %v1575, %v986
      %v1609 = vsel %vm1589, %v1576, %v988
      %v1610 = vsel %vm1589, %v1577, %v990
      %v1611 = vsel %vm1589, %v1578, %v992
      %v1612 = vsel %vm1589, %v1579, %v994
      %v1613 = vsel %vm1589, %v1580, %v996
      %v1614 = vsel %vm1589, %v1581, %v998
      %v1615 = vsel %vm1589, %v1582, %v1000
      %v1616 = vsel %vm1589, %v1583, %v1002
      %v1617 = vsel %vm1589, %v1584, %v1004
      %v1618 = vsel %vm1589, %v1585, %v1006
      %v1619 = vsel %vm1589, %v1586, %v1008
      %v1620 = vsel %vm1589, %v1587, %v1010
      %v1621 = vsel %vm1589, %v1588, %v1012
      %vm1622 = vcmask 785408
      %v1623 = vsel %vm1622, %v1590, %v1078
      %v1624 = vsel %vm1622, %v1591, %v1080
      %v1625 = vsel %vm1622, %v1592, %v1082
      %v1626 = vsel %vm1622, %v1593, %v1084
      %v1627 = vsel %vm1622, %v1594, %v1086
      %v1628 = vsel %vm1622, %v1595, %v1088
      %v1629 = vsel %vm1622, %v1596, %v1090
      %v1630 = vsel %vm1622, %v1597, %v1092
      %v1631 = vsel %vm1622, %v1598, %v1094
      %v1632 = vsel %vm1622, %v1599, %v1096
      %v1633 = vsel %vm1622, %v1600, %v1098
      %v1634 = vsel %vm1622, %v1601, %v1100
      %v1635 = vsel %vm1622, %v1602, %v1102
      %v1636 = vsel %vm1622, %v1603, %v1104
      %v1637 = vsel %vm1622, %v1604, %v1106
      %v1638 = vsel %vm1622, %v1605, %v1108
      %v1639 = vsel %vm1622, %v1606, %v1110
      %v1640 = vsel %vm1622, %v1607, %v1112
      %v1641 = vsel %vm1622, %v1608, %v1114
      %v1642 = vsel %vm1622, %v1609, %v1116
      %v1643 = vsel %vm1622, %v1610, %v1118
      %v1644 = vsel %vm1622, %v1611, %v1120
      %v1645 = vsel %vm1622, %v1612, %v1122
      %v1646 = vsel %vm1622, %v1613, %v1124
      %v1647 = vsel %vm1622, %v1614, %v1126
      %v1648 = vsel %vm1622, %v1615, %v1128
      %v1649 = vsel %vm1622, %v1616, %v1130
      %v1650 = vsel %vm1622, %v1617, %v1132
      %v1651 = vsel %vm1622, %v1618, %v1134
      %v1652 = vsel %vm1622, %v1619, %v1136
      %v1653 = vsel %vm1622, %v1620, %v1138
      %v1654 = vsel %vm1622, %v1621, %v1140
      %v1655 = vsel %vm411, %v628, %v1206
      %v1656 = vsel %vm411, %v629, %v1208
      %v1657 = vsel %vm411, %v630, %v1210
      %v1658 = vsel %vm411, %v631, %v1212
      %v1659 = vsel %vm411, %v632, %v1214
      %v1660 = vsel %vm411, %v633, %v1216
      %v1661 = vsel %vm411, %v634, %v1218
      %v1662 = vsel %vm411, %v635, %v1220
      %v1663 = vsel %vm411, %v636, %v1222
      %v1664 = vsel %vm411, %v637, %v1224
      %v1665 = vsel %vm411, %v638, %v1226
      %v1666 = vsel %vm411, %v639, %v1228
      %v1667 = vsel %vm411, %v640, %v1230
      %v1668 = vsel %vm411, %v641, %v1232
      %v1669 = vsel %vm411, %v642, %v1234
      %v1670 = vsel %vm411, %v643, %v1236
      %v1671 = vsel %vm411, %v644, %v1238
      %v1672 = vsel %vm411, %v645, %v1240
      %v1673 = vsel %vm411, %v646, %v1242
      %v1674 = vsel %vm411, %v647, %v1244
      %v1675 = vsel %vm411, %v648, %v1246
      %v1676 = vsel %vm411, %v649, %v1248
      %v1677 = vsel %vm411, %v650, %v1250
      %v1678 = vsel %vm411, %v651, %v1252
      %v1679 = vsel %vm411, %v652, %v1254
      %v1680 = vsel %vm411, %v653, %v1256
      %v1681 = vsel %vm411, %v654, %v1258
      %v1682 = vsel %vm411, %v655, %v1260
      %v1683 = vsel %vm411, %v656, %v1262
      %v1684 = vsel %vm411, %v657, %v1264
      %v1685 = vsel %vm411, %v658, %v1266
      %v1686 = vsel %vm411, %v659, %v1268
      %v1687 = vsel %vm1589, %v1655, %v1334
      %v1688 = vsel %vm1589, %v1656, %v1336
      %v1689 = vsel %vm1589, %v1657, %v1338
      %v1690 = vsel %vm1589, %v1658, %v1340
      %v1691 = vsel %vm1589, %v1659, %v1342
      %v1692 = vsel %vm1589, %v1660, %v1344
      %v1693 = vsel %vm1589, %v1661, %v1346
      %v1694 = vsel %vm1589, %v1662, %v1348
      %v1695 = vsel %vm1589, %v1663, %v1350
      %v1696 = vsel %vm1589, %v1664, %v1352
      %v1697 = vsel %vm1589, %v1665, %v1354
      %v1698 = vsel %vm1589, %v1666, %v1356
      %v1699 = vsel %vm1589, %v1667, %v1358
      %v1700 = vsel %vm1589, %v1668, %v1360
      %v1701 = vsel %vm1589, %v1669, %v1362
      %v1702 = vsel %vm1589, %v1670, %v1364
      %v1703 = vsel %vm1589, %v1671, %v1366
      %v1704 = vsel %vm1589, %v1672, %v1368
      %v1705 = vsel %vm1589, %v1673, %v1370
      %v1706 = vsel %vm1589, %v1674, %v1372
      %v1707 = vsel %vm1589, %v1675, %v1374
      %v1708 = vsel %vm1589, %v1676, %v1376
      %v1709 = vsel %vm1589, %v1677, %v1378
      %v1710 = vsel %vm1589, %v1678, %v1380
      %v1711 = vsel %vm1589, %v1679, %v1382
      %v1712 = vsel %vm1589, %v1680, %v1384
      %v1713 = vsel %vm1589, %v1681, %v1386
      %v1714 = vsel %vm1589, %v1682, %v1388
      %v1715 = vsel %vm1589, %v1683, %v1390
      %v1716 = vsel %vm1589, %v1684, %v1392
      %v1717 = vsel %vm1589, %v1685, %v1394
      %v1718 = vsel %vm1589, %v1686, %v1396
      %v1719 = vsel %vm1622, %v1687, %v1462
      %v1720 = vsel %vm1622, %v1688, %v1464
      %v1721 = vsel %vm1622, %v1689, %v1466
      %v1722 = vsel %vm1622, %v1690, %v1468
      %v1723 = vsel %vm1622, %v1691, %v1470
      %v1724 = vsel %vm1622, %v1692, %v1472
      %v1725 = vsel %vm1622, %v1693, %v1474
      %v1726 = vsel %vm1622, %v1694, %v1476
      %v1727 = vsel %vm1622, %v1695, %v1478
      %v1728 = vsel %vm1622, %v1696, %v1480
      %v1729 = vsel %vm1622, %v1697, %v1482
      %v1730 = vsel %vm1622, %v1698, %v1484
      %v1731 = vsel %vm1622, %v1699, %v1486
      %v1732 = vsel %vm1622, %v1700, %v1488
      %v1733 = vsel %vm1622, %v1701, %v1490
      %v1734 = vsel %vm1622, %v1702, %v1492
      %v1735 = vsel %vm1622, %v1703, %v1494
      %v1736 = vsel %vm1622, %v1704, %v1496
      %v1737 = vsel %vm1622, %v1705, %v1498
      %v1738 = vsel %vm1622, %v1706, %v1500
      %v1739 = vsel %vm1622, %v1707, %v1502
      %v1740 = vsel %vm1622, %v1708, %v1504
      %v1741 = vsel %vm1622, %v1709, %v1506
      %v1742 = vsel %vm1622, %v1710, %v1508
      %v1743 = vsel %vm1622, %v1711, %v1510
      %v1744 = vsel %vm1622, %v1712, %v1512
      %v1745 = vsel %vm1622, %v1713, %v1514
      %v1746 = vsel %vm1622, %v1714, %v1516
      %v1747 = vsel %vm1622, %v1715, %v1518
      %v1748 = vsel %vm1622, %v1716, %v1520
      %v1749 = vsel %vm1622, %v1717, %v1522
      %v1750 = vsel %vm1622, %v1718, %v1524
      %v1751 = vpack.c.bf16 %v1624, %v1623
      %v1752 = vpack.c.bf16 %v1720, %v1719
      %v1753 = vpack.c.bf16 %v758, %v757
      %v1754 = vpack.c.bf16 %v1626, %v1625
      %v1755 = vpack.c.bf16 %v1722, %v1721
      %v1756 = vpack.c.bf16 %v760, %v759
      %v1757 = vpack.c.bf16 %v1628, %v1627
      %v1758 = vpack.c.bf16 %v1724, %v1723
      %v1759 = vpack.c.bf16 %v762, %v761
      %v1760 = vpack.c.bf16 %v1630, %v1629
      %v1761 = vpack.c.bf16 %v1726, %v1725
      %v1762 = vpack.c.bf16 %v764, %v763
      %v1763 = vpack.c.bf16 %v1632, %v1631
      %v1764 = vpack.c.bf16 %v1728, %v1727
      %v1765 = vpack.c.bf16 %v766, %v765
      %v1766 = vpack.c.bf16 %v1634, %v1633
      %v1767 = vpack.c.bf16 %v1730, %v1729
      %v1768 = vpack.c.bf16 %v768, %v767
      %v1769 = vpack.c.bf16 %v1636, %v1635
      %v1770 = vpack.c.bf16 %v1732, %v1731
      %v1771 = vpack.c.bf16 %v770, %v769
      %v1772 = vpack.c.bf16 %v1638, %v1637
      %v1773 = vpack.c.bf16 %v1734, %v1733
      %v1774 = vpack.c.bf16 %v772, %v771
      %v1775 = vpack.c.bf16 %v1640, %v1639
      %v1776 = vpack.c.bf16 %v1736, %v1735
      %v1777 = vpack.c.bf16 %v774, %v773
      %v1778 = vpack.c.bf16 %v1642, %v1641
      %v1779 = vpack.c.bf16 %v1738, %v1737
      %v1780 = vpack.c.bf16 %v776, %v775
      %v1781 = vpack.c.bf16 %v1644, %v1643
      %v1782 = vpack.c.bf16 %v1740, %v1739
      %v1783 = vpack.c.bf16 %v778, %v777
      %v1784 = vpack.c.bf16 %v1646, %v1645
      %v1785 = vpack.c.bf16 %v1742, %v1741
      %v1786 = vpack.c.bf16 %v780, %v779
      %v1787 = vpack.c.bf16 %v1648, %v1647
      %v1788 = vpack.c.bf16 %v1744, %v1743
      %v1789 = vpack.c.bf16 %v782, %v781
      %v1790 = vpack.c.bf16 %v1650, %v1649
      %v1791 = vpack.c.bf16 %v1746, %v1745
      %v1792 = vpack.c.bf16 %v784, %v783
      %v1793 = vpack.c.bf16 %v1652, %v1651
      %v1794 = vpack.c.bf16 %v1748, %v1747
      %v1795 = vpack.c.bf16 %v786, %v785
      %v1796 = vpack.c.bf16 %v1654, %v1653
      %v1797 = vpack.c.bf16 %v1750, %v1749
      %v1798 = vpack.c.bf16 %v788, %v787
      %v1799 = vld [vmem:[%s3] sm:$0xf]
      %v1800 = vld [vmem:[%s3 + $0x4] sm:$0xf]
      %v1801 = vld [vmem:[%s3 + $0x8] sm:$0xf]
      %v1802 = vld [vmem:[%s3 + $0xc] sm:$0xf]
      %v1803 = vld [vmem:[%s3 + $0x10] sm:$0xf]
      %v1804 = vld [vmem:[%s3 + $0x14] sm:$0xf]
      %v1805 = vld [vmem:[%s3 + $0x18] sm:$0xf]
      %v1806 = vld [vmem:[%s3 + $0x1c] sm:$0xf]
      %v1807 = vld [vmem:[%s3 + $0x20] sm:$0xf]
      %v1808 = vld [vmem:[%s3 + $0x24] sm:$0xf]
      %v1809 = vld [vmem:[%s3 + $0x28] sm:$0xf]
      %v1810 = vld [vmem:[%s3 + $0x2c] sm:$0xf]
      %v1811 = vld [vmem:[%s3 + $0x30] sm:$0xf]
      %v1812 = vld [vmem:[%s3 + $0x34] sm:$0xf]
      %v1813 = vld [vmem:[%s3 + $0x38] sm:$0xf]
      %v1814 = vld [vmem:[%s3 + $0x3c] sm:$0xf]
      %v1815 = vld [vmem:[%s3 + $0x40] sm:$0xf]
      %v1816 = vld [vmem:[%s3 + $0x44] sm:$0xf]
      %v1817 = vld [vmem:[%s3 + $0x48] sm:$0xf]
      %v1818 = vld [vmem:[%s3 + $0x4c] sm:$0xf]
      %v1819 = vld [vmem:[%s3 + $0x50] sm:$0xf]
      %v1820 = vld [vmem:[%s3 + $0x54] sm:$0xf]
      %v1821 = vld [vmem:[%s3 + $0x58] sm:$0xf]
      %v1822 = vld [vmem:[%s3 + $0x5c] sm:$0xf]
      %v1823 = vld [vmem:[%s3 + $0x60] sm:$0xf]
      %v1824 = vld [vmem:[%s3 + $0x64] sm:$0xf]
      %v1825 = vld [vmem:[%s3 + $0x68] sm:$0xf]
      %v1826 = vld [vmem:[%s3 + $0x6c] sm:$0xf]
      %v1827 = vld [vmem:[%s3 + $0x70] sm:$0xf]
      %v1828 = vld [vmem:[%s3 + $0x74] sm:$0xf]
      %v1829 = vld [vmem:[%s3 + $0x78] sm:$0xf]
      %v1830 = vld [vmem:[%s3 + $0x7c] sm:$0xf]
      %v1831 = vld [vmem:[%s3 + $0x80] sm:$0xf]
      %v1832 = vld [vmem:[%s3 + $0x84] sm:$0xf]
      %v1833 = vld [vmem:[%s3 + $0x88] sm:$0xf]
      %v1834 = vld [vmem:[%s3 + $0x8c] sm:$0xf]
      %v1871 = vunpack.c.l.b16 %v1799
      %v1872 = vunpack.c.l.b16 %v1800
      %v1873 = vunpack.c.l.b16 %v1801
      %v1874 = vunpack.c.l.b16 %v1802
      %v1875 = vunpack.c.l.b16 %v1803
      %v1876 = vunpack.c.l.b16 %v1804
      %v1877 = vunpack.c.l.b16 %v1805
      %v1878 = vunpack.c.l.b16 %v1806
      %v1879 = vunpack.c.l.b16 %v1807
      %v1880 = vunpack.c.l.b16 %v1808
      %v1881 = vunpack.c.l.b16 %v1809
      %v1882 = vunpack.c.l.b16 %v1810
      %v1883 = vunpack.c.l.b16 %v1811
      %v1884 = vunpack.c.l.b16 %v1812
      %v1885 = vunpack.c.l.b16 %v1813
      %v1886 = vunpack.c.l.b16 %v1814
      %v1887 = vunpack.c.l.b16 %v1815
      %v1888 = vunpack.c.l.b16 %v1816
      %v1889 = vunpack.c.l.b16 %v1817
      %v1890 = vunpack.c.l.b16 %v1818
      %v1891 = vunpack.c.l.b16 %v1819
      %v1892 = vunpack.c.l.b16 %v1820
      %v1893 = vunpack.c.l.b16 %v1821
      %v1894 = vunpack.c.l.b16 %v1822
      %v1895 = vunpack.c.l.b16 %v1823
      %v1896 = vunpack.c.l.b16 %v1824
      %v1897 = vunpack.c.l.b16 %v1825
      %v1898 = vunpack.c.l.b16 %v1826
      %v1899 = vunpack.c.l.b16 %v1827
      %v1900 = vunpack.c.l.b16 %v1828
      %v1901 = vunpack.c.l.b16 %v1829
      %v1902 = vunpack.c.l.b16 %v1830
      %v1903 = vunpack.c.l.b16 %v1831
      %v1904 = vunpack.c.l.b16 %v1832
      %v1905 = vunpack.c.l.b16 %v1833
      %v1906 = vunpack.c.l.b16 %v1834
      %v1907 = vpack.c.b16 %v1872, %v1871
      %v1908 = vpack.c.b16 %v1874, %v1873
      %v1909 = vpack.c.b16 %v1876, %v1875
      %v1910 = vpack.c.b16 %v1878, %v1877
      %v1911 = vpack.c.b16 %v1880, %v1879
      %v1912 = vpack.c.b16 %v1882, %v1881
      %v1913 = vpack.c.b16 %v1884, %v1883
      %v1914 = vpack.c.b16 %v1886, %v1885
      %v1915 = vpack.c.b16 %v1888, %v1887
      %v1916 = vpack.c.b16 %v1890, %v1889
      %v1917 = vpack.c.b16 %v1892, %v1891
      %v1918 = vpack.c.b16 %v1894, %v1893
      %v1919 = vpack.c.b16 %v1896, %v1895
      %v1920 = vpack.c.b16 %v1898, %v1897
      %v1921 = vpack.c.b16 %v1900, %v1899
      %v1922 = vpack.c.b16 %v1902, %v1901
      %v1923 = vpack.c.b16 %v1904, %v1903
      %v1924 = vpack.c.b16 %v1906, %v1905
      %v1944 = vsel %vm411, %v1753, 0
      %v1947 = vsel %vm411, %v1756, 0
      %v1950 = vsel %vm411, %v1759, 0
      %v1953 = vsel %vm411, %v1762, 0
      %v1956 = vsel %vm411, %v1765, 0
      %v1959 = vsel %vm411, %v1768, 0
      %v1962 = vsel %vm411, %v1771, 0
      %v1965 = vsel %vm411, %v1774, 0
      %v1968 = vsel %vm411, %v1777, 0
      %v1971 = vsel %vm411, %v1780, 0
      %v1974 = vsel %vm411, %v1783, 0
      %v1977 = vsel %vm411, %v1786, 0
      %v1980 = vsel %vm411, %v1789, 0
      %v1983 = vsel %vm411, %v1792, 0
      %v1986 = vsel %vm411, %v1795, 0
      %v1989 = vsel %vm411, %v1798, 0
      %1991 = vmatprep.subr.bf16.mxu0 0
      %1992 = vmatpush1.bf16.msra.mxu0 %v1907
      %1993 = vmatprep.subr.bf16.mxu0 0
      %1994 = vmatpush1.bf16.msra.mxu0 %v1908
      %1995 = vmatprep.subr.bf16.mxu0 0
      %1996 = vmatpush1.bf16.msra.mxu0 %v1909
      %1997 = vmatprep.subr.bf16.mxu0 0
      %1998 = vmatpush1.bf16.msra.mxu0 %v1910
      %1999 = vmatprep.subr.bf16.mxu0 0
      %2000 = vmatpush1.bf16.msra.mxu0 %v1911
      %2001 = vmatprep.subr.bf16.mxu0 0
      %2002 = vmatpush1.bf16.msra.mxu0 %v1912
      %2003 = vmatprep.subr.bf16.mxu0 0
      %2004 = vmatpush1.bf16.msra.mxu0 %v1913
      %2005 = vmatprep.subr.bf16.mxu0 0
      %2006 = vmatpush1.bf16.msra.mxu0 %v1914
      %2007 = vmatprep.subr.bf16.mxu0 0
      %2008 = vmatpush1.bf16.msra.mxu0 %v1915
      %2009 = vmatprep.subr.bf16.mxu0 0
      %2010 = vmatpush1.bf16.msra.mxu0 %v1916
      %2011 = vmatprep.subr.bf16.mxu0 0
      %2012 = vmatpush1.bf16.msra.mxu0 %v1917
      %2013 = vmatprep.subr.bf16.mxu0 0
      %2014 = vmatpush1.bf16.msra.mxu0 %v1918
      %2015 = vmatprep.subr.bf16.mxu0 0
      %2016 = vmatpush1.bf16.msra.mxu0 %v1919
      %2017 = vmatprep.subr.bf16.mxu0 0
      %2018 = vmatpush1.bf16.msra.mxu0 %v1920
      %2019 = vmatprep.subr.bf16.mxu0 0
      %2020 = vmatpush1.bf16.msra.mxu0 %v1921
      %2021 = vmatprep.subr.bf16.mxu0 0
      %2022 = vmatpush1.bf16.msra.mxu0 %v1922
      %2023 = vmatprep.mubr.bf16.mxu0 %v1752
      %2024 = vmatmul.mubr.bf16.gmra.mrb[0].mxu0 %v1751
      %v2025 = vpop.f32.mrb[0].mxu0
      %v2026 = vadd.f32 0.0, %v2025
      %v2027 = vpop.f32.mrb[0].mxu0
      %v2028 = vpop.f32.mrb[0].mxu0
      %v2029 = vadd.f32 0.0, %v2028
      %v2030 = vpop.f32.mrb[0].mxu0
      %2031 = vmatprep.mubr.bf16.mxu0 %v1755
      %2032 = vmatmul.mubr.bf16.gmra.mrb[0].mxu0 %v1754
      %v2033 = vpop.f32.mrb[0].mxu0
      %v2034 = vadd.f32 0.0, %v2033
      %v2035 = vpop.f32.mrb[0].mxu0
      %v2036 = vpop.f32.mrb[0].mxu0
      %v2037 = vadd.f32 0.0, %v2036
      %v2038 = vpop.f32.mrb[0].mxu0
      %2039 = vmatprep.mubr.bf16.mxu0 %v1758
      %2040 = vmatmul.mubr.bf16.gmra.mrb[0].mxu0 %v1757
      %v2041 = vpop.f32.mrb[0].mxu0
      %v2042 = vadd.f32 0.0, %v2041
      %v2043 = vpop.f32.mrb[0].mxu0
      %v2044 = vpop.f32.mrb[0].mxu0
      %v2045 = vadd.f32 0.0, %v2044
      %v2046 = vpop.f32.mrb[0].mxu0
      %2047 = vmatprep.mubr.bf16.mxu0 %v1761
      %2048 = vmatmul.mubr.bf16.gmra.mrb[0].mxu0 %v1760
      %v2049 = vpop.f32.mrb[0].mxu0
      %v2050 = vadd.f32 0.0, %v2049
      %v2051 = vpop.f32.mrb[0].mxu0
      %v2052 = vpop.f32.mrb[0].mxu0
      %v2053 = vadd.f32 0.0, %v2052
      %v2054 = vpop.f32.mrb[0].mxu0
      %2055 = vmatprep.mubr.bf16.mxu0 %v1764
      %2056 = vmatmul.mubr.bf16.gmra.mrb[0].mxu0 %v1763
      %v2057 = vpop.f32.mrb[0].mxu0
      %v2058 = vadd.f32 0.0, %v2057
      %v2059 = vpop.f32.mrb[0].mxu0
      %v2060 = vpop.f32.mrb[0].mxu0
      %v2061 = vadd.f32 0.0, %v2060
      %v2062 = vpop.f32.mrb[0].mxu0
      %2063 = vmatprep.mubr.bf16.mxu0 %v1767
      %2064 = vmatmul.mubr.bf16.gmra.mrb[0].mxu0 %v1766
      %v2065 = vpop.f32.mrb[0].mxu0
      %v2066 = vadd.f32 0.0, %v2065
      %v2067 = vpop.f32.mrb[0].mxu0
      %v2068 = vpop.f32.mrb[0].mxu0
      %v2069 = vadd.f32 0.0, %v2068
      %v2070 = vpop.f32.mrb[0].mxu0
      %2071 = vmatprep.mubr.bf16.mxu0 %v1770
      %2072 = vmatmul.mubr.bf16.gmra.mrb[0].mxu0 %v1769
      %v2073 = vpop.f32.mrb[0].mxu0
      %v2074 = vadd.f32 0.0, %v2073
      %v2075 = vpop.f32.mrb[0].mxu0
      %v2076 = vpop.f32.mrb[0].mxu0
      %v2077 = vadd.f32 0.0, %v2076
      %v2078 = vpop.f32.mrb[0].mxu0
      %2079 = vmatprep.mubr.bf16.mxu0 %v1773
      %2080 = vmatmul.mubr.bf16.gmra.mrb[0].mxu0 %v1772
      %v2081 = vpop.f32.mrb[0].mxu0
      %v2082 = vadd.f32 0.0, %v2081
      %v2083 = vpop.f32.mrb[0].mxu0
      %v2084 = vpop.f32.mrb[0].mxu0
      %v2085 = vadd.f32 0.0, %v2084
      %v2086 = vpop.f32.mrb[0].mxu0
      %2087 = vmatprep.mubr.bf16.mxu0 %v1776
      %2088 = vmatmul.mubr.bf16.gmra.mrb[0].mxu0 %v1775
      %v2089 = vpop.f32.mrb[0].mxu0
      %v2090 = vadd.f32 0.0, %v2089
      %v2091 = vpop.f32.mrb[0].mxu0
      %v2092 = vpop.f32.mrb[0].mxu0
      %v2093 = vadd.f32 0.0, %v2092
      %v2094 = vpop.f32.mrb[0].mxu0
      %2095 = vmatprep.mubr.bf16.mxu0 %v1779
      %2096 = vmatmul.mubr.bf16.gmra.mrb[0].mxu0 %v1778
      %v2097 = vpop.f32.mrb[0].mxu0
      %v2098 = vadd.f32 0.0, %v2097
      %v2099 = vpop.f32.mrb[0].mxu0
      %v2100 = vpop.f32.mrb[0].mxu0
      %v2101 = vadd.f32 0.0, %v2100
      %v2102 = vpop.f32.mrb[0].mxu0
      %2103 = vmatprep.mubr.bf16.mxu0 %v1782
      %2104 = vmatmul.mubr.bf16.gmra.mrb[0].mxu0 %v1781
      %v2105 = vpop.f32.mrb[0].mxu0
      %v2106 = vadd.f32 0.0, %v2105
      %v2107 = vpop.f32.mrb[0].mxu0
      %v2108 = vpop.f32.mrb[0].mxu0
      %v2109 = vadd.f32 0.0, %v2108
      %v2110 = vpop.f32.mrb[0].mxu0
      %2111 = vmatprep.mubr.bf16.mxu0 %v1785
      %2112 = vmatmul.mubr.bf16.gmra.mrb[0].mxu0 %v1784
      %v2113 = vpop.f32.mrb[0].mxu0
      %v2114 = vadd.f32 0.0, %v2113
      %v2115 = vpop.f32.mrb[0].mxu0
      %v2116 = vpop.f32.mrb[0].mxu0
      %v2117 = vadd.f32 0.0, %v2116
      %v2118 = vpop.f32.mrb[0].mxu0
      %2119 = vmatprep.mubr.bf16.mxu0 %v1788
      %2120 = vmatmul.mubr.bf16.gmra.mrb[0].mxu0 %v1787
      %v2121 = vpop.f32.mrb[0].mxu0
      %v2122 = vadd.f32 0.0, %v2121
      %v2123 = vpop.f32.mrb[0].mxu0
      %v2124 = vpop.f32.mrb[0].mxu0
      %v2125 = vadd.f32 0.0, %v2124
      %v2126 = vpop.f32.mrb[0].mxu0
      %2127 = vmatprep.mubr.bf16.mxu0 %v1791
      %2128 = vmatmul.mubr.bf16.gmra.mrb[0].mxu0 %v1790
      %v2129 = vpop.f32.mrb[0].mxu0
      %v2130 = vadd.f32 0.0, %v2129
      %v2131 = vpop.f32.mrb[0].mxu0
      %v2132 = vpop.f32.mrb[0].mxu0
      %v2133 = vadd.f32 0.0, %v2132
      %v2134 = vpop.f32.mrb[0].mxu0
      %2135 = vmatprep.mubr.bf16.mxu0 %v1794
      %2136 = vmatmul.mubr.bf16.gmra.mrb[0].mxu0 %v1793
      %v2137 = vpop.f32.mrb[0].mxu0
      %v2138 = vadd.f32 0.0, %v2137
      %v2139 = vpop.f32.mrb[0].mxu0
      %v2140 = vpop.f32.mrb[0].mxu0
      %v2141 = vadd.f32 0.0, %v2140
      %v2142 = vpop.f32.mrb[0].mxu0
      %2143 = vmatprep.mubr.bf16.mxu0 %v1797
      %2144 = vmatmul.mubr.bf16.gmra.mrb[0].mxu0 %v1796
      %v2145 = vpop.f32.mrb[0].mxu0
      %v2146 = vadd.f32 0.0, %v2145
      %v2147 = vpop.f32.mrb[0].mxu0
      %v2148 = vpop.f32.mrb[0].mxu0
      %v2149 = vadd.f32 0.0, %v2148
      %v2150 = vpop.f32.mrb[0].mxu0
      %2151 = vdwg.mxu0
      %2152 = vmatprep.subr.bf16.mxu0 0
      %2153 = vmatpush1.bf16.msra.mxu0 %v1923
      %2154 = vmatprep.subr.bf16.mxu0 0
      %2155 = vmatpush1.bf16.msra.mxu0 %v1924
      %2156 = vmatprep.subr.bf16.mxu0 0
      %2157 = vmatpush1.bf16.msra.mxu0 0
      %2158 = vmatprep.subr.bf16.mxu0 0
      %2159 = vmatpush1.bf16.msra.mxu0 0
      %2160 = vmatprep.subr.bf16.mxu0 0
      %2161 = vmatpush1.bf16.msra.mxu0 0
      %2162 = vmatprep.subr.bf16.mxu0 0
      %2163 = vmatpush1.bf16.msra.mxu0 0
      %2164 = vmatprep.subr.bf16.mxu0 0
      %2165 = vmatpush1.bf16.msra.mxu0 0
      %2166 = vmatprep.subr.bf16.mxu0 0
      %2167 = vmatpush1.bf16.msra.mxu0 0
      %2168 = vmatprep.subr.bf16.mxu0 0
      %2169 = vmatpush1.bf16.msra.mxu0 0
      %2170 = vmatprep.subr.bf16.mxu0 0
      %2171 = vmatpush1.bf16.msra.mxu0 0
      %2172 = vmatprep.subr.bf16.mxu0 0
      %2173 = vmatpush1.bf16.msra.mxu0 0
      %2174 = vmatprep.subr.bf16.mxu0 0
      %2175 = vmatpush1.bf16.msra.mxu0 0
      %2176 = vmatprep.subr.bf16.mxu0 0
      %2177 = vmatpush1.bf16.msra.mxu0 0
      %2178 = vmatprep.subr.bf16.mxu0 0
      %2179 = vmatpush1.bf16.msra.mxu0 0
      %2180 = vmatprep.subr.bf16.mxu0 0
      %2181 = vmatpush1.bf16.msra.mxu0 0
      %2182 = vmatprep.subr.bf16.mxu0 0
      %2183 = vmatpush1.bf16.msra.mxu0 0
      %2184 = vmatprep.mubr.bf16.mxu0 0
      %2185 = vmatmul.mubr.bf16.gmra.mrb[0].mxu0 %v1944
      %v2186 = vpop.f32.mrb[0].mxu0
      %v2187 = vadd.f32 %v2026, %v2186
      %v2188 = vpop.f32.mrb[0].mxu0
      %v2189 = vpop.f32.mrb[0].mxu0
      %v2190 = vadd.f32 %v2029, %v2189
      %v2191 = vpop.f32.mrb[0].mxu0
      %2192 = vmatprep.mubr.bf16.mxu0 0
      %2193 = vmatmul.mubr.bf16.gmra.mrb[0].mxu0 %v1947
      %v2194 = vpop.f32.mrb[0].mxu0
      %v2195 = vadd.f32 %v2034, %v2194
      %v2196 = vpop.f32.mrb[0].mxu0
      %v2197 = vpop.f32.mrb[0].mxu0
      %v2198 = vadd.f32 %v2037, %v2197
      %v2199 = vpop.f32.mrb[0].mxu0
      %2200 = vmatprep.mubr.bf16.mxu0 0
      %2201 = vmatmul.mubr.bf16.gmra.mrb[0].mxu0 %v1950
      %v2202 = vpop.f32.mrb[0].mxu0
      %v2203 = vadd.f32 %v2042, %v2202
      %v2204 = vpop.f32.mrb[0].mxu0
      %v2205 = vpop.f32.mrb[0].mxu0
      %v2206 = vadd.f32 %v2045, %v2205
      %v2207 = vpop.f32.mrb[0].mxu0
      %2208 = vmatprep.mubr.bf16.mxu0 0
      %2209 = vmatmul.mubr.bf16.gmra.mrb[0].mxu0 %v1953
      %v2210 = vpop.f32.mrb[0].mxu0
      %v2211 = vadd.f32 %v2050, %v2210
      %v2212 = vpop.f32.mrb[0].mxu0
      %v2213 = vpop.f32.mrb[0].mxu0
      %v2214 = vadd.f32 %v2053, %v2213
      %v2215 = vpop.f32.mrb[0].mxu0
      %2216 = vmatprep.mubr.bf16.mxu0 0
      %2217 = vmatmul.mubr.bf16.gmra.mrb[0].mxu0 %v1956
      %v2218 = vpop.f32.mrb[0].mxu0
      %v2219 = vadd.f32 %v2058, %v2218
      %v2220 = vpop.f32.mrb[0].mxu0
      %v2221 = vpop.f32.mrb[0].mxu0
      %v2222 = vadd.f32 %v2061, %v2221
      %v2223 = vpop.f32.mrb[0].mxu0
      %2224 = vmatprep.mubr.bf16.mxu0 0
      %2225 = vmatmul.mubr.bf16.gmra.mrb[0].mxu0 %v1959
      %v2226 = vpop.f32.mrb[0].mxu0
      %v2227 = vadd.f32 %v2066, %v2226
      %v2228 = vpop.f32.mrb[0].mxu0
      %v2229 = vpop.f32.mrb[0].mxu0
      %v2230 = vadd.f32 %v2069, %v2229
      %v2231 = vpop.f32.mrb[0].mxu0
      %2232 = vmatprep.mubr.bf16.mxu0 0
      %2233 = vmatmul.mubr.bf16.gmra.mrb[0].mxu0 %v1962
      %v2234 = vpop.f32.mrb[0].mxu0
      %v2235 = vadd.f32 %v2074, %v2234
      %v2236 = vpop.f32.mrb[0].mxu0
      %v2237 = vpop.f32.mrb[0].mxu0
      %v2238 = vadd.f32 %v2077, %v2237
      %v2239 = vpop.f32.mrb[0].mxu0
      %2240 = vmatprep.mubr.bf16.mxu0 0
      %2241 = vmatmul.mubr.bf16.gmra.mrb[0].mxu0 %v1965
      %v2242 = vpop.f32.mrb[0].mxu0
      %v2243 = vadd.f32 %v2082, %v2242
      %v2244 = vpop.f32.mrb[0].mxu0
      %v2245 = vpop.f32.mrb[0].mxu0
      %v2246 = vadd.f32 %v2085, %v2245
      %v2247 = vpop.f32.mrb[0].mxu0
      %2248 = vmatprep.mubr.bf16.mxu0 0
      %2249 = vmatmul.mubr.bf16.gmra.mrb[0].mxu0 %v1968
      %v2250 = vpop.f32.mrb[0].mxu0
      %v2251 = vadd.f32 %v2090, %v2250
      %v2252 = vpop.f32.mrb[0].mxu0
      %v2253 = vpop.f32.mrb[0].mxu0
      %v2254 = vadd.f32 %v2093, %v2253
      %v2255 = vpop.f32.mrb[0].mxu0
      %2256 = vmatprep.mubr.bf16.mxu0 0
      %2257 = vmatmul.mubr.bf16.gmra.mrb[0].mxu0 %v1971
      %v2258 = vpop.f32.mrb[0].mxu0
      %v2259 = vadd.f32 %v2098, %v2258
      %v2260 = vpop.f32.mrb[0].mxu0
      %v2261 = vpop.f32.mrb[0].mxu0
      %v2262 = vadd.f32 %v2101, %v2261
      %v2263 = vpop.f32.mrb[0].mxu0
      %2264 = vmatprep.mubr.bf16.mxu0 0
      %2265 = vmatmul.mubr.bf16.gmra.mrb[0].mxu0 %v1974
      %v2266 = vpop.f32.mrb[0].mxu0
      %v2267 = vadd.f32 %v2106, %v2266
      %v2268 = vpop.f32.mrb[0].mxu0
      %v2269 = vpop.f32.mrb[0].mxu0
      %v2270 = vadd.f32 %v2109, %v2269
      %v2271 = vpop.f32.mrb[0].mxu0
      %2272 = vmatprep.mubr.bf16.mxu0 0
      %2273 = vmatmul.mubr.bf16.gmra.mrb[0].mxu0 %v1977
      %v2274 = vpop.f32.mrb[0].mxu0
      %v2275 = vadd.f32 %v2114, %v2274
      %v2276 = vpop.f32.mrb[0].mxu0
      %v2277 = vpop.f32.mrb[0].mxu0
      %v2278 = vadd.f32 %v2117, %v2277
      %v2279 = vpop.f32.mrb[0].mxu0
      %2280 = vmatprep.mubr.bf16.mxu0 0
      %2281 = vmatmul.mubr.bf16.gmra.mrb[0].mxu0 %v1980
      %v2282 = vpop.f32.mrb[0].mxu0
      %v2283 = vadd.f32 %v2122, %v2282
      %v2284 = vpop.f32.mrb[0].mxu0
      %v2285 = vpop.f32.mrb[0].mxu0
      %v2286 = vadd.f32 %v2125, %v2285
      %v2287 = vpop.f32.mrb[0].mxu0
      %2288 = vmatprep.mubr.bf16.mxu0 0
      %2289 = vmatmul.mubr.bf16.gmra.mrb[0].mxu0 %v1983
      %v2290 = vpop.f32.mrb[0].mxu0
      %v2291 = vadd.f32 %v2130, %v2290
      %v2292 = vpop.f32.mrb[0].mxu0
      %v2293 = vpop.f32.mrb[0].mxu0
      %v2294 = vadd.f32 %v2133, %v2293
      %v2295 = vpop.f32.mrb[0].mxu0
      %2296 = vmatprep.mubr.bf16.mxu0 0
      %2297 = vmatmul.mubr.bf16.gmra.mrb[0].mxu0 %v1986
      %v2298 = vpop.f32.mrb[0].mxu0
      %v2299 = vadd.f32 %v2138, %v2298
      %v2300 = vpop.f32.mrb[0].mxu0
      %v2301 = vpop.f32.mrb[0].mxu0
      %v2302 = vadd.f32 %v2141, %v2301
      %v2303 = vpop.f32.mrb[0].mxu0
      %2304 = vmatprep.mubr.bf16.mxu0 0
      %2305 = vmatmul.mubr.bf16.gmra.mrb[0].mxu0 %v1989
      %v2306 = vpop.f32.mrb[0].mxu0
      %v2307 = vadd.f32 %v2146, %v2306
      %v2308 = vpop.f32.mrb[0].mxu0
      %v2309 = vpop.f32.mrb[0].mxu0
      %v2310 = vadd.f32 %v2149, %v2309
      %v2311 = vpop.f32.mrb[0].mxu0
      %2312 = vdwg.mxu0
      %v2313 = vpack.c.bf16 %v2190, %v2187
      %v2314 = vpack.c.bf16 %v2198, %v2195
      %v2315 = vpack.c.bf16 %v2206, %v2203
      %v2316 = vpack.c.bf16 %v2214, %v2211
      %v2317 = vpack.c.bf16 %v2222, %v2219
      %v2318 = vpack.c.bf16 %v2230, %v2227
      %v2319 = vpack.c.bf16 %v2238, %v2235
      %v2320 = vpack.c.bf16 %v2246, %v2243
      %v2321 = vpack.c.bf16 %v2254, %v2251
      %v2322 = vpack.c.bf16 %v2262, %v2259
      %v2323 = vpack.c.bf16 %v2270, %v2267
      %v2324 = vpack.c.bf16 %v2278, %v2275
      %v2325 = vpack.c.bf16 %v2286, %v2283
      %v2326 = vpack.c.bf16 %v2294, %v2291
      %v2327 = vpack.c.bf16 %v2302, %v2299
      %v2328 = vpack.c.bf16 %v2310, %v2307
      %v2345 = vunpack.c.l.b16 %v2313
      %v2346 = vunpack.c.h.b16 %v2313
      %v2347 = vunpack.c.l.b16 %v2314
      %v2348 = vunpack.c.h.b16 %v2314
      %v2349 = vunpack.c.l.b16 %v2315
      %v2350 = vunpack.c.h.b16 %v2315
      %v2351 = vunpack.c.l.b16 %v2316
      %v2352 = vunpack.c.h.b16 %v2316
      %v2353 = vunpack.c.l.b16 %v2317
      %v2354 = vunpack.c.h.b16 %v2317
      %v2355 = vunpack.c.l.b16 %v2318
      %v2356 = vunpack.c.h.b16 %v2318
      %v2357 = vunpack.c.l.b16 %v2319
      %v2358 = vunpack.c.h.b16 %v2319
      %v2359 = vunpack.c.l.b16 %v2320
      %v2360 = vunpack.c.h.b16 %v2320
      %v2361 = vunpack.c.l.b16 %v2321
      %v2362 = vunpack.c.h.b16 %v2321
      %v2363 = vunpack.c.l.b16 %v2322
      %v2364 = vunpack.c.h.b16 %v2322
      %v2365 = vunpack.c.l.b16 %v2323
      %v2366 = vunpack.c.h.b16 %v2323
      %v2367 = vunpack.c.l.b16 %v2324
      %v2368 = vunpack.c.h.b16 %v2324
      %v2369 = vunpack.c.l.b16 %v2325
      %v2370 = vunpack.c.h.b16 %v2325
      %v2371 = vunpack.c.l.b16 %v2326
      %v2372 = vunpack.c.h.b16 %v2326
      %v2373 = vunpack.c.l.b16 %v2327
      %v2374 = vunpack.c.h.b16 %v2327
      %v2375 = vunpack.c.l.b16 %v2328
      %v2376 = vunpack.c.h.b16 %v2328
      %v2377 = vpack.c.b16 %v2345, %v2345
      %v2378 = vpack.c.b16 %v2346, %v2346
      %v2379 = vpack.c.b16 %v2347, %v2347
      %v2380 = vpack.c.b16 %v2348, %v2348
      %v2381 = vpack.c.b16 %v2349, %v2349
      %v2382 = vpack.c.b16 %v2350, %v2350
      %v2383 = vpack.c.b16 %v2351, %v2351
      %v2384 = vpack.c.b16 %v2352, %v2352
      %v2385 = vpack.c.b16 %v2353, %v2353
      %v2386 = vpack.c.b16 %v2354, %v2354
      %v2387 = vpack.c.b16 %v2355, %v2355
      %v2388 = vpack.c.b16 %v2356, %v2356
      %v2389 = vpack.c.b16 %v2357, %v2357
      %v2390 = vpack.c.b16 %v2358, %v2358
      %v2391 = vpack.c.b16 %v2359, %v2359
      %v2392 = vpack.c.b16 %v2360, %v2360
      %v2393 = vpack.c.b16 %v2361, %v2361
      %v2394 = vpack.c.b16 %v2362, %v2362
      %v2395 = vpack.c.b16 %v2363, %v2363
      %v2396 = vpack.c.b16 %v2364, %v2364
      %v2397 = vpack.c.b16 %v2365, %v2365
      %v2398 = vpack.c.b16 %v2366, %v2366
      %v2399 = vpack.c.b16 %v2367, %v2367
      %v2400 = vpack.c.b16 %v2368, %v2368
      %v2401 = vpack.c.b16 %v2369, %v2369
      %v2402 = vpack.c.b16 %v2370, %v2370
      %v2403 = vpack.c.b16 %v2371, %v2371
      %v2404 = vpack.c.b16 %v2372, %v2372
      %v2405 = vpack.c.b16 %v2373, %v2373
      %v2406 = vpack.c.b16 %v2374, %v2374
      %v2407 = vpack.c.b16 %v2375, %v2375
      %v2408 = vpack.c.b16 %v2376, %v2376
      %2441 = vst [vmem:[%s231] sm:$0xf] %v2377
      %2442 = vst [vmem:[%s231 + $0x4] sm:$0xf] %v2378
      %2443 = vst [vmem:[%s231 + $0x8] sm:$0xf] %v2379
      %2444 = vst [vmem:[%s231 + $0xc] sm:$0xf] %v2380
      %2445 = vst [vmem:[%s231 + $0x10] sm:$0xf] %v2381
      %2446 = vst [vmem:[%s231 + $0x14] sm:$0xf] %v2382
      %2447 = vst [vmem:[%s231 + $0x18] sm:$0xf] %v2383
      %2448 = vst [vmem:[%s231 + $0x1c] sm:$0xf] %v2384
      %2449 = vst [vmem:[%s231 + $0x20] sm:$0xf] %v2385
      %2450 = vst [vmem:[%s231 + $0x24] sm:$0xf] %v2386
      %2451 = vst [vmem:[%s231 + $0x28] sm:$0xf] %v2387
      %2452 = vst [vmem:[%s231 + $0x2c] sm:$0xf] %v2388
      %2453 = vst [vmem:[%s231 + $0x30] sm:$0xf] %v2389
      %2454 = vst [vmem:[%s231 + $0x34] sm:$0xf] %v2390
      %2455 = vst [vmem:[%s231 + $0x38] sm:$0xf] %v2391
      %2456 = vst [vmem:[%s231 + $0x3c] sm:$0xf] %v2392
      %2457 = vst [vmem:[%s231 + $0x40] sm:$0xf] %v2393
      %2458 = vst [vmem:[%s231 + $0x44] sm:$0xf] %v2394
      %2459 = vst [vmem:[%s231 + $0x48] sm:$0xf] %v2395
      %2460 = vst [vmem:[%s231 + $0x4c] sm:$0xf] %v2396
      %2461 = vst [vmem:[%s231 + $0x50] sm:$0xf] %v2397
      %2462 = vst [vmem:[%s231 + $0x54] sm:$0xf] %v2398
      %2463 = vst [vmem:[%s231 + $0x58] sm:$0xf] %v2399
      %2464 = vst [vmem:[%s231 + $0x5c] sm:$0xf] %v2400
      %2465 = vst [vmem:[%s231 + $0x60] sm:$0xf] %v2401
      %2466 = vst [vmem:[%s231 + $0x64] sm:$0xf] %v2402
      %2467 = vst [vmem:[%s231 + $0x68] sm:$0xf] %v2403
      %2468 = vst [vmem:[%s231 + $0x6c] sm:$0xf] %v2404
      %2469 = vst [vmem:[%s231 + $0x70] sm:$0xf] %v2405
      %2470 = vst [vmem:[%s231 + $0x74] sm:$0xf] %v2406
      %2471 = vst [vmem:[%s231 + $0x78] sm:$0xf] %v2407
      %2472 = vst [vmem:[%s231 + $0x7c] sm:$0xf] %v2408
      %v2473 = vadd.f32 %v2187, %v2190
      %v2474 = vadd.f32 %v2473, %v2195
      %v2475 = vadd.f32 %v2474, %v2198
      %v2476 = vadd.f32 %v2475, %v2203
      %v2477 = vadd.f32 %v2476, %v2206
      %v2478 = vadd.f32 %v2477, %v2211
      %v2479 = vadd.f32 %v2478, %v2214
      %v2480 = vadd.f32 %v2479, %v2219
      %v2481 = vadd.f32 %v2480, %v2222
      %v2482 = vadd.f32 %v2481, %v2227
      %v2483 = vadd.f32 %v2482, %v2230
      %v2484 = vadd.f32 %v2483, %v2235
      %v2485 = vadd.f32 %v2484, %v2238
      %v2486 = vadd.f32 %v2485, %v2243
      %v2487 = vadd.f32 %v2486, %v2246
      %v2488 = vadd.f32 %v2487, %v2251
      %v2489 = vadd.f32 %v2488, %v2254
      %v2490 = vadd.f32 %v2489, %v2259
      %v2491 = vadd.f32 %v2490, %v2262
      %v2492 = vadd.f32 %v2491, %v2267
      %v2493 = vadd.f32 %v2492, %v2270
      %v2494 = vadd.f32 %v2493, %v2275
      %v2495 = vadd.f32 %v2494, %v2278
      %v2496 = vadd.f32 %v2495, %v2283
      %v2497 = vadd.f32 %v2496, %v2286
      %v2498 = vadd.f32 %v2497, %v2291
      %v2499 = vadd.f32 %v2498, %v2294
      %v2500 = vadd.f32 %v2499, %v2299
      %v2501 = vadd.f32 %v2500, %v2302
      %v2502 = vadd.f32 %v2501, %v2307
      %v2503 = vadd.f32 %v2502, %v2310
      %v2504 = vrot.slane %v2503, 4
      %v2505 = vadd.f32 %v2503, %v2504
      %v2506 = vrot.slane %v2505, 2
      %v2507 = vadd.f32 %v2505, %v2506
      %v2508 = vrot.slane %v2507, 1
      %v2509 = vadd.f32 %v2507, %v2508
      %v2510 = vmul.f32 %v2187, %v2187
      %v2511 = vmul.f32 %v2190, %v2190
      %v2512 = vmul.f32 %v2195, %v2195
      %v2513 = vmul.f32 %v2198, %v2198
      %v2514 = vmul.f32 %v2203, %v2203
      %v2515 = vmul.f32 %v2206, %v2206
      %v2516 = vmul.f32 %v2211, %v2211
      %v2517 = vmul.f32 %v2214, %v2214
      %v2518 = vmul.f32 %v2219, %v2219
      %v2519 = vmul.f32 %v2222, %v2222
      %v2520 = vmul.f32 %v2227, %v2227
      %v2521 = vmul.f32 %v2230, %v2230
      %v2522 = vmul.f32 %v2235, %v2235
      %v2523 = vmul.f32 %v2238, %v2238
      %v2524 = vmul.f32 %v2243, %v2243
      %v2525 = vmul.f32 %v2246, %v2246
      %v2526 = vmul.f32 %v2251, %v2251
      %v2527 = vmul.f32 %v2254, %v2254
      %v2528 = vmul.f32 %v2259, %v2259
      %v2529 = vmul.f32 %v2262, %v2262
      %v2530 = vmul.f32 %v2267, %v2267
      %v2531 = vmul.f32 %v2270, %v2270
      %v2532 = vmul.f32 %v2275, %v2275
      %v2533 = vmul.f32 %v2278, %v2278
      %v2534 = vmul.f32 %v2283, %v2283
      %v2535 = vmul.f32 %v2286, %v2286
      %v2536 = vmul.f32 %v2291, %v2291
      %v2537 = vmul.f32 %v2294, %v2294
      %v2538 = vmul.f32 %v2299, %v2299
      %v2539 = vmul.f32 %v2302, %v2302
      %v2540 = vmul.f32 %v2307, %v2307
      %v2541 = vmul.f32 %v2310, %v2310
      %v2542 = vadd.f32 %v2510, %v2511
      %v2543 = vadd.f32 %v2542, %v2512
      %v2544 = vadd.f32 %v2543, %v2513
      %v2545 = vadd.f32 %v2544, %v2514
      %v2546 = vadd.f32 %v2545, %v2515
      %v2547 = vadd.f32 %v2546, %v2516
      %v2548 = vadd.f32 %v2547, %v2517
      %v2549 = vadd.f32 %v2548, %v2518
      %v2550 = vadd.f32 %v2549, %v2519
      %v2551 = vadd.f32 %v2550, %v2520
      %v2552 = vadd.f32 %v2551, %v2521
      %v2553 = vadd.f32 %v2552, %v2522
      %v2554 = vadd.f32 %v2553, %v2523
      %v2555 = vadd.f32 %v2554, %v2524
      %v2556 = vadd.f32 %v2555, %v2525
      %v2557 = vadd.f32 %v2556, %v2526
      %v2558 = vadd.f32 %v2557, %v2527
      %v2559 = vadd.f32 %v2558, %v2528
      %v2560 = vadd.f32 %v2559, %v2529
      %v2561 = vadd.f32 %v2560, %v2530
      %v2562 = vadd.f32 %v2561, %v2531
      %v2563 = vadd.f32 %v2562, %v2532
      %v2564 = vadd.f32 %v2563, %v2533
      %v2565 = vadd.f32 %v2564, %v2534
      %v2566 = vadd.f32 %v2565, %v2535
      %v2567 = vadd.f32 %v2566, %v2536
      %v2568 = vadd.f32 %v2567, %v2537
      %v2569 = vadd.f32 %v2568, %v2538
      %v2570 = vadd.f32 %v2569, %v2539
      %v2571 = vadd.f32 %v2570, %v2540
      %v2572 = vadd.f32 %v2571, %v2541
      %v2573 = vrot.slane %v2572, 4
      %v2574 = vadd.f32 %v2572, %v2573
      %v2575 = vrot.slane %v2574, 2
      %v2576 = vadd.f32 %v2574, %v2575
      %v2577 = vrot.slane %v2576, 1
      %v2578 = vadd.f32 %v2576, %v2577
      %vm2579 = vcmask 1040384
      %v2580 = vsel %vm2579, %v2509, %v2578
      %vm2581 = vcmask 1041408
      %v2582 = vsel %vm2581, %v2580, 0.0
      %2583 = vst [vmem:[%s235] sm:$0xff] %v2582
      %p2584 = scmp.lt.s32.totalorder %s17, 1
      %s2585 = scalar_select %p2584, %s17, 1
      %s2586 = smul.addr %s2585, 32
      %s2587 = smul.addr %s2586, 4
      %s2588 = scalar_lea.vmem %s4, %s2587
      %p2589 = scmp.lt.s32.totalorder %s17, 1
      %s2590 = scalar_select %p2589, %s17, 1
      %s2591 = smul.addr %s2590, 8
      %s2592 = scalar_lea.vmem %s5, %s2591
      // Predicated region
      $region37: #{dual_path_block_forward_nhwc.6} parent=35 // pred_check
        %p2593 = pneg %p124
      $region38: #{dual_path_block_forward_nhwc.6} parent=35 // pred_check_branch
        %2595 = sbr.rel (%p2593) target = $region40
      $region39: #{dual_path_block_forward_nhwc.6} parent=35 // pred_region
        _
      $region40: #{dual_path_block_forward_nhwc.6} parent=35 // pred_fallthru
        _
      // Predicated region
      $region41: #{dual_path_block_forward_nhwc.6} parent=35 // pred_check
        %p2596 = pneg %p150
      $region42: #{dual_path_block_forward_nhwc.6} parent=35 // pred_check_branch
        %2598 = sbr.rel (%p2596) target = $region44
      $region43: #{dual_path_block_forward_nhwc.6} parent=35 // pred_region
        _
      $region44: #{dual_path_block_forward_nhwc.6} parent=35 // pred_fallthru
        _
    $region36: #{dual_path_block_forward_nhwc.6} parent=5 // pred_fallthru
      _
    %p2599 = scmp.le.s32.totalorder 2, %s12
    // Predicated region
    $region45: #{dual_path_block_forward_nhwc.6} parent=5 // pred_check
      %p2600 = pneg %p2599
    $region46: #{dual_path_block_forward_nhwc.6} parent=5 // pred_check_branch
      %2602 = sbr.rel (%p2600) target = $region48
    $region47: #{dual_path_block_forward_nhwc.6} parent=5 // pred_region
      %s2603 = ssub.s32 %s12, 2
      // Predicated region
      $region49: #{dual_path_block_forward_nhwc.6} parent=47 // pred_check
        %p2604 = pneg %p130
      $region50: #{dual_path_block_forward_nhwc.6} parent=47 // pred_check_branch
        %2606 = sbr.rel (%p2604) target = $region52
      $region51: #{dual_path_block_forward_nhwc.6} parent=47 // pred_region
        %p2607 = scmp.lt.s32.totalorder %s18, 1
        %s2608 = scalar_select %p2607, %s18, 1
        %s2609 = smul.addr %s2608, 32
        %s2610 = smul.addr %s2609, 4
        %s2611 = scalar_lea.vmem %s4, %s2610
      $region52: #{dual_path_block_forward_nhwc.6} parent=47 // pred_fallthru
        _
      // Predicated region
      $region53: #{dual_path_block_forward_nhwc.6} parent=47 // pred_check
        %p2612 = pneg %p156
      $region54: #{dual_path_block_forward_nhwc.6} parent=47 // pred_check_branch
        %2614 = sbr.rel (%p2612) target = $region56
      $region55: #{dual_path_block_forward_nhwc.6} parent=47 // pred_region
        %p2615 = scmp.lt.s32.totalorder %s18, 1
        %s2616 = scalar_select %p2615, %s18, 1
        %s2617 = smul.addr %s2616, 8
        %s2618 = scalar_lea.vmem %s5, %s2617
      $region56: #{dual_path_block_forward_nhwc.6} parent=47 // pred_fallthru
        _
    $region48: #{dual_path_block_forward_nhwc.6} parent=5 // pred_fallthru
      _
  $region6: #{dual_path_block_forward_nhwc.6} parent=0 // loop_footer
    %s16 = sadd.s32 1, %s12
  $region7: #{dual_path_block_forward_nhwc.6} parent=0 // loop_footer_branch
    %11 = sbr.rel target = $region3
  $region8: #{dual_path_block_forward_nhwc.6} parent=0 // loop_exit
    _

</llo_original>
